<compile_context>
chip_gen: v6e
topology: v6e:2x2x1
jax: 0.10.0
libtpu: 0.0.40
codegen_flags: <defaults>
</compile_context>

<pallas_src>
import functools

import jax
import jax.numpy as jnp
from jax.experimental import pallas as pl
from jax.experimental.pallas import tpu as pltpu


# ----------------------------- Pallas kernel --------------------------------
def _conditioner_kernel(*refs, n_convs, R, Wa):
    """One (batch, row-block) grid step: R output rows of every conv.

    Per conv i the refs are (inputs first, then outputs):
      x_ref: (1, 1, 2, 2, L, C)   space-to-depth, row-merged, channel-last:
                                  x_ref[0,0,p,q, r*Wa + b, c] ==
                                  x_padded[c, 2*(row0 + r) + p, 2*b + q]
      w_ref: (3, 3, C, Cout)      per-tap (C, Cout) weight matrices
      b_ref: (1, Cout)            float32 bias
      o_ref: (1, 1, R*Wa, Cout)   merged output rows (dead column kept, dropped
                                  by the wrapper), channel-last / lane-dense.
    """
    RW = R * Wa
    for i in range(n_convs):
        x_ref = refs[3 * i]
        w_ref = refs[3 * i + 1]
        b_ref = refs[3 * i + 2]
        o_ref = refs[3 * n_convs + i]
        cout = o_ref.shape[-1]

        acc = jnp.zeros((RW, cout), dtype=jnp.float32)
        # 9 taps -> 9 row-batched GEMMs: (R*Wa, C) x (C, Cout), f32 accumulate.
        for kh in range(3):
            p, da = kh % 2, kh // 2
            for kw in range(3):
                q, db = kw % 2, kw // 2
                # Static, contiguous slice of the merged rows*Wa axis.  The kw
                # (db) shift only wraps into the dead column b == Wa-1 (never a
                # valid output column); the (da=1, db=1) tap reads one element
                # into the zero tail, which also lands in the dead column.
                lhs = x_ref[0, 0, p, q, pl.ds(da * Wa + db, RW), :]   # (RW, C)
                acc = acc + jnp.dot(lhs, w_ref[kh, kw],
                                    preferred_element_type=jnp.float32)

        acc = acc + b_ref[...].astype(jnp.float32)     # one bias add per block
        o_ref[0, 0] = acc.astype(o_ref.dtype)


# ------------------------------ helpers --------------------------------------
def _round_up(x, m):
    return -(-x // m) * m


def _padded_tile_bytes(shape, dtype):
    """Rough VMEM footprint of a block, accounting for (sublane, lane) padding."""
    dt = jnp.dtype(dtype)
    *lead, s, l = shape
    n = 1
    for d in lead:
        n *= d
    sub = 8 * max(1, 4 // dt.itemsize)            # 8 for f32, 16 for bf16
    return n * _round_up(max(s, 1), sub) * _round_up(max(l, 1), 128) * dt.itemsize


def _vmem_budget_bytes():
    try:
        cap = int(pltpu.get_tpu_info().vmem_capacity_bytes)
    except Exception:
        cap = 128 * 2**20
    # ~48 MiB on 64-MiB parts (v7x), ~96 MiB on 128-MiB parts (v5e/v6e).
    return max(16 * 2**20, min(cap - 16 * 2**20, 96 * 2**20))


# ------------------------------ Conv wrapper ----------------------------------
def _conditioner_conv(x_list, w_list, b_list, *, pad, compute_dtype,
                      max_rows_per_block=None):
    """len(x_list) stacked 3x3 / stride-2 convs (nn.Conv2d semantics), NCHW io.

    All x in x_list share one shape (N, C, H, W); w: (Cout, C, 3, 3); b: (Cout,).
    Returns a list of (N, Cout, Hout, Wout) arrays.
    """
    n_convs = len(x_list)
    N, C, H, W = x_list[0].shape
    Cout = w_list[0].shape[0]
    out_dtype = x_list[0].dtype
    cdt = jnp.dtype(compute_dtype)

    Hp, Wp = H + 2 * pad, W + 2 * pad
    assert Hp >= 3 and Wp >= 3, "input too small for a 3x3 / stride-2 conv"
    Hout, Wout = (Hp - 3) // 2 + 1, (Wp - 3) // 2 + 1
    Wa = (Wp + Wp % 2) // 2                        # == Wout + 1 (last col dead)
    sub = 8 * max(1, 4 // cdt.itemsize)            # sublane multiple

    # ---- choose output rows per block: MXU fill vs. generation VMEM budget ---
    budget = _vmem_budget_bytes()

    def vmem_need(r):
        l = _round_up((r + 1) * Wa + 1, sub)
        xb = _padded_tile_bytes((2, 2, l, C), cdt)
        ob = _padded_tile_bytes((r * Wa, Cout), out_dtype)
        wb = _padded_tile_bytes((3, 3, C, Cout), cdt)
        bb = _padded_tile_bytes((1, Cout), jnp.float32)
        accb = _padded_tile_bytes((r * Wa, Cout), jnp.float32)
        # double-buffered x/out blocks + resident weights/bias + accumulator.
        return n_convs * (2 * (xb + ob) + wb + bb + 2 * accb) + (2 << 20)

    R = min(Hout, max(1, -(-1024 // Wa)))          # aim for ~1k GEMM rows/block
    if max_rows_per_block is not None:
        R = max(1, min(R, int(max_rows_per_block)))
    while R > 1 and vmem_need(R) > budget:
        R = (R + 1) // 2
    # TODO(synk): if vmem_need(1) still exceeds the budget (extreme C * W),
    # add a further grid axis tiling the channel / width dimensions.
    RB = -(-Hout // R)                             # number of row blocks
    Ha_need = RB * R + 1                           # rows incl. per-block halo
    L = _round_up((R + 1) * Wa + 1, sub)           # merged rows*Wa axis (+tail)

    def relayout(x):
        # Cast first (halves relayout HBM bytes in bf16 mode), then one pad +
        # space-to-depth transpose.  Stride-2 and the 3x3 halo become static,
        # contiguous slices inside the kernel.
        xp = jnp.pad(x.astype(cdt),
                     ((0, 0), (0, 0),
                      (pad, 2 * Ha_need - H - pad),
                      (pad, 2 * Wa - W - pad)))
        xs = xp.reshape(N, C, Ha_need, 2, Wa, 2).transpose(0, 3, 5, 2, 4, 1)
        if RB == 1:
            blk = xs[:, None]                                 # (N,1,2,2,R+1,Wa,C)
        else:
            # Duplicate the 1-row halo per row block (extra HBM ~1/R of input);
            # only taken when row tiling is actually needed / requested.
            main = xs[:, :, :, :RB * R].reshape(N, 2, 2, RB, R, Wa, C)
            halo = xs[:, :, :, R::R].reshape(N, 2, 2, RB, 1, Wa, C)
            blk = jnp.moveaxis(jnp.concatenate([main, halo], axis=4), 3, 1)
        blk = blk.reshape(N, RB, 2, 2, (R + 1) * Wa, C)
        return jnp.pad(blk, ((0, 0),) * 4 + ((0, L - (R + 1) * Wa), (0, 0)))

    operands, in_specs = [], []
    for i in range(n_convs):
        operands += [
            relayout(x_list[i]),
            jnp.transpose(w_list[i], (2, 3, 1, 0)).astype(cdt),    # (3,3,C,Cout)
            b_list[i].reshape(1, Cout).astype(jnp.float32),
        ]
        in_specs += [
            pl.BlockSpec((1, 1, 2, 2, L, C), lambda n, rb: (n, rb, 0, 0, 0, 0)),
            pl.BlockSpec((3, 3, C, Cout), lambda n, rb: (0, 0, 0, 0)),
            pl.BlockSpec((1, Cout), lambda n, rb: (0, 0)),
        ]
    out_shape = tuple(jax.ShapeDtypeStruct((N, RB, R * Wa, Cout), out_dtype)
                      for _ in range(n_convs))
    out_specs = tuple(pl.BlockSpec((1, 1, R * Wa, Cout),
                                   lambda n, rb: (n, rb, 0, 0))
                      for _ in range(n_convs))

    flops = 2 * n_convs * N * RB * R * Wa * 9 * C * Cout
    bytes_accessed = int(sum(op.size * op.dtype.itemsize for op in operands)
                         + n_convs * N * RB * R * Wa * Cout
                         * jnp.dtype(out_dtype).itemsize)

    kernel = functools.partial(_conditioner_kernel, n_convs=n_convs, R=R, Wa=Wa)
    outs = pl.pallas_call(
        kernel,
        out_shape=out_shape,
        grid_spec=pltpu.PrefetchScalarGridSpec(
            num_scalar_prefetch=0,
            grid=(N, RB),
            in_specs=in_specs,
            out_specs=out_specs),
        compiler_params=pltpu.CompilerParams(
            dimension_semantics=("parallel", "parallel"),
            vmem_limit_bytes=int(min(budget,
                                     max(vmem_need(R) + (4 << 20), 16 << 20)))),
        cost_estimate=pl.CostEstimate(flops=flops, transcendentals=0,
                                      bytes_accessed=bytes_accessed),
    )(*operands)
    if not isinstance(outs, (list, tuple)):
        outs = (outs,)

    results = []
    for o in outs:
        # (N, RB, R*Wa, Cout) -> drop dead/garbage rows & columns -> NCHW.
        # One cheap pass over the already-4x-downsampled output.
        o = o.reshape(N, RB * R, Wa, Cout)[:, :Hout, :Wout, :]
        results.append(jnp.transpose(o, (0, 3, 1, 2)))
    return results


# --------------------------- Downsample2D module -----------------------------
def init_downsample2d_params(key, channels, out_channels=None,
                             dtype=jnp.float32):
    out_channels = out_channels or channels
    k = 3
    fan_in = channels * k * k
    bound = 1.0 / jnp.sqrt(fan_in)
    keys = jax.random.split(key, 4)
    mk = lambda kk, shape: jax.random.uniform(
        kk, shape, dtype=dtype, minval=-bound, maxval=bound)
    return {
        "spatial_w": mk(keys[0], (out_channels, channels, k, k)),
        "spatial_b": mk(keys[1], (out_channels,)),
        "cond_w": mk(keys[2], (out_channels, channels, k, k)),
        "cond_b": mk(keys[3], (out_channels,)),
    }


@functools.partial(jax.jit,
                   static_argnames=("use_conv", "padding", "compute_dtype",
                                    "max_rows_per_block"))
def downsample2d_forward(params, hidden_states, conditioning_hidden_states,
                         use_conv=False, padding=1, compute_dtype="bfloat16",
                         max_rows_per_block=None):
    """Downsample2D.forward: two independent 3x3 / stride-2 convolutions."""
    if use_conv and padding == 0:
        # Reference semantics: asymmetric (right/bottom) pad on hidden only.
        hidden_states = jnp.pad(hidden_states,
                                ((0, 0), (0, 0), (0, 1), (0, 1)))

    sw, sb = params["spatial_w"], params["spatial_b"]
    cw, cb = params["cond_w"], params["cond_b"]

    if hidden_states.shape == conditioning_hidden_states.shape:
        # Fused path: one pallas_call, both convs in one kernel body (no
        # full-size jnp.stack of the inputs).
        h, c = _conditioner_conv(
            [hidden_states, conditioning_hidden_states], [sw, cw], [sb, cb],
            pad=padding, compute_dtype=compute_dtype,
            max_rows_per_block=max_rows_per_block)
        return h, c

    # Shapes differ (use_conv & padding == 0 branch): run separately.
    (h,) = _conditioner_conv([hidden_states], [sw], [sb], pad=padding,
                             compute_dtype=compute_dtype,
                             max_rows_per_block=max_rows_per_block)
    (c,) = _conditioner_conv([conditioning_hidden_states], [cw], [cb],
                             pad=padding, compute_dtype=compute_dtype,
                             max_rows_per_block=max_rows_per_block)
    return h, c


# ---------------------------------- main -------------------------------------
if __name__ == "__main__":
    key = jax.random.PRNGKey(0)
    k_p, k_x, k_c = jax.random.split(key, 3)

    N, C, H, W = 2, 4, 16, 16
    params = init_downsample2d_params(k_p, channels=C)
    hidden = jax.random.normal(k_x, (N, C, H, W), dtype=jnp.float32)
    cond = jax.random.normal(k_c, (N, C, H, W), dtype=jnp.float32)

    def ref_conv(x, w, b, dtype=jnp.float32, pad=((1, 1), (1, 1))):
        y = jax.lax.conv_general_dilated(
            x.astype(dtype), w.astype(dtype), window_strides=(2, 2),
            padding=pad, dimension_numbers=("NCHW", "OIHW", "NCHW"),
            preferred_element_type=jnp.float32)
        return y + b[None, :, None, None]

    # Exact path: f32 MXU operands, single row block, tight check vs XLA conv.
    h32, c32 = downsample2d_forward(params, hidden, cond,
                                    compute_dtype="float32")
    jax.block_until_ready((h32, c32))
    assert h32.shape == (N, C, H // 2, W // 2)
    assert c32.shape == (N, C, H // 2, W // 2)
    assert jnp.allclose(h32, ref_conv(hidden, params["spatial_w"],
                                      params["spatial_b"]),
                        atol=1e-4, rtol=1e-4)
    assert jnp.allclose(c32, ref_conv(cond, params["cond_w"],
                                      params["cond_b"]),
                        atol=1e-4, rtol=1e-4)

    # Multi-row-block grid (exercises the halo / RB > 1 path used on v7x).
    h32b, c32b = downsample2d_forward(params, hidden, cond,
                                      compute_dtype="float32",
                                      max_rows_per_block=3)
    jax.block_until_ready((h32b, c32b))
    assert jnp.allclose(h32b, h32, atol=1e-5, rtol=1e-5)
    assert jnp.allclose(c32b, c32, atol=1e-5, rtol=1e-5)

    # use_conv & padding == 0 branch (asymmetric pad on hidden only,
    # different output shapes -> two separate pallas_calls).
    h0, c0 = downsample2d_forward(params, hidden, cond, use_conv=True,
                                  padding=0, compute_dtype="float32")
    jax.block_until_ready((h0, c0))
    assert h0.shape == (N, C, 8, 8) and c0.shape == (N, C, 7, 7)
    assert jnp.allclose(h0, ref_conv(hidden, params["spatial_w"],
                                     params["spatial_b"],
                                     pad=((0, 1), (0, 1))),
                        atol=1e-4, rtol=1e-4)
    assert jnp.allclose(c0, ref_conv(cond, params["cond_w"],
                                     params["cond_b"],
                                     pad=((0, 0), (0, 0))),
                        atol=1e-4, rtol=1e-4)

    # Default fast path: bf16 MXU operands, f32 accumulation.  Compare against
    # a reference computed with the same bf16 operands + f32 accumulation.
    hbf, cbf = downsample2d_forward(params, hidden, cond)
    jax.block_until_ready((hbf, cbf))
    assert hbf.shape == (N, C, H // 2, W // 2)
    assert jnp.allclose(hbf, ref_conv(hidden, params["spatial_w"],
                                      params["spatial_b"],
                                      dtype=jnp.bfloat16),
                        atol=2e-3, rtol=2e-3)
    assert jnp.allclose(cbf, ref_conv(cond, params["cond_w"],
                                      params["cond_b"],
                                      dtype=jnp.bfloat16),
                        atol=2e-3, rtol=2e-3)

    print("KERNEL_OK")
</pallas_src>

<mosaic_0001>
module attributes {stable_mosaic.version = 11 : i64} {
  func.func @_conditioner_kernel(%arg0: i32, %arg1: i32, %arg2: memref<1x1x2x2x88x4xf32, #tpu.memory_space<vmem>>, %arg3: memref<3x3x4x4xf32, #tpu.memory_space<vmem>>, %arg4: memref<1x4xf32, #tpu.memory_space<vmem>>, %arg5: memref<1x1x2x2x88x4xf32, #tpu.memory_space<vmem>>, %arg6: memref<3x3x4x4xf32, #tpu.memory_space<vmem>>, %arg7: memref<1x4xf32, #tpu.memory_space<vmem>>, %arg8: memref<1x1x72x4xf32, #tpu.memory_space<vmem>>, %arg9: memref<1x1x72x4xf32, #tpu.memory_space<vmem>>) attributes {dimension_semantics = [#tpu.dimension_semantics<parallel>, #tpu.dimension_semantics<parallel>], iteration_bounds = array<i64: 2, 1>, scalar_prefetch = 0 : i64, scratch_operands = 0 : i64, tpu.core_type = #tpu.core_type<tc>, window_params = [{transform_indices = @transform_0, window_bounds = array<i64: 1, 1, 2, 2, 88, 4>}, {pipeline_mode = #tpu.pipeline_mode<synchronous>, transform_indices = @transform_1, window_bounds = array<i64: 3, 3, 4, 4>}, {pipeline_mode = #tpu.pipeline_mode<synchronous>, transform_indices = @transform_2, window_bounds = array<i64: 1, 4>}, {transform_indices = @transform_3, window_bounds = array<i64: 1, 1, 2, 2, 88, 4>}, {pipeline_mode = #tpu.pipeline_mode<synchronous>, transform_indices = @transform_4, window_bounds = array<i64: 3, 3, 4, 4>}, {pipeline_mode = #tpu.pipeline_mode<synchronous>, transform_indices = @transform_5, window_bounds = array<i64: 1, 4>}, {transform_indices = @transform_6, window_bounds = array<i64: 1, 1, 72, 4>}, {transform_indices = @transform_7, window_bounds = array<i64: 1, 1, 72, 4>}]} {
    %cst = arith.constant 0.000000e+00 : f32
    %0 = vector.broadcast %cst : f32 to vector<72x4xf32>
    %c0 = arith.constant 0 : index
    %c0_0 = arith.constant 0 : index
    %c0_1 = arith.constant 0 : index
    %c0_2 = arith.constant 0 : index
    %c0_3 = arith.constant 0 : index
    %c0_4 = arith.constant 0 : index
    %1 = vector.load %arg2[%c0, %c0_0, %c0_1, %c0_2, %c0_3, %c0_4] : memref<1x1x2x2x88x4xf32, #tpu.memory_space<vmem>>, vector<1x1x1x1x72x4xf32>
    %2 = vector.shape_cast %1 : vector<1x1x1x1x72x4xf32> to vector<72x4xf32>
    %c0_5 = arith.constant 0 : index
    %c0_6 = arith.constant 0 : index
    %c0_7 = arith.constant 0 : index
    %c0_8 = arith.constant 0 : index
    %3 = vector.load %arg3[%c0_5, %c0_6, %c0_7, %c0_8] : memref<3x3x4x4xf32, #tpu.memory_space<vmem>>, vector<1x1x4x4xf32>
    %4 = vector.shape_cast %3 : vector<1x1x4x4xf32> to vector<4x4xf32>
    %cst_9 = arith.constant dense<0.000000e+00> : vector<72x4xf32>
    %5 = tpu.matmul %2, %4, %cst_9 {dimension_numbers = #tpu.dot_dimension_numbers<[1], [0], [0], [1], [0, 0, 1, 1], [], []>} : vector<72x4xf32>, vector<4x4xf32>, vector<72x4xf32> -> vector<72x4xf32>
    %6 = arith.addf %0, %5 : vector<72x4xf32>
    %c0_10 = arith.constant 0 : index
    %c0_11 = arith.constant 0 : index
    %c0_12 = arith.constant 0 : index
    %c1 = arith.constant 1 : index
    %c0_13 = arith.constant 0 : index
    %c0_14 = arith.constant 0 : index
    %7 = vector.load %arg2[%c0_10, %c0_11, %c0_12, %c1, %c0_13, %c0_14] : memref<1x1x2x2x88x4xf32, #tpu.memory_space<vmem>>, vector<1x1x1x1x72x4xf32>
    %8 = vector.shape_cast %7 : vector<1x1x1x1x72x4xf32> to vector<72x4xf32>
    %c0_15 = arith.constant 0 : index
    %c1_16 = arith.constant 1 : index
    %c0_17 = arith.constant 0 : index
    %c0_18 = arith.constant 0 : index
    %9 = vector.load %arg3[%c0_15, %c1_16, %c0_17, %c0_18] : memref<3x3x4x4xf32, #tpu.memory_space<vmem>>, vector<1x1x4x4xf32>
    %10 = vector.shape_cast %9 : vector<1x1x4x4xf32> to vector<4x4xf32>
    %cst_19 = arith.constant dense<0.000000e+00> : vector<72x4xf32>
    %11 = tpu.matmul %8, %10, %cst_19 {dimension_numbers = #tpu.dot_dimension_numbers<[1], [0], [0], [1], [0, 0, 1, 1], [], []>} : vector<72x4xf32>, vector<4x4xf32>, vector<72x4xf32> -> vector<72x4xf32>
    %12 = arith.addf %6, %11 : vector<72x4xf32>
    %c0_20 = arith.constant 0 : index
    %c0_21 = arith.constant 0 : index
    %c0_22 = arith.constant 0 : index
    %c0_23 = arith.constant 0 : index
    %c1_24 = arith.constant 1 : index
    %c0_25 = arith.constant 0 : index
    %13 = vector.load %arg2[%c0_20, %c0_21, %c0_22, %c0_23, %c1_24, %c0_25] : memref<1x1x2x2x88x4xf32, #tpu.memory_space<vmem>>, vector<1x1x1x1x72x4xf32>
    %14 = vector.shape_cast %13 : vector<1x1x1x1x72x4xf32> to vector<72x4xf32>
    %c0_26 = arith.constant 0 : index
    %c2 = arith.constant 2 : index
    %c0_27 = arith.constant 0 : index
    %c0_28 = arith.constant 0 : index
    %15 = vector.load %arg3[%c0_26, %c2, %c0_27, %c0_28] : memref<3x3x4x4xf32, #tpu.memory_space<vmem>>, vector<1x1x4x4xf32>
    %16 = vector.shape_cast %15 : vector<1x1x4x4xf32> to vector<4x4xf32>
    %cst_29 = arith.constant dense<0.000000e+00> : vector<72x4xf32>
    %17 = tpu.matmul %14, %16, %cst_29 {dimension_numbers = #tpu.dot_dimension_numbers<[1], [0], [0], [1], [0, 0, 1, 1], [], []>} : vector<72x4xf32>, vector<4x4xf32>, vector<72x4xf32> -> vector<72x4xf32>
    %18 = arith.addf %12, %17 : vector<72x4xf32>
    %c0_30 = arith.constant 0 : index
    %c0_31 = arith.constant 0 : index
    %c1_32 = arith.constant 1 : index
    %c0_33 = arith.constant 0 : index
    %c0_34 = arith.constant 0 : index
    %c0_35 = arith.constant 0 : index
    %19 = vector.load %arg2[%c0_30, %c0_31, %c1_32, %c0_33, %c0_34, %c0_35] : memref<1x1x2x2x88x4xf32, #tpu.memory_space<vmem>>, vector<1x1x1x1x72x4xf32>
    %20 = vector.shape_cast %19 : vector<1x1x1x1x72x4xf32> to vector<72x4xf32>
    %c1_36 = arith.constant 1 : index
    %c0_37 = arith.constant 0 : index
    %c0_38 = arith.constant 0 : index
    %c0_39 = arith.constant 0 : index
    %21 = vector.load %arg3[%c1_36, %c0_37, %c0_38, %c0_39] : memref<3x3x4x4xf32, #tpu.memory_space<vmem>>, vector<1x1x4x4xf32>
    %22 = vector.shape_cast %21 : vector<1x1x4x4xf32> to vector<4x4xf32>
    %cst_40 = arith.constant dense<0.000000e+00> : vector<72x4xf32>
    %23 = tpu.matmul %20, %22, %cst_40 {dimension_numbers = #tpu.dot_dimension_numbers<[1], [0], [0], [1], [0, 0, 1, 1], [], []>} : vector<72x4xf32>, vector<4x4xf32>, vector<72x4xf32> -> vector<72x4xf32>
    %24 = arith.addf %18, %23 : vector<72x4xf32>
    %c0_41 = arith.constant 0 : index
    %c0_42 = arith.constant 0 : index
    %c1_43 = arith.constant 1 : index
    %c1_44 = arith.constant 1 : index
    %c0_45 = arith.constant 0 : index
    %c0_46 = arith.constant 0 : index
    %25 = vector.load %arg2[%c0_41, %c0_42, %c1_43, %c1_44, %c0_45, %c0_46] : memref<1x1x2x2x88x4xf32, #tpu.memory_space<vmem>>, vector<1x1x1x1x72x4xf32>
    %26 = vector.shape_cast %25 : vector<1x1x1x1x72x4xf32> to vector<72x4xf32>
    %c1_47 = arith.constant 1 : index
    %c1_48 = arith.constant 1 : index
    %c0_49 = arith.constant 0 : index
    %c0_50 = arith.constant 0 : index
    %27 = vector.load %arg3[%c1_47, %c1_48, %c0_49, %c0_50] : memref<3x3x4x4xf32, #tpu.memory_space<vmem>>, vector<1x1x4x4xf32>
    %28 = vector.shape_cast %27 : vector<1x1x4x4xf32> to vector<4x4xf32>
    %cst_51 = arith.constant dense<0.000000e+00> : vector<72x4xf32>
    %29 = tpu.matmul %26, %28, %cst_51 {dimension_numbers = #tpu.dot_dimension_numbers<[1], [0], [0], [1], [0, 0, 1, 1], [], []>} : vector<72x4xf32>, vector<4x4xf32>, vector<72x4xf32> -> vector<72x4xf32>
    %30 = arith.addf %24, %29 : vector<72x4xf32>
    %c0_52 = arith.constant 0 : index
    %c0_53 = arith.constant 0 : index
    %c1_54 = arith.constant 1 : index
    %c0_55 = arith.constant 0 : index
    %c1_56 = arith.constant 1 : index
    %c0_57 = arith.constant 0 : index
    %31 = vector.load %arg2[%c0_52, %c0_53, %c1_54, %c0_55, %c1_56, %c0_57] : memref<1x1x2x2x88x4xf32, #tpu.memory_space<vmem>>, vector<1x1x1x1x72x4xf32>
    %32 = vector.shape_cast %31 : vector<1x1x1x1x72x4xf32> to vector<72x4xf32>
    %c1_58 = arith.constant 1 : index
    %c2_59 = arith.constant 2 : index
    %c0_60 = arith.constant 0 : index
    %c0_61 = arith.constant 0 : index
    %33 = vector.load %arg3[%c1_58, %c2_59, %c0_60, %c0_61] : memref<3x3x4x4xf32, #tpu.memory_space<vmem>>, vector<1x1x4x4xf32>
    %34 = vector.shape_cast %33 : vector<1x1x4x4xf32> to vector<4x4xf32>
    %cst_62 = arith.constant dense<0.000000e+00> : vector<72x4xf32>
    %35 = tpu.matmul %32, %34, %cst_62 {dimension_numbers = #tpu.dot_dimension_numbers<[1], [0], [0], [1], [0, 0, 1, 1], [], []>} : vector<72x4xf32>, vector<4x4xf32>, vector<72x4xf32> -> vector<72x4xf32>
    %36 = arith.addf %30, %35 : vector<72x4xf32>
    %c0_63 = arith.constant 0 : index
    %c0_64 = arith.constant 0 : index
    %c0_65 = arith.constant 0 : index
    %c0_66 = arith.constant 0 : index
    %c9 = arith.constant 9 : index
    %c0_67 = arith.constant 0 : index
    %37 = vector.load %arg2[%c0_63, %c0_64, %c0_65, %c0_66, %c9, %c0_67] : memref<1x1x2x2x88x4xf32, #tpu.memory_space<vmem>>, vector<1x1x1x1x72x4xf32>
    %38 = vector.shape_cast %37 : vector<1x1x1x1x72x4xf32> to vector<72x4xf32>
    %c2_68 = arith.constant 2 : index
    %c0_69 = arith.constant 0 : index
    %c0_70 = arith.constant 0 : index
    %c0_71 = arith.constant 0 : index
    %39 = vector.load %arg3[%c2_68, %c0_69, %c0_70, %c0_71] : memref<3x3x4x4xf32, #tpu.memory_space<vmem>>, vector<1x1x4x4xf32>
    %40 = vector.shape_cast %39 : vector<1x1x4x4xf32> to vector<4x4xf32>
    %cst_72 = arith.constant dense<0.000000e+00> : vector<72x4xf32>
    %41 = tpu.matmul %38, %40, %cst_72 {dimension_numbers = #tpu.dot_dimension_numbers<[1], [0], [0], [1], [0, 0, 1, 1], [], []>} : vector<72x4xf32>, vector<4x4xf32>, vector<72x4xf32> -> vector<72x4xf32>
    %42 = arith.addf %36, %41 : vector<72x4xf32>
    %c0_73 = arith.constant 0 : index
    %c0_74 = arith.constant 0 : index
    %c0_75 = arith.constant 0 : index
    %c1_76 = arith.constant 1 : index
    %c9_77 = arith.constant 9 : index
    %c0_78 = arith.constant 0 : index
    %43 = vector.load %arg2[%c0_73, %c0_74, %c0_75, %c1_76, %c9_77, %c0_78] : memref<1x1x2x2x88x4xf32, #tpu.memory_space<vmem>>, vector<1x1x1x1x72x4xf32>
    %44 = vector.shape_cast %43 : vector<1x1x1x1x72x4xf32> to vector<72x4xf32>
    %c2_79 = arith.constant 2 : index
    %c1_80 = arith.constant 1 : index
    %c0_81 = arith.constant 0 : index
    %c0_82 = arith.constant 0 : index
    %45 = vector.load %arg3[%c2_79, %c1_80, %c0_81, %c0_82] : memref<3x3x4x4xf32, #tpu.memory_space<vmem>>, vector<1x1x4x4xf32>
    %46 = vector.shape_cast %45 : vector<1x1x4x4xf32> to vector<4x4xf32>
    %cst_83 = arith.constant dense<0.000000e+00> : vector<72x4xf32>
    %47 = tpu.matmul %44, %46, %cst_83 {dimension_numbers = #tpu.dot_dimension_numbers<[1], [0], [0], [1], [0, 0, 1, 1], [], []>} : vector<72x4xf32>, vector<4x4xf32>, vector<72x4xf32> -> vector<72x4xf32>
    %48 = arith.addf %42, %47 : vector<72x4xf32>
    %c0_84 = arith.constant 0 : index
    %c0_85 = arith.constant 0 : index
    %c0_86 = arith.constant 0 : index
    %c0_87 = arith.constant 0 : index
    %c10 = arith.constant 10 : index
    %c0_88 = arith.constant 0 : index
    %49 = vector.load %arg2[%c0_84, %c0_85, %c0_86, %c0_87, %c10, %c0_88] : memref<1x1x2x2x88x4xf32, #tpu.memory_space<vmem>>, vector<1x1x1x1x72x4xf32>
    %50 = vector.shape_cast %49 : vector<1x1x1x1x72x4xf32> to vector<72x4xf32>
    %c2_89 = arith.constant 2 : index
    %c2_90 = arith.constant 2 : index
    %c0_91 = arith.constant 0 : index
    %c0_92 = arith.constant 0 : index
    %51 = vector.load %arg3[%c2_89, %c2_90, %c0_91, %c0_92] : memref<3x3x4x4xf32, #tpu.memory_space<vmem>>, vector<1x1x4x4xf32>
    %52 = vector.shape_cast %51 : vector<1x1x4x4xf32> to vector<4x4xf32>
    %cst_93 = arith.constant dense<0.000000e+00> : vector<72x4xf32>
    %53 = tpu.matmul %50, %52, %cst_93 {dimension_numbers = #tpu.dot_dimension_numbers<[1], [0], [0], [1], [0, 0, 1, 1], [], []>} : vector<72x4xf32>, vector<4x4xf32>, vector<72x4xf32> -> vector<72x4xf32>
    %54 = arith.addf %48, %53 : vector<72x4xf32>
    %c0_94 = arith.constant 0 : index
    %c0_95 = arith.constant 0 : index
    %55 = vector.load %arg4[%c0_94, %c0_95] : memref<1x4xf32, #tpu.memory_space<vmem>>, vector<1x4xf32>
    %56 = vector.broadcast %55 : vector<1x4xf32> to vector<72x4xf32>
    %57 = arith.addf %54, %56 : vector<72x4xf32>
    %c0_96 = arith.constant 0 : index
    %c0_97 = arith.constant 0 : index
    %c0_98 = arith.constant 0 : index
    %c0_99 = arith.constant 0 : index
    %58 = vector.load %arg8[%c0_96, %c0_97, %c0_98, %c0_99] : memref<1x1x72x4xf32, #tpu.memory_space<vmem>>, vector<1x1x72x4xf32>
    %59 = vector.shape_cast %58 : vector<1x1x72x4xf32> to vector<72x4xf32>
    %60 = vector.shape_cast %57 : vector<72x4xf32> to vector<1x1x72x4xf32>
    tpu.vector_store %arg8[%c0_96, %c0_97, %c0_98, %c0_99], %60 {strides = array<i32>} : memref<1x1x72x4xf32, #tpu.memory_space<vmem>>, vector<1x1x72x4xf32>,
    %cst_100 = arith.constant 0.000000e+00 : f32
    %61 = vector.broadcast %cst_100 : f32 to vector<72x4xf32>
    %c0_101 = arith.constant 0 : index
    %c0_102 = arith.constant 0 : index
    %c0_103 = arith.constant 0 : index
    %c0_104 = arith.constant 0 : index
    %c0_105 = arith.constant 0 : index
    %c0_106 = arith.constant 0 : index
    %62 = vector.load %arg5[%c0_101, %c0_102, %c0_103, %c0_104, %c0_105, %c0_106] : memref<1x1x2x2x88x4xf32, #tpu.memory_space<vmem>>, vector<1x1x1x1x72x4xf32>
    %63 = vector.shape_cast %62 : vector<1x1x1x1x72x4xf32> to vector<72x4xf32>
    %c0_107 = arith.constant 0 : index
    %c0_108 = arith.constant 0 : index
    %c0_109 = arith.constant 0 : index
    %c0_110 = arith.constant 0 : index
    %64 = vector.load %arg6[%c0_107, %c0_108, %c0_109, %c0_110] : memref<3x3x4x4xf32, #tpu.memory_space<vmem>>, vector<1x1x4x4xf32>
    %65 = vector.shape_cast %64 : vector<1x1x4x4xf32> to vector<4x4xf32>
    %cst_111 = arith.constant dense<0.000000e+00> : vector<72x4xf32>
    %66 = tpu.matmul %63, %65, %cst_111 {dimension_numbers = #tpu.dot_dimension_numbers<[1], [0], [0], [1], [0, 0, 1, 1], [], []>} : vector<72x4xf32>, vector<4x4xf32>, vector<72x4xf32> -> vector<72x4xf32>
    %67 = arith.addf %61, %66 : vector<72x4xf32>
    %c0_112 = arith.constant 0 : index
    %c0_113 = arith.constant 0 : index
    %c0_114 = arith.constant 0 : index
    %c1_115 = arith.constant 1 : index
    %c0_116 = arith.constant 0 : index
    %c0_117 = arith.constant 0 : index
    %68 = vector.load %arg5[%c0_112, %c0_113, %c0_114, %c1_115, %c0_116, %c0_117] : memref<1x1x2x2x88x4xf32, #tpu.memory_space<vmem>>, vector<1x1x1x1x72x4xf32>
    %69 = vector.shape_cast %68 : vector<1x1x1x1x72x4xf32> to vector<72x4xf32>
    %c0_118 = arith.constant 0 : index
    %c1_119 = arith.constant 1 : index
    %c0_120 = arith.constant 0 : index
    %c0_121 = arith.constant 0 : index
    %70 = vector.load %arg6[%c0_118, %c1_119, %c0_120, %c0_121] : memref<3x3x4x4xf32, #tpu.memory_space<vmem>>, vector<1x1x4x4xf32>
    %71 = vector.shape_cast %70 : vector<1x1x4x4xf32> to vector<4x4xf32>
    %cst_122 = arith.constant dense<0.000000e+00> : vector<72x4xf32>
    %72 = tpu.matmul %69, %71, %cst_122 {dimension_numbers = #tpu.dot_dimension_numbers<[1], [0], [0], [1], [0, 0, 1, 1], [], []>} : vector<72x4xf32>, vector<4x4xf32>, vector<72x4xf32> -> vector<72x4xf32>
    %73 = arith.addf %67, %72 : vector<72x4xf32>
    %c0_123 = arith.constant 0 : index
    %c0_124 = arith.constant 0 : index
    %c0_125 = arith.constant 0 : index
    %c0_126 = arith.constant 0 : index
    %c1_127 = arith.constant 1 : index
    %c0_128 = arith.constant 0 : index
    %74 = vector.load %arg5[%c0_123, %c0_124, %c0_125, %c0_126, %c1_127, %c0_128] : memref<1x1x2x2x88x4xf32, #tpu.memory_space<vmem>>, vector<1x1x1x1x72x4xf32>
    %75 = vector.shape_cast %74 : vector<1x1x1x1x72x4xf32> to vector<72x4xf32>
    %c0_129 = arith.constant 0 : index
    %c2_130 = arith.constant 2 : index
    %c0_131 = arith.constant 0 : index
    %c0_132 = arith.constant 0 : index
    %76 = vector.load %arg6[%c0_129, %c2_130, %c0_131, %c0_132] : memref<3x3x4x4xf32, #tpu.memory_space<vmem>>, vector<1x1x4x4xf32>
    %77 = vector.shape_cast %76 : vector<1x1x4x4xf32> to vector<4x4xf32>
    %cst_133 = arith.constant dense<0.000000e+00> : vector<72x4xf32>
    %78 = tpu.matmul %75, %77, %cst_133 {dimension_numbers = #tpu.dot_dimension_numbers<[1], [0], [0], [1], [0, 0, 1, 1], [], []>} : vector<72x4xf32>, vector<4x4xf32>, vector<72x4xf32> -> vector<72x4xf32>
    %79 = arith.addf %73, %78 : vector<72x4xf32>
    %c0_134 = arith.constant 0 : index
    %c0_135 = arith.constant 0 : index
    %c1_136 = arith.constant 1 : index
    %c0_137 = arith.constant 0 : index
    %c0_138 = arith.constant 0 : index
    %c0_139 = arith.constant 0 : index
    %80 = vector.load %arg5[%c0_134, %c0_135, %c1_136, %c0_137, %c0_138, %c0_139] : memref<1x1x2x2x88x4xf32, #tpu.memory_space<vmem>>, vector<1x1x1x1x72x4xf32>
    %81 = vector.shape_cast %80 : vector<1x1x1x1x72x4xf32> to vector<72x4xf32>
    %c1_140 = arith.constant 1 : index
    %c0_141 = arith.constant 0 : index
    %c0_142 = arith.constant 0 : index
    %c0_143 = arith.constant 0 : index
    %82 = vector.load %arg6[%c1_140, %c0_141, %c0_142, %c0_143] : memref<3x3x4x4xf32, #tpu.memory_space<vmem>>, vector<1x1x4x4xf32>
    %83 = vector.shape_cast %82 : vector<1x1x4x4xf32> to vector<4x4xf32>
    %cst_144 = arith.constant dense<0.000000e+00> : vector<72x4xf32>
    %84 = tpu.matmul %81, %83, %cst_144 {dimension_numbers = #tpu.dot_dimension_numbers<[1], [0], [0], [1], [0, 0, 1, 1], [], []>} : vector<72x4xf32>, vector<4x4xf32>, vector<72x4xf32> -> vector<72x4xf32>
    %85 = arith.addf %79, %84 : vector<72x4xf32>
    %c0_145 = arith.constant 0 : index
    %c0_146 = arith.constant 0 : index
    %c1_147 = arith.constant 1 : index
    %c1_148 = arith.constant 1 : index
    %c0_149 = arith.constant 0 : index
    %c0_150 = arith.constant 0 : index
    %86 = vector.load %arg5[%c0_145, %c0_146, %c1_147, %c1_148, %c0_149, %c0_150] : memref<1x1x2x2x88x4xf32, #tpu.memory_space<vmem>>, vector<1x1x1x1x72x4xf32>
    %87 = vector.shape_cast %86 : vector<1x1x1x1x72x4xf32> to vector<72x4xf32>
    %c1_151 = arith.constant 1 : index
    %c1_152 = arith.constant 1 : index
    %c0_153 = arith.constant 0 : index
    %c0_154 = arith.constant 0 : index
    %88 = vector.load %arg6[%c1_151, %c1_152, %c0_153, %c0_154] : memref<3x3x4x4xf32, #tpu.memory_space<vmem>>, vector<1x1x4x4xf32>
    %89 = vector.shape_cast %88 : vector<1x1x4x4xf32> to vector<4x4xf32>
    %cst_155 = arith.constant dense<0.000000e+00> : vector<72x4xf32>
    %90 = tpu.matmul %87, %89, %cst_155 {dimension_numbers = #tpu.dot_dimension_numbers<[1], [0], [0], [1], [0, 0, 1, 1], [], []>} : vector<72x4xf32>, vector<4x4xf32>, vector<72x4xf32> -> vector<72x4xf32>
    %91 = arith.addf %85, %90 : vector<72x4xf32>
    %c0_156 = arith.constant 0 : index
    %c0_157 = arith.constant 0 : index
    %c1_158 = arith.constant 1 : index
    %c0_159 = arith.constant 0 : index
    %c1_160 = arith.constant 1 : index
    %c0_161 = arith.constant 0 : index
    %92 = vector.load %arg5[%c0_156, %c0_157, %c1_158, %c0_159, %c1_160, %c0_161] : memref<1x1x2x2x88x4xf32, #tpu.memory_space<vmem>>, vector<1x1x1x1x72x4xf32>
    %93 = vector.shape_cast %92 : vector<1x1x1x1x72x4xf32> to vector<72x4xf32>
    %c1_162 = arith.constant 1 : index
    %c2_163 = arith.constant 2 : index
    %c0_164 = arith.constant 0 : index
    %c0_165 = arith.constant 0 : index
    %94 = vector.load %arg6[%c1_162, %c2_163, %c0_164, %c0_165] : memref<3x3x4x4xf32, #tpu.memory_space<vmem>>, vector<1x1x4x4xf32>
    %95 = vector.shape_cast %94 : vector<1x1x4x4xf32> to vector<4x4xf32>
    %cst_166 = arith.constant dense<0.000000e+00> : vector<72x4xf32>
    %96 = tpu.matmul %93, %95, %cst_166 {dimension_numbers = #tpu.dot_dimension_numbers<[1], [0], [0], [1], [0, 0, 1, 1], [], []>} : vector<72x4xf32>, vector<4x4xf32>, vector<72x4xf32> -> vector<72x4xf32>
    %97 = arith.addf %91, %96 : vector<72x4xf32>
    %c0_167 = arith.constant 0 : index
    %c0_168 = arith.constant 0 : index
    %c0_169 = arith.constant 0 : index
    %c0_170 = arith.constant 0 : index
    %c9_171 = arith.constant 9 : index
    %c0_172 = arith.constant 0 : index
    %98 = vector.load %arg5[%c0_167, %c0_168, %c0_169, %c0_170, %c9_171, %c0_172] : memref<1x1x2x2x88x4xf32, #tpu.memory_space<vmem>>, vector<1x1x1x1x72x4xf32>
    %99 = vector.shape_cast %98 : vector<1x1x1x1x72x4xf32> to vector<72x4xf32>
    %c2_173 = arith.constant 2 : index
    %c0_174 = arith.constant 0 : index
    %c0_175 = arith.constant 0 : index
    %c0_176 = arith.constant 0 : index
    %100 = vector.load %arg6[%c2_173, %c0_174, %c0_175, %c0_176] : memref<3x3x4x4xf32, #tpu.memory_space<vmem>>, vector<1x1x4x4xf32>
    %101 = vector.shape_cast %100 : vector<1x1x4x4xf32> to vector<4x4xf32>
    %cst_177 = arith.constant dense<0.000000e+00> : vector<72x4xf32>
    %102 = tpu.matmul %99, %101, %cst_177 {dimension_numbers = #tpu.dot_dimension_numbers<[1], [0], [0], [1], [0, 0, 1, 1], [], []>} : vector<72x4xf32>, vector<4x4xf32>, vector<72x4xf32> -> vector<72x4xf32>
    %103 = arith.addf %97, %102 : vector<72x4xf32>
    %c0_178 = arith.constant 0 : index
    %c0_179 = arith.constant 0 : index
    %c0_180 = arith.constant 0 : index
    %c1_181 = arith.constant 1 : index
    %c9_182 = arith.constant 9 : index
    %c0_183 = arith.constant 0 : index
    %104 = vector.load %arg5[%c0_178, %c0_179, %c0_180, %c1_181, %c9_182, %c0_183] : memref<1x1x2x2x88x4xf32, #tpu.memory_space<vmem>>, vector<1x1x1x1x72x4xf32>
    %105 = vector.shape_cast %104 : vector<1x1x1x1x72x4xf32> to vector<72x4xf32>
    %c2_184 = arith.constant 2 : index
    %c1_185 = arith.constant 1 : index
    %c0_186 = arith.constant 0 : index
    %c0_187 = arith.constant 0 : index
    %106 = vector.load %arg6[%c2_184, %c1_185, %c0_186, %c0_187] : memref<3x3x4x4xf32, #tpu.memory_space<vmem>>, vector<1x1x4x4xf32>
    %107 = vector.shape_cast %106 : vector<1x1x4x4xf32> to vector<4x4xf32>
    %cst_188 = arith.constant dense<0.000000e+00> : vector<72x4xf32>
    %108 = tpu.matmul %105, %107, %cst_188 {dimension_numbers = #tpu.dot_dimension_numbers<[1], [0], [0], [1], [0, 0, 1, 1], [], []>} : vector<72x4xf32>, vector<4x4xf32>, vector<72x4xf32> -> vector<72x4xf32>
    %109 = arith.addf %103, %108 : vector<72x4xf32>
    %c0_189 = arith.constant 0 : index
    %c0_190 = arith.constant 0 : index
    %c0_191 = arith.constant 0 : index
    %c0_192 = arith.constant 0 : index
    %c10_193 = arith.constant 10 : index
    %c0_194 = arith.constant 0 : index
    %110 = vector.load %arg5[%c0_189, %c0_190, %c0_191, %c0_192, %c10_193, %c0_194] : memref<1x1x2x2x88x4xf32, #tpu.memory_space<vmem>>, vector<1x1x1x1x72x4xf32>
    %111 = vector.shape_cast %110 : vector<1x1x1x1x72x4xf32> to vector<72x4xf32>
    %c2_195 = arith.constant 2 : index
    %c2_196 = arith.constant 2 : index
    %c0_197 = arith.constant 0 : index
    %c0_198 = arith.constant 0 : index
    %112 = vector.load %arg6[%c2_195, %c2_196, %c0_197, %c0_198] : memref<3x3x4x4xf32, #tpu.memory_space<vmem>>, vector<1x1x4x4xf32>
    %113 = vector.shape_cast %112 : vector<1x1x4x4xf32> to vector<4x4xf32>
    %cst_199 = arith.constant dense<0.000000e+00> : vector<72x4xf32>
    %114 = tpu.matmul %111, %113, %cst_199 {dimension_numbers = #tpu.dot_dimension_numbers<[1], [0], [0], [1], [0, 0, 1, 1], [], []>} : vector<72x4xf32>, vector<4x4xf32>, vector<72x4xf32> -> vector<72x4xf32>
    %115 = arith.addf %109, %114 : vector<72x4xf32>
    %c0_200 = arith.constant 0 : index
    %c0_201 = arith.constant 0 : index
    %116 = vector.load %arg7[%c0_200, %c0_201] : memref<1x4xf32, #tpu.memory_space<vmem>>, vector<1x4xf32>
    %117 = vector.broadcast %116 : vector<1x4xf32> to vector<72x4xf32>
    %118 = arith.addf %115, %117 : vector<72x4xf32>
    %c0_202 = arith.constant 0 : index
    %c0_203 = arith.constant 0 : index
    %c0_204 = arith.constant 0 : index
    %c0_205 = arith.constant 0 : index
    %119 = vector.load %arg9[%c0_202, %c0_203, %c0_204, %c0_205] : memref<1x1x72x4xf32, #tpu.memory_space<vmem>>, vector<1x1x72x4xf32>
    %120 = vector.shape_cast %119 : vector<1x1x72x4xf32> to vector<72x4xf32>
    %121 = vector.shape_cast %118 : vector<72x4xf32> to vector<1x1x72x4xf32>
    tpu.vector_store %arg9[%c0_202, %c0_203, %c0_204, %c0_205], %121 {strides = array<i32>} : memref<1x1x72x4xf32, #tpu.memory_space<vmem>>, vector<1x1x72x4xf32>,
    return
  }
  func.func @transform_0(%arg0: i32, %arg1: i32) -> (i32, i32, i32, i32, i32, i32) {
    %c0_i32 = arith.constant 0 : i32
    %c0_i32_0 = arith.constant 0 : i32
    %c0_i32_1 = arith.constant 0 : i32
    %c0_i32_2 = arith.constant 0 : i32
    %c0_i32_3 = arith.constant 0 : i32
    return %arg0, %arg1, %c0_i32, %c0_i32_0, %c0_i32_1, %c0_i32_2 : i32, i32, i32, i32, i32, i32
  }
  func.func @transform_1(%arg0: i32, %arg1: i32) -> (i32, i32, i32, i32) {
    %c0_i32 = arith.constant 0 : i32
    %c0_i32_0 = arith.constant 0 : i32
    %c0_i32_1 = arith.constant 0 : i32
    %c0_i32_2 = arith.constant 0 : i32
    %c0_i32_3 = arith.constant 0 : i32
    return %c0_i32, %c0_i32_0, %c0_i32_1, %c0_i32_2 : i32, i32, i32, i32
  }
  func.func @transform_2(%arg0: i32, %arg1: i32) -> (i32, i32) {
    %c0_i32 = arith.constant 0 : i32
    %c0_i32_0 = arith.constant 0 : i32
    %c0_i32_1 = arith.constant 0 : i32
    return %c0_i32, %c0_i32_0 : i32, i32
  }
  func.func @transform_3(%arg0: i32, %arg1: i32) -> (i32, i32, i32, i32, i32, i32) {
    %c0_i32 = arith.constant 0 : i32
    %c0_i32_0 = arith.constant 0 : i32
    %c0_i32_1 = arith.constant 0 : i32
    %c0_i32_2 = arith.constant 0 : i32
    %c0_i32_3 = arith.constant 0 : i32
    return %arg0, %arg1, %c0_i32, %c0_i32_0, %c0_i32_1, %c0_i32_2 : i32, i32, i32, i32, i32, i32
  }
  func.func @transform_4(%arg0: i32, %arg1: i32) -> (i32, i32, i32, i32) {
    %c0_i32 = arith.constant 0 : i32
    %c0_i32_0 = arith.constant 0 : i32
    %c0_i32_1 = arith.constant 0 : i32
    %c0_i32_2 = arith.constant 0 : i32
    %c0_i32_3 = arith.constant 0 : i32
    return %c0_i32, %c0_i32_0, %c0_i32_1, %c0_i32_2 : i32, i32, i32, i32
  }
  func.func @transform_5(%arg0: i32, %arg1: i32) -> (i32, i32) {
    %c0_i32 = arith.constant 0 : i32
    %c0_i32_0 = arith.constant 0 : i32
    %c0_i32_1 = arith.constant 0 : i32
    return %c0_i32, %c0_i32_0 : i32, i32
  }
  func.func @transform_6(%arg0: i32, %arg1: i32) -> (i32, i32, i32, i32) {
    %c0_i32 = arith.constant 0 : i32
    %c0_i32_0 = arith.constant 0 : i32
    %c0_i32_1 = arith.constant 0 : i32
    return %arg0, %arg1, %c0_i32, %c0_i32_0 : i32, i32, i32, i32
  }
  func.func @transform_7(%arg0: i32, %arg1: i32) -> (i32, i32, i32, i32) {
    %c0_i32 = arith.constant 0 : i32
    %c0_i32_0 = arith.constant 0 : i32
    %c0_i32_1 = arith.constant 0 : i32
    return %arg0, %arg1, %c0_i32, %c0_i32_0 : i32, i32, i32, i32
  }
}

</mosaic_0001>

<llo_original>
// kernel: downsample2d_forward.1
$region0: #{downsample2d_forward.1}
  #allocation0 [shape = 'u32[]', space=smem, size = 0x4, offset = 0x4, fixed_abs, tag = 'smem constant byte address 0x4 - core index']
  #allocation1 [shape = 'u32[144,128]{1,0:T(1,128)}', space=vmem, size = 0x12000, scoped, tag = 'internal scratch']
  %s0 = inlined_call_operand.vmem [shape: f32[2,1,2,2,88,4], index: 0, kind: input, shape index: {}]
  %s1 = inlined_call_operand.vmem [shape: f32[3,3,4,4], index: 1, kind: input, shape index: {}]
  %s2 = inlined_call_operand.vmem [shape: f32[1,4], index: 2, kind: input, shape index: {}]
  %s3 = inlined_call_operand.vmem [shape: f32[2,1,2,2,88,4], index: 3, kind: input, shape index: {}]
  %s4 = inlined_call_operand.vmem [shape: f32[3,3,4,4], index: 4, kind: input, shape index: {}]
  %s5 = inlined_call_operand.vmem [shape: f32[1,4], index: 5, kind: input, shape index: {}]
  %s6 = inlined_call_operand.vmem [shape: f32[2,1,72,4], index: 6, kind: output, shape index: {0}]
  %s7 = inlined_call_operand.vmem [shape: f32[2,1,72,4], index: 7, kind: output, shape index: {1}]
  %8 = xla_tuple %s6, %s7
  %s9 = sld [smem:[#allocation0]]
  $region65: #{downsample2d_forward.1} parent=0
    _
  %s11 = ssub.s32 1, %s9
  %s12 = scalar_select 0, %s11, %s9
  loop: start=0, step=1, limit=4
  $region2: #{downsample2d_forward.1} parent=0 // loop_pre_header
    _
  $region3: #{downsample2d_forward.1} parent=0 // loop_header
    %s14 = sphi 0, %s18
    %p15 = scmp.ge.s32.totalorder %s14, 4
    %s21 = sphi 0, %s33
    %s22 = sphi 0, %s29
    %s23 = sphi 0, %s21
    %s24 = sphi 0, %s22
    %s25 = sphi 0, %s23
    %s26 = sphi 0, %s24
    %s38 = sphi 0, %s40
    %s41 = sphi 0, %s38
    %s42 = sphi 0, %s41
    %s58 = sphi 0, %s42
    %s62 = sphi 0, %s62
    %s64 = sphi 0, %s62
    %s65 = sphi 0, %s64
    %s79 = sphi 0, %s65
    %s83 = sphi 0, %s83
    %s85 = sphi 0, %s83
    %s86 = sphi 0, %s85
    %s100 = sphi 0, %s86
    %s108 = sphi 0, %s110
    %s111 = sphi 0, %s108
    %s112 = sphi 0, %s111
    %s128 = sphi 0, %s112
    %s132 = sphi 0, %s132
    %s134 = sphi 0, %s132
    %s135 = sphi 0, %s134
    %s149 = sphi 0, %s135
    %s153 = sphi 0, %s153
    %s155 = sphi 0, %s153
    %s156 = sphi 0, %s155
    %s170 = sphi 0, %s156
    %s178 = sphi 0, %s180
    %s181 = sphi 0, %s178
    %s182 = sphi 0, %s181
    %s198 = sphi 0, %s182
    %s206 = sphi 0, %s208
    %s209 = sphi 0, %s206
    %s210 = sphi 0, %s209
    %s226 = sphi 0, %s210
  $region4: #{downsample2d_forward.1} parent=0 // loop_header_branch
    %17 = sbr.rel (%p15) target = $region8
  $region5: #{downsample2d_forward.1} parent=0 // loop_body
    %s19 = ssub.s32 %s14, 1
    %s20 = ssub.s32 %s14, 2
    %s27 = sadd.s32 1, %s22
    %p28 = scmp.ge.s32.totalorder %s27, 1
    %s29 = scalar_select %p28, 0, %s27
    %s30 = sadd.s32 1, %s21
    %s31 = scalar_select %p28, %s30, %s21
    %p32 = scmp.ge.s32.totalorder %s31, 2
    %s33 = scalar_select %p32, 0, %s31
    %s34 = ssub.s32 %s21, %s33
    %s35 = ssub.s32 %s22, %s29
    %s36 = sor.u32 %s34, %s35
    %p37 = scmp.eq.s32.totalorder %s36, 0
    %s39 = sadd.s32 %s38, 1
    %s40 = scalar_select %p37, %s38, %s39
    %p43 = pneg %p37
    %p44 = scmp.eq.s32.totalorder %s14, 1
    %p45 = por %p43, %p44
    %p46 = scmp.ne.s32.totalorder %s38, %s41
    %p47 = scmp.eq.s32.totalorder %s14, 0
    %p48 = por %p46, %p47
    %p49 = scmp.ne.s32.totalorder %s38, %s41
    %p50 = scmp.eq.s32.totalorder %s19, 1
    %p51 = por %p49, %p50
    %p52 = scmp.ne.s32.totalorder %s41, %s42
    %p53 = scmp.eq.s32.totalorder %s19, 0
    %p54 = por %p52, %p53
    %p55 = scmp.ne.s32.totalorder %s41, %s42
    %p56 = scmp.eq.s32.totalorder %s20, 1
    %p57 = por %p55, %p56
    %p59 = scmp.ne.s32.totalorder %s42, %s58
    %p60 = scmp.eq.s32.totalorder %s20, 0
    %p61 = por %p59, %p60
    %s63 = sadd.s32 %s62, 1
    %p66 = scmp.eq.s32.totalorder %s14, 1
    %p67 = scmp.ne.s32.totalorder %s62, %s64
    %p68 = scmp.eq.s32.totalorder %s14, 0
    %p69 = por %p67, %p68
    %p70 = scmp.ne.s32.totalorder %s62, %s64
    %p71 = scmp.eq.s32.totalorder %s19, 1
    %p72 = por %p70, %p71
    %p73 = scmp.ne.s32.totalorder %s64, %s65
    %p74 = scmp.eq.s32.totalorder %s19, 0
    %p75 = por %p73, %p74
    %p76 = scmp.ne.s32.totalorder %s64, %s65
    %p77 = scmp.eq.s32.totalorder %s20, 1
    %p78 = por %p76, %p77
    %p80 = scmp.ne.s32.totalorder %s65, %s79
    %p81 = scmp.eq.s32.totalorder %s20, 0
    %p82 = por %p80, %p81
    %s84 = sadd.s32 %s83, 1
    %p87 = scmp.eq.s32.totalorder %s14, 1
    %p88 = scmp.ne.s32.totalorder %s83, %s85
    %p89 = scmp.eq.s32.totalorder %s14, 0
    %p90 = por %p88, %p89
    %p91 = scmp.ne.s32.totalorder %s83, %s85
    %p92 = scmp.eq.s32.totalorder %s19, 1
    %p93 = por %p91, %p92
    %p94 = scmp.ne.s32.totalorder %s85, %s86
    %p95 = scmp.eq.s32.totalorder %s19, 0
    %p96 = por %p94, %p95
    %p97 = scmp.ne.s32.totalorder %s85, %s86
    %p98 = scmp.eq.s32.totalorder %s20, 1
    %p99 = por %p97, %p98
    %p101 = scmp.ne.s32.totalorder %s86, %s100
    %p102 = scmp.eq.s32.totalorder %s20, 0
    %p103 = por %p101, %p102
    %s104 = ssub.s32 %s21, %s33
    %s105 = ssub.s32 %s22, %s29
    %s106 = sor.u32 %s104, %s105
    %p107 = scmp.eq.s32.totalorder %s106, 0
    %s109 = sadd.s32 %s108, 1
    %s110 = scalar_select %p107, %s108, %s109
    %p113 = pneg %p107
    %p114 = scmp.eq.s32.totalorder %s14, 1
    %p115 = por %p113, %p114
    %p116 = scmp.ne.s32.totalorder %s108, %s111
    %p117 = scmp.eq.s32.totalorder %s14, 0
    %p118 = por %p116, %p117
    %p119 = scmp.ne.s32.totalorder %s108, %s111
    %p120 = scmp.eq.s32.totalorder %s19, 1
    %p121 = por %p119, %p120
    %p122 = scmp.ne.s32.totalorder %s111, %s112
    %p123 = scmp.eq.s32.totalorder %s19, 0
    %p124 = por %p122, %p123
    %p125 = scmp.ne.s32.totalorder %s111, %s112
    %p126 = scmp.eq.s32.totalorder %s20, 1
    %p127 = por %p125, %p126
    %p129 = scmp.ne.s32.totalorder %s112, %s128
    %p130 = scmp.eq.s32.totalorder %s20, 0
    %p131 = por %p129, %p130
    %s133 = sadd.s32 %s132, 1
    %p136 = scmp.eq.s32.totalorder %s14, 1
    %p137 = scmp.ne.s32.totalorder %s132, %s134
    %p138 = scmp.eq.s32.totalorder %s14, 0
    %p139 = por %p137, %p138
    %p140 = scmp.ne.s32.totalorder %s132, %s134
    %p141 = scmp.eq.s32.totalorder %s19, 1
    %p142 = por %p140, %p141
    %p143 = scmp.ne.s32.totalorder %s134, %s135
    %p144 = scmp.eq.s32.totalorder %s19, 0
    %p145 = por %p143, %p144
    %p146 = scmp.ne.s32.totalorder %s134, %s135
    %p147 = scmp.eq.s32.totalorder %s20, 1
    %p148 = por %p146, %p147
    %p150 = scmp.ne.s32.totalorder %s135, %s149
    %p151 = scmp.eq.s32.totalorder %s20, 0
    %p152 = por %p150, %p151
    %s154 = sadd.s32 %s153, 1
    %p157 = scmp.eq.s32.totalorder %s14, 1
    %p158 = scmp.ne.s32.totalorder %s153, %s155
    %p159 = scmp.eq.s32.totalorder %s14, 0
    %p160 = por %p158, %p159
    %p161 = scmp.ne.s32.totalorder %s153, %s155
    %p162 = scmp.eq.s32.totalorder %s19, 1
    %p163 = por %p161, %p162
    %p164 = scmp.ne.s32.totalorder %s155, %s156
    %p165 = scmp.eq.s32.totalorder %s19, 0
    %p166 = por %p164, %p165
    %p167 = scmp.ne.s32.totalorder %s155, %s156
    %p168 = scmp.eq.s32.totalorder %s20, 1
    %p169 = por %p167, %p168
    %p171 = scmp.ne.s32.totalorder %s156, %s170
    %p172 = scmp.eq.s32.totalorder %s20, 0
    %p173 = por %p171, %p172
    %s174 = ssub.s32 %s21, %s33
    %s175 = ssub.s32 %s22, %s29
    %s176 = sor.u32 %s174, %s175
    %p177 = scmp.eq.s32.totalorder %s176, 0
    %s179 = sadd.s32 %s178, 1
    %s180 = scalar_select %p177, %s178, %s179
    %p183 = pneg %p177
    %p184 = scmp.eq.s32.totalorder %s14, 1
    %p185 = por %p183, %p184
    %p186 = scmp.ne.s32.totalorder %s178, %s181
    %p187 = scmp.eq.s32.totalorder %s14, 0
    %p188 = por %p186, %p187
    %p189 = scmp.ne.s32.totalorder %s178, %s181
    %p190 = scmp.eq.s32.totalorder %s19, 1
    %p191 = por %p189, %p190
    %p192 = scmp.ne.s32.totalorder %s181, %s182
    %p193 = scmp.eq.s32.totalorder %s19, 0
    %p194 = por %p192, %p193
    %p195 = scmp.ne.s32.totalorder %s181, %s182
    %p196 = scmp.eq.s32.totalorder %s20, 1
    %p197 = por %p195, %p196
    %p199 = scmp.ne.s32.totalorder %s182, %s198
    %p200 = scmp.eq.s32.totalorder %s20, 0
    %p201 = por %p199, %p200
    %s202 = ssub.s32 %s21, %s33
    %s203 = ssub.s32 %s22, %s29
    %s204 = sor.u32 %s202, %s203
    %p205 = scmp.eq.s32.totalorder %s204, 0
    %s207 = sadd.s32 %s206, 1
    %s208 = scalar_select %p205, %s206, %s207
    %p211 = pneg %p205
    %p212 = scmp.eq.s32.totalorder %s14, 1
    %p213 = por %p211, %p212
    %p214 = scmp.ne.s32.totalorder %s206, %s209
    %p215 = scmp.eq.s32.totalorder %s14, 0
    %p216 = por %p214, %p215
    %p217 = scmp.ne.s32.totalorder %s206, %s209
    %p218 = scmp.eq.s32.totalorder %s19, 1
    %p219 = por %p217, %p218
    %p220 = scmp.ne.s32.totalorder %s209, %s210
    %p221 = scmp.eq.s32.totalorder %s19, 0
    %p222 = por %p220, %p221
    %p223 = scmp.ne.s32.totalorder %s209, %s210
    %p224 = scmp.eq.s32.totalorder %s20, 1
    %p225 = por %p223, %p224
    %p227 = scmp.ne.s32.totalorder %s210, %s226
    %p228 = scmp.eq.s32.totalorder %s20, 0
    %p229 = por %p227, %p228
    %p230 = scmp.le.s32.totalorder 1, %s14
    %p231 = scmp.lt.s32.totalorder %s14, 3
    %p232 = pnand %p230, %p231
    %p233 = pneg %p232
    // Predicated region
    $region9: #{downsample2d_forward.1} parent=5 // pred_check
      _
    $region10: #{downsample2d_forward.1} parent=5 // pred_check_branch
      %235 = sbr.rel (%p232) target = $region12
    $region11: #{downsample2d_forward.1} parent=5 // pred_region
      %s236 = ssub.s32 %s14, 1
      // Predicated region
      $region13: #{downsample2d_forward.1} parent=11 // pred_check
        %p237 = pneg %p75
      $region14: #{downsample2d_forward.1} parent=11 // pred_check_branch
        %239 = sbr.rel (%p237) target = $region16
      $region15: #{downsample2d_forward.1} parent=11 // pred_region
        _
      $region16: #{downsample2d_forward.1} parent=11 // pred_fallthru
        _
      // Predicated region
      $region17: #{downsample2d_forward.1} parent=11 // pred_check
        %p240 = pneg %p96
      $region18: #{downsample2d_forward.1} parent=11 // pred_check_branch
        %242 = sbr.rel (%p240) target = $region20
      $region19: #{downsample2d_forward.1} parent=11 // pred_region
        _
      $region20: #{downsample2d_forward.1} parent=11 // pred_fallthru
        _
      // Predicated region
      $region21: #{downsample2d_forward.1} parent=11 // pred_check
        %p243 = pneg %p145
      $region22: #{downsample2d_forward.1} parent=11 // pred_check_branch
        %245 = sbr.rel (%p243) target = $region24
      $region23: #{downsample2d_forward.1} parent=11 // pred_region
        _
      $region24: #{downsample2d_forward.1} parent=11 // pred_fallthru
        _
      // Predicated region
      $region25: #{downsample2d_forward.1} parent=11 // pred_check
        %p246 = pneg %p166
      $region26: #{downsample2d_forward.1} parent=11 // pred_check_branch
        %248 = sbr.rel (%p246) target = $region28
      $region27: #{downsample2d_forward.1} parent=11 // pred_region
        _
      $region28: #{downsample2d_forward.1} parent=11 // pred_fallthru
        _
    $region12: #{downsample2d_forward.1} parent=5 // pred_fallthru
      _
    %p249 = scmp.lt.s32.totalorder %s14, 2
    // Predicated region
    $region29: #{downsample2d_forward.1} parent=5 // pred_check
      %p250 = pneg %p249
    $region30: #{downsample2d_forward.1} parent=5 // pred_check_branch
      %252 = sbr.rel (%p250) target = $region32
    $region31: #{downsample2d_forward.1} parent=5 // pred_region
      // Predicated region
      $region33: #{downsample2d_forward.1} parent=31 // pred_check
        %p253 = pneg %p48
      $region34: #{downsample2d_forward.1} parent=31 // pred_check_branch
        %255 = sbr.rel (%p253) target = $region36
      $region35: #{downsample2d_forward.1} parent=31 // pred_region
        %p256 = scmp.lt.s32.totalorder %s21, 1
        %s257 = scalar_select %p256, %s21, 1
        %p258 = scmp.lt.s32.totalorder %s22, 0
        %s259 = scalar_select %p258, %s22, 0
        %s260 = smul.addr %s259, 44
        %s261 = smul.addr %s257, 44
        %s262 = sadd.s32 %s260, %s261
        %s263 = smul.addr %s262, 8
        %s264 = scalar_lea.vmem %s0, %s263
      $region36: #{downsample2d_forward.1} parent=31 // pred_fallthru
        _
      // Predicated region
      $region37: #{downsample2d_forward.1} parent=31 // pred_check
        %p265 = pneg %p118
      $region38: #{downsample2d_forward.1} parent=31 // pred_check_branch
        %267 = sbr.rel (%p265) target = $region40
      $region39: #{downsample2d_forward.1} parent=31 // pred_region
        %p268 = scmp.lt.s32.totalorder %s21, 1
        %s269 = scalar_select %p268, %s21, 1
        %p270 = scmp.lt.s32.totalorder %s22, 0
        %s271 = scalar_select %p270, %s22, 0
        %s272 = smul.addr %s271, 44
        %s273 = smul.addr %s269, 44
        %s274 = sadd.s32 %s272, %s273
        %s275 = smul.addr %s274, 8
        %s276 = scalar_lea.vmem %s3, %s275
      $region40: #{downsample2d_forward.1} parent=31 // pred_fallthru
        _
    $region32: #{downsample2d_forward.1} parent=5 // pred_fallthru
      _
    %p277 = scmp.le.s32.totalorder 1, %s14
    %p278 = scmp.lt.s32.totalorder %s14, 3
    %p279 = pnand %p277, %p278
    %p280 = pneg %p279
    // Predicated region
    $region41: #{downsample2d_forward.1} parent=5 // pred_check
      _
    $region42: #{downsample2d_forward.1} parent=5 // pred_check_branch
      %282 = sbr.rel (%p279) target = $region44
    $region43: #{downsample2d_forward.1} parent=5 // pred_region
      %s283 = ssub.s32 %s14, 1
      %p284 = scmp.lt.s32.totalorder %s23, 1
      %s285 = scalar_select %p284, %s23, 1
      %p286 = scmp.lt.s32.totalorder %s24, 0
      %s287 = scalar_select %p286, %s24, 0
      %s288 = smul.addr %s287, 44
      %s289 = smul.addr %s285, 44
      %s290 = sadd.s32 %s288, %s289
      %s291 = smul.addr %s290, 8
      %s292 = scalar_lea.vmem %s0, %s291
      %p293 = pneg %p54
      %p294 = pneg %p51
      %p295 = pneg %p75
      %p296 = pneg %p72
      %p297 = pneg %p96
      %p298 = pneg %p93
      %p299 = scmp.lt.s32.totalorder %s23, 1
      %s300 = scalar_select %p299, %s23, 1
      %p301 = scmp.lt.s32.totalorder %s24, 0
      %s302 = scalar_select %p301, %s24, 0
      %s303 = smul.addr %s302, 44
      %s304 = smul.addr %s300, 44
      %s305 = sadd.s32 %s303, %s304
      %s306 = smul.addr %s305, 8
      %s307 = scalar_lea.vmem %s3, %s306
      %p308 = pneg %p124
      %p309 = pneg %p121
      %p310 = pneg %p145
      %p311 = pneg %p142
      %p312 = pneg %p166
      %p313 = pneg %p163
      %p314 = pneg %p194
      %p315 = pneg %p191
      %p316 = scmp.lt.s32.totalorder %s23, 1
      %s317 = scalar_select %p316, %s23, 1
      %p318 = scmp.lt.s32.totalorder %s24, 0
      %s319 = scalar_select %p318, %s24, 0
      %s320 = smul.addr %s319, 9
      %s321 = smul.addr %s317, 9
      %s322 = sadd.s32 %s320, %s321
      %s323 = smul.addr %s322, 8
      %s324 = scalar_lea.vmem %s6, %s323
      %p325 = pneg %p222
      %p326 = pneg %p219
      %p327 = scmp.lt.s32.totalorder %s23, 1
      %s328 = scalar_select %p327, %s23, 1
      %p329 = scmp.lt.s32.totalorder %s24, 0
      %s330 = scalar_select %p329, %s24, 0
      %s331 = smul.addr %s330, 9
      %s332 = smul.addr %s328, 9
      %s333 = sadd.s32 %s331, %s332
      %s334 = smul.addr %s333, 8
      %s335 = scalar_lea.vmem %s7, %s334
      %p336 = scmp.lt.s32.totalorder %s23, 1
      %s337 = scalar_select %p336, %s23, 1
      %p338 = scmp.lt.s32.totalorder %s24, 0
      %s339 = scalar_select %p338, %s24, 0
      %s340 = smul.addr %s339, 44
      %s341 = smul.addr %s337, 44
      %s342 = sadd.s32 %s340, %s341
      %s343 = smul.addr %s342, 8
      %s344 = scalar_lea.vmem %s0, %s343
      %p345 = scmp.lt.s32.totalorder %s23, 1
      %s346 = scalar_select %p345, %s23, 1
      %p347 = scmp.lt.s32.totalorder %s24, 0
      %s348 = scalar_select %p347, %s24, 0
      %s349 = smul.addr %s348, 44
      %s350 = smul.addr %s346, 44
      %s351 = sadd.s32 %s349, %s350
      %s352 = smul.addr %s351, 8
      %s353 = scalar_lea.vmem %s3, %s352
      %p354 = scmp.lt.s32.totalorder %s23, 1
      %s355 = scalar_select %p354, %s23, 1
      %p356 = scmp.lt.s32.totalorder %s24, 0
      %s357 = scalar_select %p356, %s24, 0
      %s358 = smul.addr %s357, 9
      %s359 = smul.addr %s355, 9
      %s360 = sadd.s32 %s358, %s359
      %s361 = smul.addr %s360, 8
      %s362 = scalar_lea.vmem %s6, %s361
      %p363 = scmp.lt.s32.totalorder %s23, 1
      %s364 = scalar_select %p363, %s23, 1
      %p365 = scmp.lt.s32.totalorder %s24, 0
      %s366 = scalar_select %p365, %s24, 0
      %s367 = smul.addr %s366, 9
      %s368 = smul.addr %s364, 9
      %s369 = sadd.s32 %s367, %s368
      %s370 = smul.addr %s369, 8
      %s371 = scalar_lea.vmem %s7, %s370
      %v372 = vld [vmem:[%s344] sm:$0xff]
      %v373 = vld [vmem:[%s344 + $0x8] sm:$0xff]
      %v374 = vld [vmem:[%s344 + $0x10] sm:$0xff]
      %v375 = vld [vmem:[%s344 + $0x18] sm:$0xff]
      %v376 = vld [vmem:[%s344 + $0x20] sm:$0xff]
      %v377 = vld [vmem:[%s344 + $0x28] sm:$0xff]
      %v378 = vld [vmem:[%s344 + $0x30] sm:$0xff]
      %v379 = vld [vmem:[%s344 + $0x38] sm:$0xff]
      %v380 = vld [vmem:[%s344 + $0x40] sm:$0xff]
      %v381 = vld [vmem:[%s1] sm:$0xf]
      %s382 = scalar_lea.vmem %s344, 88
      %v383 = vld [vmem:[%s382] sm:$0xff]
      %v384 = vld [vmem:[%s382 + $0x8] sm:$0xff]
      %v385 = vld [vmem:[%s382 + $0x10] sm:$0xff]
      %v386 = vld [vmem:[%s382 + $0x18] sm:$0xff]
      %v387 = vld [vmem:[%s382 + $0x20] sm:$0xff]
      %v388 = vld [vmem:[%s382 + $0x28] sm:$0xff]
      %v389 = vld [vmem:[%s382 + $0x30] sm:$0xff]
      %v390 = vld [vmem:[%s382 + $0x38] sm:$0xff]
      %v391 = vld [vmem:[%s382 + $0x40] sm:$0xff]
      %s392 = scalar_lea.vmem %s1, 4
      %v393 = vld [vmem:[%s392] sm:$0xf]
      %vm394 = vcmask 31744
      %v396 = vsel %vm394, %v383, 0
      %v399 = vsel %vm394, %v384, 0
      %v402 = vsel %vm394, %v385, 0
      %v405 = vsel %vm394, %v386, 0
      %v408 = vsel %vm394, %v387, 0
      %v411 = vsel %vm394, %v388, 0
      %v414 = vsel %vm394, %v389, 0
      %v417 = vsel %vm394, %v390, 0
      %v420 = vsel %vm394, %v391, 0
      %vm422 = vcmask 1043456
      %v424 = vsel %vm422, %v393, 0
      %426 = vmatprep.subr.mxu0 0.0
      %427 = vmatpush1.msra.mxu0 0.0
      %428 = vmatprep.subr.mxu0 0.0
      %429 = vmatpush1.msra.mxu0 0.0
      %430 = vmatprep.subr.mxu0 0.0
      %431 = vmatpush1.msra.mxu0 0.0
      %432 = vmatprep.subr.mxu0 0.0
      %433 = vmatpush1.msra.mxu0 0.0
      %434 = vmatprep.subr.mxu0 0.0
      %435 = vmatpush1.msra.mxu0 0.0
      %436 = vmatprep.subr.mxu0 0.0
      %437 = vmatpush1.msra.mxu0 0.0
      %438 = vmatprep.subr.mxu0 0.0
      %439 = vmatpush1.msra.mxu0 0.0
      %440 = vmatprep.subr.mxu0 0.0
      %441 = vmatpush1.msra.mxu0 0.0
      %442 = vmatprep.subr.mxu0 0.0
      %443 = vmatpush1.msra.mxu0 0.0
      %444 = vmatprep.subr.mxu0 0.0
      %445 = vmatpush1.msra.mxu0 0.0
      %446 = vmatprep.subr.mxu0 0.0
      %447 = vmatpush1.msra.mxu0 0.0
      %448 = vmatprep.subr.mxu0 0.0
      %449 = vmatpush1.msra.mxu0 0.0
      %450 = vmatprep.subr.mxu0 0.0
      %451 = vmatpush1.msra.mxu0 0.0
      %452 = vmatprep.subr.mxu0 0.0
      %453 = vmatpush1.msra.mxu0 0.0
      %454 = vmatprep.subr.mxu0 0.0
      %455 = vmatpush1.msra.mxu0 0.0
      %456 = vmatprep.subr.mxu0 0.0
      %457 = vmatpush1.msra.mxu0 %v424
      %458 = vmatprep.subr.mxu0 0.0
      %459 = vmatpush2.msra.mxu0 0.0
      %460 = vmatprep.subr.mxu0 0.0
      %461 = vmatpush2.msra.mxu0 0.0
      %462 = vmatprep.subr.mxu0 0.0
      %463 = vmatpush2.msra.mxu0 0.0
      %464 = vmatprep.subr.mxu0 0.0
      %465 = vmatpush2.msra.mxu0 0.0
      %466 = vmatprep.subr.mxu0 0.0
      %467 = vmatpush2.msra.mxu0 0.0
      %468 = vmatprep.subr.mxu0 0.0
      %469 = vmatpush2.msra.mxu0 0.0
      %470 = vmatprep.subr.mxu0 0.0
      %471 = vmatpush2.msra.mxu0 0.0
      %472 = vmatprep.subr.mxu0 0.0
      %473 = vmatpush2.msra.mxu0 0.0
      %474 = vmatprep.subr.mxu0 0.0
      %475 = vmatpush2.msra.mxu0 0.0
      %476 = vmatprep.subr.mxu0 0.0
      %477 = vmatpush2.msra.mxu0 0.0
      %478 = vmatprep.subr.mxu0 0.0
      %479 = vmatpush2.msra.mxu0 0.0
      %480 = vmatprep.subr.mxu0 0.0
      %481 = vmatpush2.msra.mxu0 0.0
      %482 = vmatprep.subr.mxu0 0.0
      %483 = vmatpush2.msra.mxu0 0.0
      %484 = vmatprep.subr.mxu0 0.0
      %485 = vmatpush2.msra.mxu0 0.0
      %486 = vmatprep.subr.mxu0 0.0
      %487 = vmatpush2.msra.mxu0 0.0
      %488 = vmatprep.subr.mxu0 0.0
      %489 = vmatpush2.msra.mxu0 0.0
      %490 = vmatprep.mubr.f32.mxu0 0.0
      %491 = vmatmul.mubr.f32.gmra.mxu0 %v396
      %v492 = vpop.f32.mrf.mxu0
      %v493 = vadd.f32 0.0, %v492
      %v494 = vpop.f32.mrf.mxu0
      %495 = vmatprep.mubr.f32.mxu0 0.0
      %496 = vmatmul.mubr.f32.gmra.mxu0 %v399
      %v497 = vpop.f32.mrf.mxu0
      %v498 = vadd.f32 0.0, %v497
      %v499 = vpop.f32.mrf.mxu0
      %500 = vmatprep.mubr.f32.mxu0 0.0
      %501 = vmatmul.mubr.f32.gmra.mxu0 %v402
      %v502 = vpop.f32.mrf.mxu0
      %v503 = vadd.f32 0.0, %v502
      %v504 = vpop.f32.mrf.mxu0
      %505 = vmatprep.mubr.f32.mxu0 0.0
      %506 = vmatmul.mubr.f32.gmra.mxu0 %v405
      %v507 = vpop.f32.mrf.mxu0
      %v508 = vadd.f32 0.0, %v507
      %v509 = vpop.f32.mrf.mxu0
      %510 = vmatprep.mubr.f32.mxu0 0.0
      %511 = vmatmul.mubr.f32.gmra.mxu0 %v408
      %v512 = vpop.f32.mrf.mxu0
      %v513 = vadd.f32 0.0, %v512
      %v514 = vpop.f32.mrf.mxu0
      %515 = vmatprep.mubr.f32.mxu0 0.0
      %516 = vmatmul.mubr.f32.gmra.mxu0 %v411
      %v517 = vpop.f32.mrf.mxu0
      %v518 = vadd.f32 0.0, %v517
      %v519 = vpop.f32.mrf.mxu0
      %520 = vmatprep.mubr.f32.mxu0 0.0
      %521 = vmatmul.mubr.f32.gmra.mxu0 %v414
      %v522 = vpop.f32.mrf.mxu0
      %v523 = vadd.f32 0.0, %v522
      %v524 = vpop.f32.mrf.mxu0
      %525 = vmatprep.mubr.f32.mxu0 0.0
      %526 = vmatmul.mubr.f32.gmra.mxu0 %v417
      %v527 = vpop.f32.mrf.mxu0
      %v528 = vadd.f32 0.0, %v527
      %v529 = vpop.f32.mrf.mxu0
      %530 = vmatprep.mubr.f32.mxu0 0.0
      %531 = vmatmul.mubr.f32.gmra.mxu0 %v420
      %v532 = vpop.f32.mrf.mxu0
      %v533 = vadd.f32 0.0, %v532
      %v534 = vpop.f32.mrf.mxu0
      %535 = vdwg.mxu0
      %v537 = vsel %vm394, %v372, 0
      %v540 = vsel %vm394, %v373, 0
      %v543 = vsel %vm394, %v374, 0
      %v546 = vsel %vm394, %v375, 0
      %v549 = vsel %vm394, %v376, 0
      %v552 = vsel %vm394, %v377, 0
      %v555 = vsel %vm394, %v378, 0
      %v558 = vsel %vm394, %v379, 0
      %v561 = vsel %vm394, %v380, 0
      %v564 = vsel %vm422, %v381, 0
      %566 = vmatprep.subr.mxu0 0.0
      %567 = vmatpush1.msra.mxu0 0.0
      %568 = vmatprep.subr.mxu0 0.0
      %569 = vmatpush1.msra.mxu0 0.0
      %570 = vmatprep.subr.mxu0 0.0
      %571 = vmatpush1.msra.mxu0 0.0
      %572 = vmatprep.subr.mxu0 0.0
      %573 = vmatpush1.msra.mxu0 0.0
      %574 = vmatprep.subr.mxu0 0.0
      %575 = vmatpush1.msra.mxu0 0.0
      %576 = vmatprep.subr.mxu0 0.0
      %577 = vmatpush1.msra.mxu0 0.0
      %578 = vmatprep.subr.mxu0 0.0
      %579 = vmatpush1.msra.mxu0 0.0
      %580 = vmatprep.subr.mxu0 0.0
      %581 = vmatpush1.msra.mxu0 0.0
      %582 = vmatprep.subr.mxu0 0.0
      %583 = vmatpush1.msra.mxu0 0.0
      %584 = vmatprep.subr.mxu0 0.0
      %585 = vmatpush1.msra.mxu0 0.0
      %586 = vmatprep.subr.mxu0 0.0
      %587 = vmatpush1.msra.mxu0 0.0
      %588 = vmatprep.subr.mxu0 0.0
      %589 = vmatpush1.msra.mxu0 0.0
      %590 = vmatprep.subr.mxu0 0.0
      %591 = vmatpush1.msra.mxu0 0.0
      %592 = vmatprep.subr.mxu0 0.0
      %593 = vmatpush1.msra.mxu0 0.0
      %594 = vmatprep.subr.mxu0 0.0
      %595 = vmatpush1.msra.mxu0 0.0
      %596 = vmatprep.subr.mxu0 0.0
      %597 = vmatpush1.msra.mxu0 %v564
      %598 = vmatprep.subr.mxu0 0.0
      %599 = vmatpush2.msra.mxu0 0.0
      %600 = vmatprep.subr.mxu0 0.0
      %601 = vmatpush2.msra.mxu0 0.0
      %602 = vmatprep.subr.mxu0 0.0
      %603 = vmatpush2.msra.mxu0 0.0
      %604 = vmatprep.subr.mxu0 0.0
      %605 = vmatpush2.msra.mxu0 0.0
      %606 = vmatprep.subr.mxu0 0.0
      %607 = vmatpush2.msra.mxu0 0.0
      %608 = vmatprep.subr.mxu0 0.0
      %609 = vmatpush2.msra.mxu0 0.0
      %610 = vmatprep.subr.mxu0 0.0
      %611 = vmatpush2.msra.mxu0 0.0
      %612 = vmatprep.subr.mxu0 0.0
      %613 = vmatpush2.msra.mxu0 0.0
      %614 = vmatprep.subr.mxu0 0.0
      %615 = vmatpush2.msra.mxu0 0.0
      %616 = vmatprep.subr.mxu0 0.0
      %617 = vmatpush2.msra.mxu0 0.0
      %618 = vmatprep.subr.mxu0 0.0
      %619 = vmatpush2.msra.mxu0 0.0
      %620 = vmatprep.subr.mxu0 0.0
      %621 = vmatpush2.msra.mxu0 0.0
      %622 = vmatprep.subr.mxu0 0.0
      %623 = vmatpush2.msra.mxu0 0.0
      %624 = vmatprep.subr.mxu0 0.0
      %625 = vmatpush2.msra.mxu0 0.0
      %626 = vmatprep.subr.mxu0 0.0
      %627 = vmatpush2.msra.mxu0 0.0
      %628 = vmatprep.subr.mxu0 0.0
      %629 = vmatpush2.msra.mxu0 0.0
      %630 = vmatprep.mubr.f32.mxu0 0.0
      %631 = vmatmul.mubr.f32.gmra.mxu0 %v537
      %v632 = vpop.f32.mrf.mxu0
      %v633 = vadd.f32 %v493, %v632
      %v634 = vpop.f32.mrf.mxu0
      %635 = vmatprep.mubr.f32.mxu0 0.0
      %636 = vmatmul.mubr.f32.gmra.mxu0 %v540
      %v637 = vpop.f32.mrf.mxu0
      %v638 = vadd.f32 %v498, %v637
      %v639 = vpop.f32.mrf.mxu0
      %640 = vmatprep.mubr.f32.mxu0 0.0
      %641 = vmatmul.mubr.f32.gmra.mxu0 %v543
      %v642 = vpop.f32.mrf.mxu0
      %v643 = vadd.f32 %v503, %v642
      %v644 = vpop.f32.mrf.mxu0
      %645 = vmatprep.mubr.f32.mxu0 0.0
      %646 = vmatmul.mubr.f32.gmra.mxu0 %v546
      %v647 = vpop.f32.mrf.mxu0
      %v648 = vadd.f32 %v508, %v647
      %v649 = vpop.f32.mrf.mxu0
      %650 = vmatprep.mubr.f32.mxu0 0.0
      %651 = vmatmul.mubr.f32.gmra.mxu0 %v549
      %v652 = vpop.f32.mrf.mxu0
      %v653 = vadd.f32 %v513, %v652
      %v654 = vpop.f32.mrf.mxu0
      %655 = vmatprep.mubr.f32.mxu0 0.0
      %656 = vmatmul.mubr.f32.gmra.mxu0 %v552
      %v657 = vpop.f32.mrf.mxu0
      %v658 = vadd.f32 %v518, %v657
      %v659 = vpop.f32.mrf.mxu0
      %660 = vmatprep.mubr.f32.mxu0 0.0
      %661 = vmatmul.mubr.f32.gmra.mxu0 %v555
      %v662 = vpop.f32.mrf.mxu0
      %v663 = vadd.f32 %v523, %v662
      %v664 = vpop.f32.mrf.mxu0
      %665 = vmatprep.mubr.f32.mxu0 0.0
      %666 = vmatmul.mubr.f32.gmra.mxu0 %v558
      %v667 = vpop.f32.mrf.mxu0
      %v668 = vadd.f32 %v528, %v667
      %v669 = vpop.f32.mrf.mxu0
      %670 = vmatprep.mubr.f32.mxu0 0.0
      %671 = vmatmul.mubr.f32.gmra.mxu0 %v561
      %v672 = vpop.f32.mrf.mxu0
      %v673 = vadd.f32 %v533, %v672
      %v674 = vpop.f32.mrf.mxu0
      %675 = vdwg.mxu0
      %v676 = vld [vmem:[%s344 + $0x1] sm:$0xff]
      %v677 = vld [vmem:[%s344 + $0x9] sm:$0xff]
      %v678 = vld [vmem:[%s344 + $0x11] sm:$0xff]
      %v679 = vld [vmem:[%s344 + $0x19] sm:$0xff]
      %v680 = vld [vmem:[%s344 + $0x21] sm:$0xff]
      %v681 = vld [vmem:[%s344 + $0x29] sm:$0xff]
      %v682 = vld [vmem:[%s344 + $0x31] sm:$0xff]
      %v683 = vld [vmem:[%s344 + $0x39] sm:$0xff]
      %v684 = vld [vmem:[%s344 + $0x41] sm:$0xff]
      %s685 = scalar_lea.vmem %s1, 8
      %v686 = vld [vmem:[%s685] sm:$0xf]
      %v688 = vsel %vm394, %v676, 0
      %v691 = vsel %vm394, %v677, 0
      %v694 = vsel %vm394, %v678, 0
      %v697 = vsel %vm394, %v679, 0
      %v700 = vsel %vm394, %v680, 0
      %v703 = vsel %vm394, %v681, 0
      %v706 = vsel %vm394, %v682, 0
      %v709 = vsel %vm394, %v683, 0
      %v712 = vsel %vm394, %v684, 0
      %v715 = vsel %vm422, %v686, 0
      %717 = vmatprep.subr.mxu0 0.0
      %718 = vmatpush1.msra.mxu0 0.0
      %719 = vmatprep.subr.mxu0 0.0
      %720 = vmatpush1.msra.mxu0 0.0
      %721 = vmatprep.subr.mxu0 0.0
      %722 = vmatpush1.msra.mxu0 0.0
      %723 = vmatprep.subr.mxu0 0.0
      %724 = vmatpush1.msra.mxu0 0.0
      %725 = vmatprep.subr.mxu0 0.0
      %726 = vmatpush1.msra.mxu0 0.0
      %727 = vmatprep.subr.mxu0 0.0
      %728 = vmatpush1.msra.mxu0 0.0
      %729 = vmatprep.subr.mxu0 0.0
      %730 = vmatpush1.msra.mxu0 0.0
      %731 = vmatprep.subr.mxu0 0.0
      %732 = vmatpush1.msra.mxu0 0.0
      %733 = vmatprep.subr.mxu0 0.0
      %734 = vmatpush1.msra.mxu0 0.0
      %735 = vmatprep.subr.mxu0 0.0
      %736 = vmatpush1.msra.mxu0 0.0
      %737 = vmatprep.subr.mxu0 0.0
      %738 = vmatpush1.msra.mxu0 0.0
      %739 = vmatprep.subr.mxu0 0.0
      %740 = vmatpush1.msra.mxu0 0.0
      %741 = vmatprep.subr.mxu0 0.0
      %742 = vmatpush1.msra.mxu0 0.0
      %743 = vmatprep.subr.mxu0 0.0
      %744 = vmatpush1.msra.mxu0 0.0
      %745 = vmatprep.subr.mxu0 0.0
      %746 = vmatpush1.msra.mxu0 0.0
      %747 = vmatprep.subr.mxu0 0.0
      %748 = vmatpush1.msra.mxu0 %v715
      %749 = vmatprep.subr.mxu0 0.0
      %750 = vmatpush2.msra.mxu0 0.0
      %751 = vmatprep.subr.mxu0 0.0
      %752 = vmatpush2.msra.mxu0 0.0
      %753 = vmatprep.subr.mxu0 0.0
      %754 = vmatpush2.msra.mxu0 0.0
      %755 = vmatprep.subr.mxu0 0.0
      %756 = vmatpush2.msra.mxu0 0.0
      %757 = vmatprep.subr.mxu0 0.0
      %758 = vmatpush2.msra.mxu0 0.0
      %759 = vmatprep.subr.mxu0 0.0
      %760 = vmatpush2.msra.mxu0 0.0
      %761 = vmatprep.subr.mxu0 0.0
      %762 = vmatpush2.msra.mxu0 0.0
      %763 = vmatprep.subr.mxu0 0.0
      %764 = vmatpush2.msra.mxu0 0.0
      %765 = vmatprep.subr.mxu0 0.0
      %766 = vmatpush2.msra.mxu0 0.0
      %767 = vmatprep.subr.mxu0 0.0
      %768 = vmatpush2.msra.mxu0 0.0
      %769 = vmatprep.subr.mxu0 0.0
      %770 = vmatpush2.msra.mxu0 0.0
      %771 = vmatprep.subr.mxu0 0.0
      %772 = vmatpush2.msra.mxu0 0.0
      %773 = vmatprep.subr.mxu0 0.0
      %774 = vmatpush2.msra.mxu0 0.0
      %775 = vmatprep.subr.mxu0 0.0
      %776 = vmatpush2.msra.mxu0 0.0
      %777 = vmatprep.subr.mxu0 0.0
      %778 = vmatpush2.msra.mxu0 0.0
      %779 = vmatprep.subr.mxu0 0.0
      %780 = vmatpush2.msra.mxu0 0.0
      %781 = vmatprep.mubr.f32.mxu0 0.0
      %782 = vmatmul.mubr.f32.gmra.mxu0 %v688
      %v783 = vpop.f32.mrf.mxu0
      %v784 = vadd.f32 0.0, %v783
      %v785 = vpop.f32.mrf.mxu0
      %786 = vmatprep.mubr.f32.mxu0 0.0
      %787 = vmatmul.mubr.f32.gmra.mxu0 %v691
      %v788 = vpop.f32.mrf.mxu0
      %v789 = vadd.f32 0.0, %v788
      %v790 = vpop.f32.mrf.mxu0
      %791 = vmatprep.mubr.f32.mxu0 0.0
      %792 = vmatmul.mubr.f32.gmra.mxu0 %v694
      %v793 = vpop.f32.mrf.mxu0
      %v794 = vadd.f32 0.0, %v793
      %v795 = vpop.f32.mrf.mxu0
      %796 = vmatprep.mubr.f32.mxu0 0.0
      %797 = vmatmul.mubr.f32.gmra.mxu0 %v697
      %v798 = vpop.f32.mrf.mxu0
      %v799 = vadd.f32 0.0, %v798
      %v800 = vpop.f32.mrf.mxu0
      %801 = vmatprep.mubr.f32.mxu0 0.0
      %802 = vmatmul.mubr.f32.gmra.mxu0 %v700
      %v803 = vpop.f32.mrf.mxu0
      %v804 = vadd.f32 0.0, %v803
      %v805 = vpop.f32.mrf.mxu0
      %806 = vmatprep.mubr.f32.mxu0 0.0
      %807 = vmatmul.mubr.f32.gmra.mxu0 %v703
      %v808 = vpop.f32.mrf.mxu0
      %v809 = vadd.f32 0.0, %v808
      %v810 = vpop.f32.mrf.mxu0
      %811 = vmatprep.mubr.f32.mxu0 0.0
      %812 = vmatmul.mubr.f32.gmra.mxu0 %v706
      %v813 = vpop.f32.mrf.mxu0
      %v814 = vadd.f32 0.0, %v813
      %v815 = vpop.f32.mrf.mxu0
      %816 = vmatprep.mubr.f32.mxu0 0.0
      %817 = vmatmul.mubr.f32.gmra.mxu0 %v709
      %v818 = vpop.f32.mrf.mxu0
      %v819 = vadd.f32 0.0, %v818
      %v820 = vpop.f32.mrf.mxu0
      %821 = vmatprep.mubr.f32.mxu0 0.0
      %822 = vmatmul.mubr.f32.gmra.mxu0 %v712
      %v823 = vpop.f32.mrf.mxu0
      %v824 = vadd.f32 0.0, %v823
      %v825 = vpop.f32.mrf.mxu0
      %826 = vdwg.mxu0
      %v827 = vadd.f32 %v633, %v784
      %v828 = vadd.f32 %v638, %v789
      %v829 = vadd.f32 %v643, %v794
      %v830 = vadd.f32 %v648, %v799
      %v831 = vadd.f32 %v653, %v804
      %v832 = vadd.f32 %v658, %v809
      %v833 = vadd.f32 %v663, %v814
      %v834 = vadd.f32 %v668, %v819
      %v835 = vadd.f32 %v673, %v824
      %s836 = scalar_lea.vmem %s344, 176
      %v837 = vld [vmem:[%s836] sm:$0xff]
      %v838 = vld [vmem:[%s836 + $0x8] sm:$0xff]
      %v839 = vld [vmem:[%s836 + $0x10] sm:$0xff]
      %v840 = vld [vmem:[%s836 + $0x18] sm:$0xff]
      %v841 = vld [vmem:[%s836 + $0x20] sm:$0xff]
      %v842 = vld [vmem:[%s836 + $0x28] sm:$0xff]
      %v843 = vld [vmem:[%s836 + $0x30] sm:$0xff]
      %v844 = vld [vmem:[%s836 + $0x38] sm:$0xff]
      %v845 = vld [vmem:[%s836 + $0x40] sm:$0xff]
      %s846 = scalar_lea.vmem %s1, 12
      %v847 = vld [vmem:[%s846] sm:$0xf]
      %v849 = vsel %vm394, %v837, 0
      %v852 = vsel %vm394, %v838, 0
      %v855 = vsel %vm394, %v839, 0
      %v858 = vsel %vm394, %v840, 0
      %v861 = vsel %vm394, %v841, 0
      %v864 = vsel %vm394, %v842, 0
      %v867 = vsel %vm394, %v843, 0
      %v870 = vsel %vm394, %v844, 0
      %v873 = vsel %vm394, %v845, 0
      %v876 = vsel %vm422, %v847, 0
      %878 = vmatprep.subr.mxu0 0.0
      %879 = vmatpush1.msra.mxu0 0.0
      %880 = vmatprep.subr.mxu0 0.0
      %881 = vmatpush1.msra.mxu0 0.0
      %882 = vmatprep.subr.mxu0 0.0
      %883 = vmatpush1.msra.mxu0 0.0
      %884 = vmatprep.subr.mxu0 0.0
      %885 = vmatpush1.msra.mxu0 0.0
      %886 = vmatprep.subr.mxu0 0.0
      %887 = vmatpush1.msra.mxu0 0.0
      %888 = vmatprep.subr.mxu0 0.0
      %889 = vmatpush1.msra.mxu0 0.0
      %890 = vmatprep.subr.mxu0 0.0
      %891 = vmatpush1.msra.mxu0 0.0
      %892 = vmatprep.subr.mxu0 0.0
      %893 = vmatpush1.msra.mxu0 0.0
      %894 = vmatprep.subr.mxu0 0.0
      %895 = vmatpush1.msra.mxu0 0.0
      %896 = vmatprep.subr.mxu0 0.0
      %897 = vmatpush1.msra.mxu0 0.0
      %898 = vmatprep.subr.mxu0 0.0
      %899 = vmatpush1.msra.mxu0 0.0
      %900 = vmatprep.subr.mxu0 0.0
      %901 = vmatpush1.msra.mxu0 0.0
      %902 = vmatprep.subr.mxu0 0.0
      %903 = vmatpush1.msra.mxu0 0.0
      %904 = vmatprep.subr.mxu0 0.0
      %905 = vmatpush1.msra.mxu0 0.0
      %906 = vmatprep.subr.mxu0 0.0
      %907 = vmatpush1.msra.mxu0 0.0
      %908 = vmatprep.subr.mxu0 0.0
      %909 = vmatpush1.msra.mxu0 %v876
      %910 = vmatprep.subr.mxu0 0.0
      %911 = vmatpush2.msra.mxu0 0.0
      %912 = vmatprep.subr.mxu0 0.0
      %913 = vmatpush2.msra.mxu0 0.0
      %914 = vmatprep.subr.mxu0 0.0
      %915 = vmatpush2.msra.mxu0 0.0
      %916 = vmatprep.subr.mxu0 0.0
      %917 = vmatpush2.msra.mxu0 0.0
      %918 = vmatprep.subr.mxu0 0.0
      %919 = vmatpush2.msra.mxu0 0.0
      %920 = vmatprep.subr.mxu0 0.0
      %921 = vmatpush2.msra.mxu0 0.0
      %922 = vmatprep.subr.mxu0 0.0
      %923 = vmatpush2.msra.mxu0 0.0
      %924 = vmatprep.subr.mxu0 0.0
      %925 = vmatpush2.msra.mxu0 0.0
      %926 = vmatprep.subr.mxu0 0.0
      %927 = vmatpush2.msra.mxu0 0.0
      %928 = vmatprep.subr.mxu0 0.0
      %929 = vmatpush2.msra.mxu0 0.0
      %930 = vmatprep.subr.mxu0 0.0
      %931 = vmatpush2.msra.mxu0 0.0
      %932 = vmatprep.subr.mxu0 0.0
      %933 = vmatpush2.msra.mxu0 0.0
      %934 = vmatprep.subr.mxu0 0.0
      %935 = vmatpush2.msra.mxu0 0.0
      %936 = vmatprep.subr.mxu0 0.0
      %937 = vmatpush2.msra.mxu0 0.0
      %938 = vmatprep.subr.mxu0 0.0
      %939 = vmatpush2.msra.mxu0 0.0
      %940 = vmatprep.subr.mxu0 0.0
      %941 = vmatpush2.msra.mxu0 0.0
      %942 = vmatprep.mubr.f32.mxu0 0.0
      %943 = vmatmul.mubr.f32.gmra.mxu0 %v849
      %v944 = vpop.f32.mrf.mxu0
      %v945 = vadd.f32 0.0, %v944
      %v946 = vpop.f32.mrf.mxu0
      %947 = vmatprep.mubr.f32.mxu0 0.0
      %948 = vmatmul.mubr.f32.gmra.mxu0 %v852
      %v949 = vpop.f32.mrf.mxu0
      %v950 = vadd.f32 0.0, %v949
      %v951 = vpop.f32.mrf.mxu0
      %952 = vmatprep.mubr.f32.mxu0 0.0
      %953 = vmatmul.mubr.f32.gmra.mxu0 %v855
      %v954 = vpop.f32.mrf.mxu0
      %v955 = vadd.f32 0.0, %v954
      %v956 = vpop.f32.mrf.mxu0
      %957 = vmatprep.mubr.f32.mxu0 0.0
      %958 = vmatmul.mubr.f32.gmra.mxu0 %v858
      %v959 = vpop.f32.mrf.mxu0
      %v960 = vadd.f32 0.0, %v959
      %v961 = vpop.f32.mrf.mxu0
      %962 = vmatprep.mubr.f32.mxu0 0.0
      %963 = vmatmul.mubr.f32.gmra.mxu0 %v861
      %v964 = vpop.f32.mrf.mxu0
      %v965 = vadd.f32 0.0, %v964
      %v966 = vpop.f32.mrf.mxu0
      %967 = vmatprep.mubr.f32.mxu0 0.0
      %968 = vmatmul.mubr.f32.gmra.mxu0 %v864
      %v969 = vpop.f32.mrf.mxu0
      %v970 = vadd.f32 0.0, %v969
      %v971 = vpop.f32.mrf.mxu0
      %972 = vmatprep.mubr.f32.mxu0 0.0
      %973 = vmatmul.mubr.f32.gmra.mxu0 %v867
      %v974 = vpop.f32.mrf.mxu0
      %v975 = vadd.f32 0.0, %v974
      %v976 = vpop.f32.mrf.mxu0
      %977 = vmatprep.mubr.f32.mxu0 0.0
      %978 = vmatmul.mubr.f32.gmra.mxu0 %v870
      %v979 = vpop.f32.mrf.mxu0
      %v980 = vadd.f32 0.0, %v979
      %v981 = vpop.f32.mrf.mxu0
      %982 = vmatprep.mubr.f32.mxu0 0.0
      %983 = vmatmul.mubr.f32.gmra.mxu0 %v873
      %v984 = vpop.f32.mrf.mxu0
      %v985 = vadd.f32 0.0, %v984
      %v986 = vpop.f32.mrf.mxu0
      %987 = vdwg.mxu0
      %v988 = vadd.f32 %v827, %v945
      %v989 = vadd.f32 %v828, %v950
      %v990 = vadd.f32 %v829, %v955
      %v991 = vadd.f32 %v830, %v960
      %v992 = vadd.f32 %v831, %v965
      %v993 = vadd.f32 %v832, %v970
      %v994 = vadd.f32 %v833, %v975
      %v995 = vadd.f32 %v834, %v980
      %v996 = vadd.f32 %v835, %v985
      %s997 = scalar_lea.vmem %s344, 264
      %v998 = vld [vmem:[%s997] sm:$0xff]
      %v999 = vld [vmem:[%s997 + $0x8] sm:$0xff]
      %v1000 = vld [vmem:[%s997 + $0x10] sm:$0xff]
      %v1001 = vld [vmem:[%s997 + $0x18] sm:$0xff]
      %v1002 = vld [vmem:[%s997 + $0x20] sm:$0xff]
      %v1003 = vld [vmem:[%s997 + $0x28] sm:$0xff]
      %v1004 = vld [vmem:[%s997 + $0x30] sm:$0xff]
      %v1005 = vld [vmem:[%s997 + $0x38] sm:$0xff]
      %v1006 = vld [vmem:[%s997 + $0x40] sm:$0xff]
      %s1007 = scalar_lea.vmem %s1, 16
      %v1008 = vld [vmem:[%s1007] sm:$0xf]
      %v1010 = vsel %vm394, %v998, 0
      %v1013 = vsel %vm394, %v999, 0
      %v1016 = vsel %vm394, %v1000, 0
      %v1019 = vsel %vm394, %v1001, 0
      %v1022 = vsel %vm394, %v1002, 0
      %v1025 = vsel %vm394, %v1003, 0
      %v1028 = vsel %vm394, %v1004, 0
      %v1031 = vsel %vm394, %v1005, 0
      %v1034 = vsel %vm394, %v1006, 0
      %v1037 = vsel %vm422, %v1008, 0
      %1039 = vmatprep.subr.mxu0 0.0
      %1040 = vmatpush1.msra.mxu0 0.0
      %1041 = vmatprep.subr.mxu0 0.0
      %1042 = vmatpush1.msra.mxu0 0.0
      %1043 = vmatprep.subr.mxu0 0.0
      %1044 = vmatpush1.msra.mxu0 0.0
      %1045 = vmatprep.subr.mxu0 0.0
      %1046 = vmatpush1.msra.mxu0 0.0
      %1047 = vmatprep.subr.mxu0 0.0
      %1048 = vmatpush1.msra.mxu0 0.0
      %1049 = vmatprep.subr.mxu0 0.0
      %1050 = vmatpush1.msra.mxu0 0.0
      %1051 = vmatprep.subr.mxu0 0.0
      %1052 = vmatpush1.msra.mxu0 0.0
      %1053 = vmatprep.subr.mxu0 0.0
      %1054 = vmatpush1.msra.mxu0 0.0
      %1055 = vmatprep.subr.mxu0 0.0
      %1056 = vmatpush1.msra.mxu0 0.0
      %1057 = vmatprep.subr.mxu0 0.0
      %1058 = vmatpush1.msra.mxu0 0.0
      %1059 = vmatprep.subr.mxu0 0.0
      %1060 = vmatpush1.msra.mxu0 0.0
      %1061 = vmatprep.subr.mxu0 0.0
      %1062 = vmatpush1.msra.mxu0 0.0
      %1063 = vmatprep.subr.mxu0 0.0
      %1064 = vmatpush1.msra.mxu0 0.0
      %1065 = vmatprep.subr.mxu0 0.0
      %1066 = vmatpush1.msra.mxu0 0.0
      %1067 = vmatprep.subr.mxu0 0.0
      %1068 = vmatpush1.msra.mxu0 0.0
      %1069 = vmatprep.subr.mxu0 0.0
      %1070 = vmatpush1.msra.mxu0 %v1037
      %1071 = vmatprep.subr.mxu0 0.0
      %1072 = vmatpush2.msra.mxu0 0.0
      %1073 = vmatprep.subr.mxu0 0.0
      %1074 = vmatpush2.msra.mxu0 0.0
      %1075 = vmatprep.subr.mxu0 0.0
      %1076 = vmatpush2.msra.mxu0 0.0
      %1077 = vmatprep.subr.mxu0 0.0
      %1078 = vmatpush2.msra.mxu0 0.0
      %1079 = vmatprep.subr.mxu0 0.0
      %1080 = vmatpush2.msra.mxu0 0.0
      %1081 = vmatprep.subr.mxu0 0.0
      %1082 = vmatpush2.msra.mxu0 0.0
      %1083 = vmatprep.subr.mxu0 0.0
      %1084 = vmatpush2.msra.mxu0 0.0
      %1085 = vmatprep.subr.mxu0 0.0
      %1086 = vmatpush2.msra.mxu0 0.0
      %1087 = vmatprep.subr.mxu0 0.0
      %1088 = vmatpush2.msra.mxu0 0.0
      %1089 = vmatprep.subr.mxu0 0.0
      %1090 = vmatpush2.msra.mxu0 0.0
      %1091 = vmatprep.subr.mxu0 0.0
      %1092 = vmatpush2.msra.mxu0 0.0
      %1093 = vmatprep.subr.mxu0 0.0
      %1094 = vmatpush2.msra.mxu0 0.0
      %1095 = vmatprep.subr.mxu0 0.0
      %1096 = vmatpush2.msra.mxu0 0.0
      %1097 = vmatprep.subr.mxu0 0.0
      %1098 = vmatpush2.msra.mxu0 0.0
      %1099 = vmatprep.subr.mxu0 0.0
      %1100 = vmatpush2.msra.mxu0 0.0
      %1101 = vmatprep.subr.mxu0 0.0
      %1102 = vmatpush2.msra.mxu0 0.0
      %1103 = vmatprep.mubr.f32.mxu0 0.0
      %1104 = vmatmul.mubr.f32.gmra.mxu0 %v1010
      %v1105 = vpop.f32.mrf.mxu0
      %v1106 = vadd.f32 0.0, %v1105
      %v1107 = vpop.f32.mrf.mxu0
      %1108 = vmatprep.mubr.f32.mxu0 0.0
      %1109 = vmatmul.mubr.f32.gmra.mxu0 %v1013
      %v1110 = vpop.f32.mrf.mxu0
      %v1111 = vadd.f32 0.0, %v1110
      %v1112 = vpop.f32.mrf.mxu0
      %1113 = vmatprep.mubr.f32.mxu0 0.0
      %1114 = vmatmul.mubr.f32.gmra.mxu0 %v1016
      %v1115 = vpop.f32.mrf.mxu0
      %v1116 = vadd.f32 0.0, %v1115
      %v1117 = vpop.f32.mrf.mxu0
      %1118 = vmatprep.mubr.f32.mxu0 0.0
      %1119 = vmatmul.mubr.f32.gmra.mxu0 %v1019
      %v1120 = vpop.f32.mrf.mxu0
      %v1121 = vadd.f32 0.0, %v1120
      %v1122 = vpop.f32.mrf.mxu0
      %1123 = vmatprep.mubr.f32.mxu0 0.0
      %1124 = vmatmul.mubr.f32.gmra.mxu0 %v1022
      %v1125 = vpop.f32.mrf.mxu0
      %v1126 = vadd.f32 0.0, %v1125
      %v1127 = vpop.f32.mrf.mxu0
      %1128 = vmatprep.mubr.f32.mxu0 0.0
      %1129 = vmatmul.mubr.f32.gmra.mxu0 %v1025
      %v1130 = vpop.f32.mrf.mxu0
      %v1131 = vadd.f32 0.0, %v1130
      %v1132 = vpop.f32.mrf.mxu0
      %1133 = vmatprep.mubr.f32.mxu0 0.0
      %1134 = vmatmul.mubr.f32.gmra.mxu0 %v1028
      %v1135 = vpop.f32.mrf.mxu0
      %v1136 = vadd.f32 0.0, %v1135
      %v1137 = vpop.f32.mrf.mxu0
      %1138 = vmatprep.mubr.f32.mxu0 0.0
      %1139 = vmatmul.mubr.f32.gmra.mxu0 %v1031
      %v1140 = vpop.f32.mrf.mxu0
      %v1141 = vadd.f32 0.0, %v1140
      %v1142 = vpop.f32.mrf.mxu0
      %1143 = vmatprep.mubr.f32.mxu0 0.0
      %1144 = vmatmul.mubr.f32.gmra.mxu0 %v1034
      %v1145 = vpop.f32.mrf.mxu0
      %v1146 = vadd.f32 0.0, %v1145
      %v1147 = vpop.f32.mrf.mxu0
      %1148 = vdwg.mxu0
      %v1149 = vadd.f32 %v988, %v1106
      %v1150 = vadd.f32 %v989, %v1111
      %v1151 = vadd.f32 %v990, %v1116
      %v1152 = vadd.f32 %v991, %v1121
      %v1153 = vadd.f32 %v992, %v1126
      %v1154 = vadd.f32 %v993, %v1131
      %v1155 = vadd.f32 %v994, %v1136
      %v1156 = vadd.f32 %v995, %v1141
      %v1157 = vadd.f32 %v996, %v1146
      %v1158 = vld [vmem:[%s836 + $0x1] sm:$0xff]
      %v1159 = vld [vmem:[%s836 + $0x9] sm:$0xff]
      %v1160 = vld [vmem:[%s836 + $0x11] sm:$0xff]
      %v1161 = vld [vmem:[%s836 + $0x19] sm:$0xff]
      %v1162 = vld [vmem:[%s836 + $0x21] sm:$0xff]
      %v1163 = vld [vmem:[%s836 + $0x29] sm:$0xff]
      %v1164 = vld [vmem:[%s836 + $0x31] sm:$0xff]
      %v1165 = vld [vmem:[%s836 + $0x39] sm:$0xff]
      %v1166 = vld [vmem:[%s836 + $0x41] sm:$0xff]
      %s1167 = scalar_lea.vmem %s1, 20
      %v1168 = vld [vmem:[%s1167] sm:$0xf]
      %v1170 = vsel %vm394, %v1158, 0
      %v1173 = vsel %vm394, %v1159, 0
      %v1176 = vsel %vm394, %v1160, 0
      %v1179 = vsel %vm394, %v1161, 0
      %v1182 = vsel %vm394, %v1162, 0
      %v1185 = vsel %vm394, %v1163, 0
      %v1188 = vsel %vm394, %v1164, 0
      %v1191 = vsel %vm394, %v1165, 0
      %v1194 = vsel %vm394, %v1166, 0
      %v1197 = vsel %vm422, %v1168, 0
      %1199 = vmatprep.subr.mxu0 0.0
      %1200 = vmatpush1.msra.mxu0 0.0
      %1201 = vmatprep.subr.mxu0 0.0
      %1202 = vmatpush1.msra.mxu0 0.0
      %1203 = vmatprep.subr.mxu0 0.0
      %1204 = vmatpush1.msra.mxu0 0.0
      %1205 = vmatprep.subr.mxu0 0.0
      %1206 = vmatpush1.msra.mxu0 0.0
      %1207 = vmatprep.subr.mxu0 0.0
      %1208 = vmatpush1.msra.mxu0 0.0
      %1209 = vmatprep.subr.mxu0 0.0
      %1210 = vmatpush1.msra.mxu0 0.0
      %1211 = vmatprep.subr.mxu0 0.0
      %1212 = vmatpush1.msra.mxu0 0.0
      %1213 = vmatprep.subr.mxu0 0.0
      %1214 = vmatpush1.msra.mxu0 0.0
      %1215 = vmatprep.subr.mxu0 0.0
      %1216 = vmatpush1.msra.mxu0 0.0
      %1217 = vmatprep.subr.mxu0 0.0
      %1218 = vmatpush1.msra.mxu0 0.0
      %1219 = vmatprep.subr.mxu0 0.0
      %1220 = vmatpush1.msra.mxu0 0.0
      %1221 = vmatprep.subr.mxu0 0.0
      %1222 = vmatpush1.msra.mxu0 0.0
      %1223 = vmatprep.subr.mxu0 0.0
      %1224 = vmatpush1.msra.mxu0 0.0
      %1225 = vmatprep.subr.mxu0 0.0
      %1226 = vmatpush1.msra.mxu0 0.0
      %1227 = vmatprep.subr.mxu0 0.0
      %1228 = vmatpush1.msra.mxu0 0.0
      %1229 = vmatprep.subr.mxu0 0.0
      %1230 = vmatpush1.msra.mxu0 %v1197
      %1231 = vmatprep.subr.mxu0 0.0
      %1232 = vmatpush2.msra.mxu0 0.0
      %1233 = vmatprep.subr.mxu0 0.0
      %1234 = vmatpush2.msra.mxu0 0.0
      %1235 = vmatprep.subr.mxu0 0.0
      %1236 = vmatpush2.msra.mxu0 0.0
      %1237 = vmatprep.subr.mxu0 0.0
      %1238 = vmatpush2.msra.mxu0 0.0
      %1239 = vmatprep.subr.mxu0 0.0
      %1240 = vmatpush2.msra.mxu0 0.0
      %1241 = vmatprep.subr.mxu0 0.0
      %1242 = vmatpush2.msra.mxu0 0.0
      %1243 = vmatprep.subr.mxu0 0.0
      %1244 = vmatpush2.msra.mxu0 0.0
      %1245 = vmatprep.subr.mxu0 0.0
      %1246 = vmatpush2.msra.mxu0 0.0
      %1247 = vmatprep.subr.mxu0 0.0
      %1248 = vmatpush2.msra.mxu0 0.0
      %1249 = vmatprep.subr.mxu0 0.0
      %1250 = vmatpush2.msra.mxu0 0.0
      %1251 = vmatprep.subr.mxu0 0.0
      %1252 = vmatpush2.msra.mxu0 0.0
      %1253 = vmatprep.subr.mxu0 0.0
      %1254 = vmatpush2.msra.mxu0 0.0
      %1255 = vmatprep.subr.mxu0 0.0
      %1256 = vmatpush2.msra.mxu0 0.0
      %1257 = vmatprep.subr.mxu0 0.0
      %1258 = vmatpush2.msra.mxu0 0.0
      %1259 = vmatprep.subr.mxu0 0.0
      %1260 = vmatpush2.msra.mxu0 0.0
      %1261 = vmatprep.subr.mxu0 0.0
      %1262 = vmatpush2.msra.mxu0 0.0
      %1263 = vmatprep.mubr.f32.mxu0 0.0
      %1264 = vmatmul.mubr.f32.gmra.mxu0 %v1170
      %v1265 = vpop.f32.mrf.mxu0
      %v1266 = vadd.f32 0.0, %v1265
      %v1267 = vpop.f32.mrf.mxu0
      %1268 = vmatprep.mubr.f32.mxu0 0.0
      %1269 = vmatmul.mubr.f32.gmra.mxu0 %v1173
      %v1270 = vpop.f32.mrf.mxu0
      %v1271 = vadd.f32 0.0, %v1270
      %v1272 = vpop.f32.mrf.mxu0
      %1273 = vmatprep.mubr.f32.mxu0 0.0
      %1274 = vmatmul.mubr.f32.gmra.mxu0 %v1176
      %v1275 = vpop.f32.mrf.mxu0
      %v1276 = vadd.f32 0.0, %v1275
      %v1277 = vpop.f32.mrf.mxu0
      %1278 = vmatprep.mubr.f32.mxu0 0.0
      %1279 = vmatmul.mubr.f32.gmra.mxu0 %v1179
      %v1280 = vpop.f32.mrf.mxu0
      %v1281 = vadd.f32 0.0, %v1280
      %v1282 = vpop.f32.mrf.mxu0
      %1283 = vmatprep.mubr.f32.mxu0 0.0
      %1284 = vmatmul.mubr.f32.gmra.mxu0 %v1182
      %v1285 = vpop.f32.mrf.mxu0
      %v1286 = vadd.f32 0.0, %v1285
      %v1287 = vpop.f32.mrf.mxu0
      %1288 = vmatprep.mubr.f32.mxu0 0.0
      %1289 = vmatmul.mubr.f32.gmra.mxu0 %v1185
      %v1290 = vpop.f32.mrf.mxu0
      %v1291 = vadd.f32 0.0, %v1290
      %v1292 = vpop.f32.mrf.mxu0
      %1293 = vmatprep.mubr.f32.mxu0 0.0
      %1294 = vmatmul.mubr.f32.gmra.mxu0 %v1188
      %v1295 = vpop.f32.mrf.mxu0
      %v1296 = vadd.f32 0.0, %v1295
      %v1297 = vpop.f32.mrf.mxu0
      %1298 = vmatprep.mubr.f32.mxu0 0.0
      %1299 = vmatmul.mubr.f32.gmra.mxu0 %v1191
      %v1300 = vpop.f32.mrf.mxu0
      %v1301 = vadd.f32 0.0, %v1300
      %v1302 = vpop.f32.mrf.mxu0
      %1303 = vmatprep.mubr.f32.mxu0 0.0
      %1304 = vmatmul.mubr.f32.gmra.mxu0 %v1194
      %v1305 = vpop.f32.mrf.mxu0
      %v1306 = vadd.f32 0.0, %v1305
      %v1307 = vpop.f32.mrf.mxu0
      %1308 = vdwg.mxu0
      %v1309 = vadd.f32 %v1149, %v1266
      %v1310 = vadd.f32 %v1150, %v1271
      %v1311 = vadd.f32 %v1151, %v1276
      %v1312 = vadd.f32 %v1152, %v1281
      %v1313 = vadd.f32 %v1153, %v1286
      %v1314 = vadd.f32 %v1154, %v1291
      %v1315 = vadd.f32 %v1155, %v1296
      %v1316 = vadd.f32 %v1156, %v1301
      %v1317 = vadd.f32 %v1157, %v1306
      %v1318 = vld [vmem:[%s344 + $0x9] sm:$0xff]
      %v1319 = vld [vmem:[%s344 + $0x11] sm:$0xff]
      %v1320 = vld [vmem:[%s344 + $0x19] sm:$0xff]
      %v1321 = vld [vmem:[%s344 + $0x21] sm:$0xff]
      %v1322 = vld [vmem:[%s344 + $0x29] sm:$0xff]
      %v1323 = vld [vmem:[%s344 + $0x31] sm:$0xff]
      %v1324 = vld [vmem:[%s344 + $0x39] sm:$0xff]
      %v1325 = vld [vmem:[%s344 + $0x41] sm:$0xff]
      %v1326 = vld [vmem:[%s344 + $0x49] sm:$0xff]
      %s1327 = scalar_lea.vmem %s1, 24
      %v1328 = vld [vmem:[%s1327] sm:$0xf]
      %v1330 = vsel %vm394, %v1318, 0
      %v1333 = vsel %vm394, %v1319, 0
      %v1336 = vsel %vm394, %v1320, 0
      %v1339 = vsel %vm394, %v1321, 0
      %v1342 = vsel %vm394, %v1322, 0
      %v1345 = vsel %vm394, %v1323, 0
      %v1348 = vsel %vm394, %v1324, 0
      %v1351 = vsel %vm394, %v1325, 0
      %v1354 = vsel %vm394, %v1326, 0
      %v1357 = vsel %vm422, %v1328, 0
      %1359 = vmatprep.subr.mxu0 0.0
      %1360 = vmatpush1.msra.mxu0 0.0
      %1361 = vmatprep.subr.mxu0 0.0
      %1362 = vmatpush1.msra.mxu0 0.0
      %1363 = vmatprep.subr.mxu0 0.0
      %1364 = vmatpush1.msra.mxu0 0.0
      %1365 = vmatprep.subr.mxu0 0.0
      %1366 = vmatpush1.msra.mxu0 0.0
      %1367 = vmatprep.subr.mxu0 0.0
      %1368 = vmatpush1.msra.mxu0 0.0
      %1369 = vmatprep.subr.mxu0 0.0
      %1370 = vmatpush1.msra.mxu0 0.0
      %1371 = vmatprep.subr.mxu0 0.0
      %1372 = vmatpush1.msra.mxu0 0.0
      %1373 = vmatprep.subr.mxu0 0.0
      %1374 = vmatpush1.msra.mxu0 0.0
      %1375 = vmatprep.subr.mxu0 0.0
      %1376 = vmatpush1.msra.mxu0 0.0
      %1377 = vmatprep.subr.mxu0 0.0
      %1378 = vmatpush1.msra.mxu0 0.0
      %1379 = vmatprep.subr.mxu0 0.0
      %1380 = vmatpush1.msra.mxu0 0.0
      %1381 = vmatprep.subr.mxu0 0.0
      %1382 = vmatpush1.msra.mxu0 0.0
      %1383 = vmatprep.subr.mxu0 0.0
      %1384 = vmatpush1.msra.mxu0 0.0
      %1385 = vmatprep.subr.mxu0 0.0
      %1386 = vmatpush1.msra.mxu0 0.0
      %1387 = vmatprep.subr.mxu0 0.0
      %1388 = vmatpush1.msra.mxu0 0.0
      %1389 = vmatprep.subr.mxu0 0.0
      %1390 = vmatpush1.msra.mxu0 %v1357
      %1391 = vmatprep.subr.mxu0 0.0
      %1392 = vmatpush2.msra.mxu0 0.0
      %1393 = vmatprep.subr.mxu0 0.0
      %1394 = vmatpush2.msra.mxu0 0.0
      %1395 = vmatprep.subr.mxu0 0.0
      %1396 = vmatpush2.msra.mxu0 0.0
      %1397 = vmatprep.subr.mxu0 0.0
      %1398 = vmatpush2.msra.mxu0 0.0
      %1399 = vmatprep.subr.mxu0 0.0
      %1400 = vmatpush2.msra.mxu0 0.0
      %1401 = vmatprep.subr.mxu0 0.0
      %1402 = vmatpush2.msra.mxu0 0.0
      %1403 = vmatprep.subr.mxu0 0.0
      %1404 = vmatpush2.msra.mxu0 0.0
      %1405 = vmatprep.subr.mxu0 0.0
      %1406 = vmatpush2.msra.mxu0 0.0
      %1407 = vmatprep.subr.mxu0 0.0
      %1408 = vmatpush2.msra.mxu0 0.0
      %1409 = vmatprep.subr.mxu0 0.0
      %1410 = vmatpush2.msra.mxu0 0.0
      %1411 = vmatprep.subr.mxu0 0.0
      %1412 = vmatpush2.msra.mxu0 0.0
      %1413 = vmatprep.subr.mxu0 0.0
      %1414 = vmatpush2.msra.mxu0 0.0
      %1415 = vmatprep.subr.mxu0 0.0
      %1416 = vmatpush2.msra.mxu0 0.0
      %1417 = vmatprep.subr.mxu0 0.0
      %1418 = vmatpush2.msra.mxu0 0.0
      %1419 = vmatprep.subr.mxu0 0.0
      %1420 = vmatpush2.msra.mxu0 0.0
      %1421 = vmatprep.subr.mxu0 0.0
      %1422 = vmatpush2.msra.mxu0 0.0
      %1423 = vmatprep.mubr.f32.mxu0 0.0
      %1424 = vmatmul.mubr.f32.gmra.mxu0 %v1330
      %v1425 = vpop.f32.mrf.mxu0
      %v1426 = vadd.f32 0.0, %v1425
      %v1427 = vpop.f32.mrf.mxu0
      %1428 = vmatprep.mubr.f32.mxu0 0.0
      %1429 = vmatmul.mubr.f32.gmra.mxu0 %v1333
      %v1430 = vpop.f32.mrf.mxu0
      %v1431 = vadd.f32 0.0, %v1430
      %v1432 = vpop.f32.mrf.mxu0
      %1433 = vmatprep.mubr.f32.mxu0 0.0
      %1434 = vmatmul.mubr.f32.gmra.mxu0 %v1336
      %v1435 = vpop.f32.mrf.mxu0
      %v1436 = vadd.f32 0.0, %v1435
      %v1437 = vpop.f32.mrf.mxu0
      %1438 = vmatprep.mubr.f32.mxu0 0.0
      %1439 = vmatmul.mubr.f32.gmra.mxu0 %v1339
      %v1440 = vpop.f32.mrf.mxu0
      %v1441 = vadd.f32 0.0, %v1440
      %v1442 = vpop.f32.mrf.mxu0
      %1443 = vmatprep.mubr.f32.mxu0 0.0
      %1444 = vmatmul.mubr.f32.gmra.mxu0 %v1342
      %v1445 = vpop.f32.mrf.mxu0
      %v1446 = vadd.f32 0.0, %v1445
      %v1447 = vpop.f32.mrf.mxu0
      %1448 = vmatprep.mubr.f32.mxu0 0.0
      %1449 = vmatmul.mubr.f32.gmra.mxu0 %v1345
      %v1450 = vpop.f32.mrf.mxu0
      %v1451 = vadd.f32 0.0, %v1450
      %v1452 = vpop.f32.mrf.mxu0
      %1453 = vmatprep.mubr.f32.mxu0 0.0
      %1454 = vmatmul.mubr.f32.gmra.mxu0 %v1348
      %v1455 = vpop.f32.mrf.mxu0
      %v1456 = vadd.f32 0.0, %v1455
      %v1457 = vpop.f32.mrf.mxu0
      %1458 = vmatprep.mubr.f32.mxu0 0.0
      %1459 = vmatmul.mubr.f32.gmra.mxu0 %v1351
      %v1460 = vpop.f32.mrf.mxu0
      %v1461 = vadd.f32 0.0, %v1460
      %v1462 = vpop.f32.mrf.mxu0
      %1463 = vmatprep.mubr.f32.mxu0 0.0
      %1464 = vmatmul.mubr.f32.gmra.mxu0 %v1354
      %v1465 = vpop.f32.mrf.mxu0
      %v1466 = vadd.f32 0.0, %v1465
      %v1467 = vpop.f32.mrf.mxu0
      %1468 = vdwg.mxu0
      %v1469 = vadd.f32 %v1309, %v1426
      %v1470 = vadd.f32 %v1310, %v1431
      %v1471 = vadd.f32 %v1311, %v1436
      %v1472 = vadd.f32 %v1312, %v1441
      %v1473 = vadd.f32 %v1313, %v1446
      %v1474 = vadd.f32 %v1314, %v1451
      %v1475 = vadd.f32 %v1315, %v1456
      %v1476 = vadd.f32 %v1316, %v1461
      %v1477 = vadd.f32 %v1317, %v1466
      %v1478 = vld [vmem:[%s382 + $0x9] sm:$0xff]
      %v1479 = vld [vmem:[%s382 + $0x11] sm:$0xff]
      %v1480 = vld [vmem:[%s382 + $0x19] sm:$0xff]
      %v1481 = vld [vmem:[%s382 + $0x21] sm:$0xff]
      %v1482 = vld [vmem:[%s382 + $0x29] sm:$0xff]
      %v1483 = vld [vmem:[%s382 + $0x31] sm:$0xff]
      %v1484 = vld [vmem:[%s382 + $0x39] sm:$0xff]
      %v1485 = vld [vmem:[%s382 + $0x41] sm:$0xff]
      %v1486 = vld [vmem:[%s382 + $0x49] sm:$0xff]
      %s1487 = scalar_lea.vmem %s1, 28
      %v1488 = vld [vmem:[%s1487] sm:$0xf]
      %v1490 = vsel %vm394, %v1478, 0
      %v1493 = vsel %vm394, %v1479, 0
      %v1496 = vsel %vm394, %v1480, 0
      %v1499 = vsel %vm394, %v1481, 0
      %v1502 = vsel %vm394, %v1482, 0
      %v1505 = vsel %vm394, %v1483, 0
      %v1508 = vsel %vm394, %v1484, 0
      %v1511 = vsel %vm394, %v1485, 0
      %v1514 = vsel %vm394, %v1486, 0
      %v1517 = vsel %vm422, %v1488, 0
      %1519 = vmatprep.subr.mxu0 0.0
      %1520 = vmatpush1.msra.mxu0 0.0
      %1521 = vmatprep.subr.mxu0 0.0
      %1522 = vmatpush1.msra.mxu0 0.0
      %1523 = vmatprep.subr.mxu0 0.0
      %1524 = vmatpush1.msra.mxu0 0.0
      %1525 = vmatprep.subr.mxu0 0.0
      %1526 = vmatpush1.msra.mxu0 0.0
      %1527 = vmatprep.subr.mxu0 0.0
      %1528 = vmatpush1.msra.mxu0 0.0
      %1529 = vmatprep.subr.mxu0 0.0
      %1530 = vmatpush1.msra.mxu0 0.0
      %1531 = vmatprep.subr.mxu0 0.0
      %1532 = vmatpush1.msra.mxu0 0.0
      %1533 = vmatprep.subr.mxu0 0.0
      %1534 = vmatpush1.msra.mxu0 0.0
      %1535 = vmatprep.subr.mxu0 0.0
      %1536 = vmatpush1.msra.mxu0 0.0
      %1537 = vmatprep.subr.mxu0 0.0
      %1538 = vmatpush1.msra.mxu0 0.0
      %1539 = vmatprep.subr.mxu0 0.0
      %1540 = vmatpush1.msra.mxu0 0.0
      %1541 = vmatprep.subr.mxu0 0.0
      %1542 = vmatpush1.msra.mxu0 0.0
      %1543 = vmatprep.subr.mxu0 0.0
      %1544 = vmatpush1.msra.mxu0 0.0
      %1545 = vmatprep.subr.mxu0 0.0
      %1546 = vmatpush1.msra.mxu0 0.0
      %1547 = vmatprep.subr.mxu0 0.0
      %1548 = vmatpush1.msra.mxu0 0.0
      %1549 = vmatprep.subr.mxu0 0.0
      %1550 = vmatpush1.msra.mxu0 %v1517
      %1551 = vmatprep.subr.mxu0 0.0
      %1552 = vmatpush2.msra.mxu0 0.0
      %1553 = vmatprep.subr.mxu0 0.0
      %1554 = vmatpush2.msra.mxu0 0.0
      %1555 = vmatprep.subr.mxu0 0.0
      %1556 = vmatpush2.msra.mxu0 0.0
      %1557 = vmatprep.subr.mxu0 0.0
      %1558 = vmatpush2.msra.mxu0 0.0
      %1559 = vmatprep.subr.mxu0 0.0
      %1560 = vmatpush2.msra.mxu0 0.0
      %1561 = vmatprep.subr.mxu0 0.0
      %1562 = vmatpush2.msra.mxu0 0.0
      %1563 = vmatprep.subr.mxu0 0.0
      %1564 = vmatpush2.msra.mxu0 0.0
      %1565 = vmatprep.subr.mxu0 0.0
      %1566 = vmatpush2.msra.mxu0 0.0
      %1567 = vmatprep.subr.mxu0 0.0
      %1568 = vmatpush2.msra.mxu0 0.0
      %1569 = vmatprep.subr.mxu0 0.0
      %1570 = vmatpush2.msra.mxu0 0.0
      %1571 = vmatprep.subr.mxu0 0.0
      %1572 = vmatpush2.msra.mxu0 0.0
      %1573 = vmatprep.subr.mxu0 0.0
      %1574 = vmatpush2.msra.mxu0 0.0
      %1575 = vmatprep.subr.mxu0 0.0
      %1576 = vmatpush2.msra.mxu0 0.0
      %1577 = vmatprep.subr.mxu0 0.0
      %1578 = vmatpush2.msra.mxu0 0.0
      %1579 = vmatprep.subr.mxu0 0.0
      %1580 = vmatpush2.msra.mxu0 0.0
      %1581 = vmatprep.subr.mxu0 0.0
      %1582 = vmatpush2.msra.mxu0 0.0
      %1583 = vmatprep.mubr.f32.mxu0 0.0
      %1584 = vmatmul.mubr.f32.gmra.mxu0 %v1490
      %v1585 = vpop.f32.mrf.mxu0
      %v1586 = vadd.f32 0.0, %v1585
      %v1587 = vpop.f32.mrf.mxu0
      %1588 = vmatprep.mubr.f32.mxu0 0.0
      %1589 = vmatmul.mubr.f32.gmra.mxu0 %v1493
      %v1590 = vpop.f32.mrf.mxu0
      %v1591 = vadd.f32 0.0, %v1590
      %v1592 = vpop.f32.mrf.mxu0
      %1593 = vmatprep.mubr.f32.mxu0 0.0
      %1594 = vmatmul.mubr.f32.gmra.mxu0 %v1496
      %v1595 = vpop.f32.mrf.mxu0
      %v1596 = vadd.f32 0.0, %v1595
      %v1597 = vpop.f32.mrf.mxu0
      %1598 = vmatprep.mubr.f32.mxu0 0.0
      %1599 = vmatmul.mubr.f32.gmra.mxu0 %v1499
      %v1600 = vpop.f32.mrf.mxu0
      %v1601 = vadd.f32 0.0, %v1600
      %v1602 = vpop.f32.mrf.mxu0
      %1603 = vmatprep.mubr.f32.mxu0 0.0
      %1604 = vmatmul.mubr.f32.gmra.mxu0 %v1502
      %v1605 = vpop.f32.mrf.mxu0
      %v1606 = vadd.f32 0.0, %v1605
      %v1607 = vpop.f32.mrf.mxu0
      %1608 = vmatprep.mubr.f32.mxu0 0.0
      %1609 = vmatmul.mubr.f32.gmra.mxu0 %v1505
      %v1610 = vpop.f32.mrf.mxu0
      %v1611 = vadd.f32 0.0, %v1610
      %v1612 = vpop.f32.mrf.mxu0
      %1613 = vmatprep.mubr.f32.mxu0 0.0
      %1614 = vmatmul.mubr.f32.gmra.mxu0 %v1508
      %v1615 = vpop.f32.mrf.mxu0
      %v1616 = vadd.f32 0.0, %v1615
      %v1617 = vpop.f32.mrf.mxu0
      %1618 = vmatprep.mubr.f32.mxu0 0.0
      %1619 = vmatmul.mubr.f32.gmra.mxu0 %v1511
      %v1620 = vpop.f32.mrf.mxu0
      %v1621 = vadd.f32 0.0, %v1620
      %v1622 = vpop.f32.mrf.mxu0
      %1623 = vmatprep.mubr.f32.mxu0 0.0
      %1624 = vmatmul.mubr.f32.gmra.mxu0 %v1514
      %v1625 = vpop.f32.mrf.mxu0
      %v1626 = vadd.f32 0.0, %v1625
      %v1627 = vpop.f32.mrf.mxu0
      %1628 = vdwg.mxu0
      %v1629 = vadd.f32 %v1469, %v1586
      %v1630 = vadd.f32 %v1470, %v1591
      %v1631 = vadd.f32 %v1471, %v1596
      %v1632 = vadd.f32 %v1472, %v1601
      %v1633 = vadd.f32 %v1473, %v1606
      %v1634 = vadd.f32 %v1474, %v1611
      %v1635 = vadd.f32 %v1475, %v1616
      %v1636 = vadd.f32 %v1476, %v1621
      %v1637 = vadd.f32 %v1477, %v1626
      %v1638 = vld [vmem:[%s344 + $0xa] sm:$0xff]
      %v1639 = vld [vmem:[%s344 + $0x12] sm:$0xff]
      %v1640 = vld [vmem:[%s344 + $0x1a] sm:$0xff]
      %v1641 = vld [vmem:[%s344 + $0x22] sm:$0xff]
      %v1642 = vld [vmem:[%s344 + $0x2a] sm:$0xff]
      %v1643 = vld [vmem:[%s344 + $0x32] sm:$0xff]
      %v1644 = vld [vmem:[%s344 + $0x3a] sm:$0xff]
      %v1645 = vld [vmem:[%s344 + $0x42] sm:$0xff]
      %v1646 = vld [vmem:[%s344 + $0x4a] sm:$0xff]
      %s1647 = scalar_lea.vmem %s1, 32
      %v1648 = vld [vmem:[%s1647] sm:$0xf]
      %v1650 = vsel %vm394, %v1638, 0
      %v1653 = vsel %vm394, %v1639, 0
      %v1656 = vsel %vm394, %v1640, 0
      %v1659 = vsel %vm394, %v1641, 0
      %v1662 = vsel %vm394, %v1642, 0
      %v1665 = vsel %vm394, %v1643, 0
      %v1668 = vsel %vm394, %v1644, 0
      %v1671 = vsel %vm394, %v1645, 0
      %v1674 = vsel %vm394, %v1646, 0
      %v1677 = vsel %vm422, %v1648, 0
      %1679 = vmatprep.subr.mxu0 0.0
      %1680 = vmatpush1.msra.mxu0 0.0
      %1681 = vmatprep.subr.mxu0 0.0
      %1682 = vmatpush1.msra.mxu0 0.0
      %1683 = vmatprep.subr.mxu0 0.0
      %1684 = vmatpush1.msra.mxu0 0.0
      %1685 = vmatprep.subr.mxu0 0.0
      %1686 = vmatpush1.msra.mxu0 0.0
      %1687 = vmatprep.subr.mxu0 0.0
      %1688 = vmatpush1.msra.mxu0 0.0
      %1689 = vmatprep.subr.mxu0 0.0
      %1690 = vmatpush1.msra.mxu0 0.0
      %1691 = vmatprep.subr.mxu0 0.0
      %1692 = vmatpush1.msra.mxu0 0.0
      %1693 = vmatprep.subr.mxu0 0.0
      %1694 = vmatpush1.msra.mxu0 0.0
      %1695 = vmatprep.subr.mxu0 0.0
      %1696 = vmatpush1.msra.mxu0 0.0
      %1697 = vmatprep.subr.mxu0 0.0
      %1698 = vmatpush1.msra.mxu0 0.0
      %1699 = vmatprep.subr.mxu0 0.0
      %1700 = vmatpush1.msra.mxu0 0.0
      %1701 = vmatprep.subr.mxu0 0.0
      %1702 = vmatpush1.msra.mxu0 0.0
      %1703 = vmatprep.subr.mxu0 0.0
      %1704 = vmatpush1.msra.mxu0 0.0
      %1705 = vmatprep.subr.mxu0 0.0
      %1706 = vmatpush1.msra.mxu0 0.0
      %1707 = vmatprep.subr.mxu0 0.0
      %1708 = vmatpush1.msra.mxu0 0.0
      %1709 = vmatprep.subr.mxu0 0.0
      %1710 = vmatpush1.msra.mxu0 %v1677
      %1711 = vmatprep.subr.mxu0 0.0
      %1712 = vmatpush2.msra.mxu0 0.0
      %1713 = vmatprep.subr.mxu0 0.0
      %1714 = vmatpush2.msra.mxu0 0.0
      %1715 = vmatprep.subr.mxu0 0.0
      %1716 = vmatpush2.msra.mxu0 0.0
      %1717 = vmatprep.subr.mxu0 0.0
      %1718 = vmatpush2.msra.mxu0 0.0
      %1719 = vmatprep.subr.mxu0 0.0
      %1720 = vmatpush2.msra.mxu0 0.0
      %1721 = vmatprep.subr.mxu0 0.0
      %1722 = vmatpush2.msra.mxu0 0.0
      %1723 = vmatprep.subr.mxu0 0.0
      %1724 = vmatpush2.msra.mxu0 0.0
      %1725 = vmatprep.subr.mxu0 0.0
      %1726 = vmatpush2.msra.mxu0 0.0
      %1727 = vmatprep.subr.mxu0 0.0
      %1728 = vmatpush2.msra.mxu0 0.0
      %1729 = vmatprep.subr.mxu0 0.0
      %1730 = vmatpush2.msra.mxu0 0.0
      %1731 = vmatprep.subr.mxu0 0.0
      %1732 = vmatpush2.msra.mxu0 0.0
      %1733 = vmatprep.subr.mxu0 0.0
      %1734 = vmatpush2.msra.mxu0 0.0
      %1735 = vmatprep.subr.mxu0 0.0
      %1736 = vmatpush2.msra.mxu0 0.0
      %1737 = vmatprep.subr.mxu0 0.0
      %1738 = vmatpush2.msra.mxu0 0.0
      %1739 = vmatprep.subr.mxu0 0.0
      %1740 = vmatpush2.msra.mxu0 0.0
      %1741 = vmatprep.subr.mxu0 0.0
      %1742 = vmatpush2.msra.mxu0 0.0
      %1743 = vmatprep.mubr.f32.mxu0 0.0
      %1744 = vmatmul.mubr.f32.gmra.mxu0 %v1650
      %v1745 = vpop.f32.mrf.mxu0
      %v1746 = vadd.f32 0.0, %v1745
      %v1747 = vpop.f32.mrf.mxu0
      %1748 = vmatprep.mubr.f32.mxu0 0.0
      %1749 = vmatmul.mubr.f32.gmra.mxu0 %v1653
      %v1750 = vpop.f32.mrf.mxu0
      %v1751 = vadd.f32 0.0, %v1750
      %v1752 = vpop.f32.mrf.mxu0
      %1753 = vmatprep.mubr.f32.mxu0 0.0
      %1754 = vmatmul.mubr.f32.gmra.mxu0 %v1656
      %v1755 = vpop.f32.mrf.mxu0
      %v1756 = vadd.f32 0.0, %v1755
      %v1757 = vpop.f32.mrf.mxu0
      %1758 = vmatprep.mubr.f32.mxu0 0.0
      %1759 = vmatmul.mubr.f32.gmra.mxu0 %v1659
      %v1760 = vpop.f32.mrf.mxu0
      %v1761 = vadd.f32 0.0, %v1760
      %v1762 = vpop.f32.mrf.mxu0
      %1763 = vmatprep.mubr.f32.mxu0 0.0
      %1764 = vmatmul.mubr.f32.gmra.mxu0 %v1662
      %v1765 = vpop.f32.mrf.mxu0
      %v1766 = vadd.f32 0.0, %v1765
      %v1767 = vpop.f32.mrf.mxu0
      %1768 = vmatprep.mubr.f32.mxu0 0.0
      %1769 = vmatmul.mubr.f32.gmra.mxu0 %v1665
      %v1770 = vpop.f32.mrf.mxu0
      %v1771 = vadd.f32 0.0, %v1770
      %v1772 = vpop.f32.mrf.mxu0
      %1773 = vmatprep.mubr.f32.mxu0 0.0
      %1774 = vmatmul.mubr.f32.gmra.mxu0 %v1668
      %v1775 = vpop.f32.mrf.mxu0
      %v1776 = vadd.f32 0.0, %v1775
      %v1777 = vpop.f32.mrf.mxu0
      %1778 = vmatprep.mubr.f32.mxu0 0.0
      %1779 = vmatmul.mubr.f32.gmra.mxu0 %v1671
      %v1780 = vpop.f32.mrf.mxu0
      %v1781 = vadd.f32 0.0, %v1780
      %v1782 = vpop.f32.mrf.mxu0
      %1783 = vmatprep.mubr.f32.mxu0 0.0
      %1784 = vmatmul.mubr.f32.gmra.mxu0 %v1674
      %v1785 = vpop.f32.mrf.mxu0
      %v1786 = vadd.f32 0.0, %v1785
      %v1787 = vpop.f32.mrf.mxu0
      %1788 = vdwg.mxu0
      %v1789 = vadd.f32 %v1629, %v1746
      %v1790 = vadd.f32 %v1630, %v1751
      %v1791 = vadd.f32 %v1631, %v1756
      %v1792 = vadd.f32 %v1632, %v1761
      %v1793 = vadd.f32 %v1633, %v1766
      %v1794 = vadd.f32 %v1634, %v1771
      %v1795 = vadd.f32 %v1635, %v1776
      %v1796 = vadd.f32 %v1636, %v1781
      %v1797 = vadd.f32 %v1637, %v1786
      %v1798 = vld [vmem:[%s2] sm:$0x1]
      %v1800 = vlaneseq
      %v1801 = vshrl.u32 %v1800, 7
      %v1802 = vsub.s32 0, %v1801
      %v1803 = vrot.slane %v1798, %v1802
      %v1805 = vadd.f32 %v1789, %v1803
      %v1806 = vadd.f32 %v1790, %v1803
      %v1807 = vadd.f32 %v1791, %v1803
      %v1808 = vadd.f32 %v1792, %v1803
      %v1809 = vadd.f32 %v1793, %v1803
      %v1810 = vadd.f32 %v1794, %v1803
      %v1811 = vadd.f32 %v1795, %v1803
      %v1812 = vadd.f32 %v1796, %v1803
      %v1813 = vadd.f32 %v1797, %v1803
      %1814 = vst.msk [vmem:[%s362] sm:$0xff] %vm394, %v1805
      %1815 = vst.msk [vmem:[%s362 + $0x8] sm:$0xff] %vm394, %v1806
      %1816 = vst.msk [vmem:[%s362 + $0x10] sm:$0xff] %vm394, %v1807
      %1817 = vst.msk [vmem:[%s362 + $0x18] sm:$0xff] %vm394, %v1808
      %1818 = vst.msk [vmem:[%s362 + $0x20] sm:$0xff] %vm394, %v1809
      %1819 = vst.msk [vmem:[%s362 + $0x28] sm:$0xff] %vm394, %v1810
      %1820 = vst.msk [vmem:[%s362 + $0x30] sm:$0xff] %vm394, %v1811
      %1821 = vst.msk [vmem:[%s362 + $0x38] sm:$0xff] %vm394, %v1812
      %1822 = vst.msk [vmem:[%s362 + $0x40] sm:$0xff] %vm394, %v1813
      %v1823 = vld [vmem:[%s353] sm:$0xff]
      %v1824 = vld [vmem:[%s353 + $0x8] sm:$0xff]
      %v1825 = vld [vmem:[%s353 + $0x10] sm:$0xff]
      %v1826 = vld [vmem:[%s353 + $0x18] sm:$0xff]
      %v1827 = vld [vmem:[%s353 + $0x20] sm:$0xff]
      %v1828 = vld [vmem:[%s353 + $0x28] sm:$0xff]
      %v1829 = vld [vmem:[%s353 + $0x30] sm:$0xff]
      %v1830 = vld [vmem:[%s353 + $0x38] sm:$0xff]
      %v1831 = vld [vmem:[%s353 + $0x40] sm:$0xff]
      %v1832 = vld [vmem:[%s4] sm:$0xf]
      %s1833 = scalar_lea.vmem %s353, 88
      %v1834 = vld [vmem:[%s1833] sm:$0xff]
      %v1835 = vld [vmem:[%s1833 + $0x8] sm:$0xff]
      %v1836 = vld [vmem:[%s1833 + $0x10] sm:$0xff]
      %v1837 = vld [vmem:[%s1833 + $0x18] sm:$0xff]
      %v1838 = vld [vmem:[%s1833 + $0x20] sm:$0xff]
      %v1839 = vld [vmem:[%s1833 + $0x28] sm:$0xff]
      %v1840 = vld [vmem:[%s1833 + $0x30] sm:$0xff]
      %v1841 = vld [vmem:[%s1833 + $0x38] sm:$0xff]
      %v1842 = vld [vmem:[%s1833 + $0x40] sm:$0xff]
      %s1843 = scalar_lea.vmem %s4, 4
      %v1844 = vld [vmem:[%s1843] sm:$0xf]
      %v1846 = vsel %vm394, %v1834, 0
      %v1849 = vsel %vm394, %v1835, 0
      %v1852 = vsel %vm394, %v1836, 0
      %v1855 = vsel %vm394, %v1837, 0
      %v1858 = vsel %vm394, %v1838, 0
      %v1861 = vsel %vm394, %v1839, 0
      %v1864 = vsel %vm394, %v1840, 0
      %v1867 = vsel %vm394, %v1841, 0
      %v1870 = vsel %vm394, %v1842, 0
      %v1873 = vsel %vm422, %v1844, 0
      %1875 = vmatprep.subr.mxu0 0.0
      %1876 = vmatpush1.msra.mxu0 0.0
      %1877 = vmatprep.subr.mxu0 0.0
      %1878 = vmatpush1.msra.mxu0 0.0
      %1879 = vmatprep.subr.mxu0 0.0
      %1880 = vmatpush1.msra.mxu0 0.0
      %1881 = vmatprep.subr.mxu0 0.0
      %1882 = vmatpush1.msra.mxu0 0.0
      %1883 = vmatprep.subr.mxu0 0.0
      %1884 = vmatpush1.msra.mxu0 0.0
      %1885 = vmatprep.subr.mxu0 0.0
      %1886 = vmatpush1.msra.mxu0 0.0
      %1887 = vmatprep.subr.mxu0 0.0
      %1888 = vmatpush1.msra.mxu0 0.0
      %1889 = vmatprep.subr.mxu0 0.0
      %1890 = vmatpush1.msra.mxu0 0.0
      %1891 = vmatprep.subr.mxu0 0.0
      %1892 = vmatpush1.msra.mxu0 0.0
      %1893 = vmatprep.subr.mxu0 0.0
      %1894 = vmatpush1.msra.mxu0 0.0
      %1895 = vmatprep.subr.mxu0 0.0
      %1896 = vmatpush1.msra.mxu0 0.0
      %1897 = vmatprep.subr.mxu0 0.0
      %1898 = vmatpush1.msra.mxu0 0.0
      %1899 = vmatprep.subr.mxu0 0.0
      %1900 = vmatpush1.msra.mxu0 0.0
      %1901 = vmatprep.subr.mxu0 0.0
      %1902 = vmatpush1.msra.mxu0 0.0
      %1903 = vmatprep.subr.mxu0 0.0
      %1904 = vmatpush1.msra.mxu0 0.0
      %1905 = vmatprep.subr.mxu0 0.0
      %1906 = vmatpush1.msra.mxu0 %v1873
      %1907 = vmatprep.subr.mxu0 0.0
      %1908 = vmatpush2.msra.mxu0 0.0
      %1909 = vmatprep.subr.mxu0 0.0
      %1910 = vmatpush2.msra.mxu0 0.0
      %1911 = vmatprep.subr.mxu0 0.0
      %1912 = vmatpush2.msra.mxu0 0.0
      %1913 = vmatprep.subr.mxu0 0.0
      %1914 = vmatpush2.msra.mxu0 0.0
      %1915 = vmatprep.subr.mxu0 0.0
      %1916 = vmatpush2.msra.mxu0 0.0
      %1917 = vmatprep.subr.mxu0 0.0
      %1918 = vmatpush2.msra.mxu0 0.0
      %1919 = vmatprep.subr.mxu0 0.0
      %1920 = vmatpush2.msra.mxu0 0.0
      %1921 = vmatprep.subr.mxu0 0.0
      %1922 = vmatpush2.msra.mxu0 0.0
      %1923 = vmatprep.subr.mxu0 0.0
      %1924 = vmatpush2.msra.mxu0 0.0
      %1925 = vmatprep.subr.mxu0 0.0
      %1926 = vmatpush2.msra.mxu0 0.0
      %1927 = vmatprep.subr.mxu0 0.0
      %1928 = vmatpush2.msra.mxu0 0.0
      %1929 = vmatprep.subr.mxu0 0.0
      %1930 = vmatpush2.msra.mxu0 0.0
      %1931 = vmatprep.subr.mxu0 0.0
      %1932 = vmatpush2.msra.mxu0 0.0
      %1933 = vmatprep.subr.mxu0 0.0
      %1934 = vmatpush2.msra.mxu0 0.0
      %1935 = vmatprep.subr.mxu0 0.0
      %1936 = vmatpush2.msra.mxu0 0.0
      %1937 = vmatprep.subr.mxu0 0.0
      %1938 = vmatpush2.msra.mxu0 0.0
      %1939 = vmatprep.mubr.f32.mxu0 0.0
      %1940 = vmatmul.mubr.f32.gmra.mxu0 %v1846
      %v1941 = vpop.f32.mrf.mxu0
      %v1942 = vadd.f32 0.0, %v1941
      %v1943 = vpop.f32.mrf.mxu0
      %1944 = vmatprep.mubr.f32.mxu0 0.0
      %1945 = vmatmul.mubr.f32.gmra.mxu0 %v1849
      %v1946 = vpop.f32.mrf.mxu0
      %v1947 = vadd.f32 0.0, %v1946
      %v1948 = vpop.f32.mrf.mxu0
      %1949 = vmatprep.mubr.f32.mxu0 0.0
      %1950 = vmatmul.mubr.f32.gmra.mxu0 %v1852
      %v1951 = vpop.f32.mrf.mxu0
      %v1952 = vadd.f32 0.0, %v1951
      %v1953 = vpop.f32.mrf.mxu0
      %1954 = vmatprep.mubr.f32.mxu0 0.0
      %1955 = vmatmul.mubr.f32.gmra.mxu0 %v1855
      %v1956 = vpop.f32.mrf.mxu0
      %v1957 = vadd.f32 0.0, %v1956
      %v1958 = vpop.f32.mrf.mxu0
      %1959 = vmatprep.mubr.f32.mxu0 0.0
      %1960 = vmatmul.mubr.f32.gmra.mxu0 %v1858
      %v1961 = vpop.f32.mrf.mxu0
      %v1962 = vadd.f32 0.0, %v1961
      %v1963 = vpop.f32.mrf.mxu0
      %1964 = vmatprep.mubr.f32.mxu0 0.0
      %1965 = vmatmul.mubr.f32.gmra.mxu0 %v1861
      %v1966 = vpop.f32.mrf.mxu0
      %v1967 = vadd.f32 0.0, %v1966
      %v1968 = vpop.f32.mrf.mxu0
      %1969 = vmatprep.mubr.f32.mxu0 0.0
      %1970 = vmatmul.mubr.f32.gmra.mxu0 %v1864
      %v1971 = vpop.f32.mrf.mxu0
      %v1972 = vadd.f32 0.0, %v1971
      %v1973 = vpop.f32.mrf.mxu0
      %1974 = vmatprep.mubr.f32.mxu0 0.0
      %1975 = vmatmul.mubr.f32.gmra.mxu0 %v1867
      %v1976 = vpop.f32.mrf.mxu0
      %v1977 = vadd.f32 0.0, %v1976
      %v1978 = vpop.f32.mrf.mxu0
      %1979 = vmatprep.mubr.f32.mxu0 0.0
      %1980 = vmatmul.mubr.f32.gmra.mxu0 %v1870
      %v1981 = vpop.f32.mrf.mxu0
      %v1982 = vadd.f32 0.0, %v1981
      %v1983 = vpop.f32.mrf.mxu0
      %1984 = vdwg.mxu0
      %v1986 = vsel %vm394, %v1823, 0
      %v1989 = vsel %vm394, %v1824, 0
      %v1992 = vsel %vm394, %v1825, 0
      %v1995 = vsel %vm394, %v1826, 0
      %v1998 = vsel %vm394, %v1827, 0
      %v2001 = vsel %vm394, %v1828, 0
      %v2004 = vsel %vm394, %v1829, 0
      %v2007 = vsel %vm394, %v1830, 0
      %v2010 = vsel %vm394, %v1831, 0
      %v2013 = vsel %vm422, %v1832, 0
      %2015 = vmatprep.subr.mxu0 0.0
      %2016 = vmatpush1.msra.mxu0 0.0
      %2017 = vmatprep.subr.mxu0 0.0
      %2018 = vmatpush1.msra.mxu0 0.0
      %2019 = vmatprep.subr.mxu0 0.0
      %2020 = vmatpush1.msra.mxu0 0.0
      %2021 = vmatprep.subr.mxu0 0.0
      %2022 = vmatpush1.msra.mxu0 0.0
      %2023 = vmatprep.subr.mxu0 0.0
      %2024 = vmatpush1.msra.mxu0 0.0
      %2025 = vmatprep.subr.mxu0 0.0
      %2026 = vmatpush1.msra.mxu0 0.0
      %2027 = vmatprep.subr.mxu0 0.0
      %2028 = vmatpush1.msra.mxu0 0.0
      %2029 = vmatprep.subr.mxu0 0.0
      %2030 = vmatpush1.msra.mxu0 0.0
      %2031 = vmatprep.subr.mxu0 0.0
      %2032 = vmatpush1.msra.mxu0 0.0
      %2033 = vmatprep.subr.mxu0 0.0
      %2034 = vmatpush1.msra.mxu0 0.0
      %2035 = vmatprep.subr.mxu0 0.0
      %2036 = vmatpush1.msra.mxu0 0.0
      %2037 = vmatprep.subr.mxu0 0.0
      %2038 = vmatpush1.msra.mxu0 0.0
      %2039 = vmatprep.subr.mxu0 0.0
      %2040 = vmatpush1.msra.mxu0 0.0
      %2041 = vmatprep.subr.mxu0 0.0
      %2042 = vmatpush1.msra.mxu0 0.0
      %2043 = vmatprep.subr.mxu0 0.0
      %2044 = vmatpush1.msra.mxu0 0.0
      %2045 = vmatprep.subr.mxu0 0.0
      %2046 = vmatpush1.msra.mxu0 %v2013
      %2047 = vmatprep.subr.mxu0 0.0
      %2048 = vmatpush2.msra.mxu0 0.0
      %2049 = vmatprep.subr.mxu0 0.0
      %2050 = vmatpush2.msra.mxu0 0.0
      %2051 = vmatprep.subr.mxu0 0.0
      %2052 = vmatpush2.msra.mxu0 0.0
      %2053 = vmatprep.subr.mxu0 0.0
      %2054 = vmatpush2.msra.mxu0 0.0
      %2055 = vmatprep.subr.mxu0 0.0
      %2056 = vmatpush2.msra.mxu0 0.0
      %2057 = vmatprep.subr.mxu0 0.0
      %2058 = vmatpush2.msra.mxu0 0.0
      %2059 = vmatprep.subr.mxu0 0.0
      %2060 = vmatpush2.msra.mxu0 0.0
      %2061 = vmatprep.subr.mxu0 0.0
      %2062 = vmatpush2.msra.mxu0 0.0
      %2063 = vmatprep.subr.mxu0 0.0
      %2064 = vmatpush2.msra.mxu0 0.0
      %2065 = vmatprep.subr.mxu0 0.0
      %2066 = vmatpush2.msra.mxu0 0.0
      %2067 = vmatprep.subr.mxu0 0.0
      %2068 = vmatpush2.msra.mxu0 0.0
      %2069 = vmatprep.subr.mxu0 0.0
      %2070 = vmatpush2.msra.mxu0 0.0
      %2071 = vmatprep.subr.mxu0 0.0
      %2072 = vmatpush2.msra.mxu0 0.0
      %2073 = vmatprep.subr.mxu0 0.0
      %2074 = vmatpush2.msra.mxu0 0.0
      %2075 = vmatprep.subr.mxu0 0.0
      %2076 = vmatpush2.msra.mxu0 0.0
      %2077 = vmatprep.subr.mxu0 0.0
      %2078 = vmatpush2.msra.mxu0 0.0
      %2079 = vmatprep.mubr.f32.mxu0 0.0
      %2080 = vmatmul.mubr.f32.gmra.mxu0 %v1986
      %v2081 = vpop.f32.mrf.mxu0
      %v2082 = vadd.f32 %v1942, %v2081
      %v2083 = vpop.f32.mrf.mxu0
      %2084 = vmatprep.mubr.f32.mxu0 0.0
      %2085 = vmatmul.mubr.f32.gmra.mxu0 %v1989
      %v2086 = vpop.f32.mrf.mxu0
      %v2087 = vadd.f32 %v1947, %v2086
      %v2088 = vpop.f32.mrf.mxu0
      %2089 = vmatprep.mubr.f32.mxu0 0.0
      %2090 = vmatmul.mubr.f32.gmra.mxu0 %v1992
      %v2091 = vpop.f32.mrf.mxu0
      %v2092 = vadd.f32 %v1952, %v2091
      %v2093 = vpop.f32.mrf.mxu0
      %2094 = vmatprep.mubr.f32.mxu0 0.0
      %2095 = vmatmul.mubr.f32.gmra.mxu0 %v1995
      %v2096 = vpop.f32.mrf.mxu0
      %v2097 = vadd.f32 %v1957, %v2096
      %v2098 = vpop.f32.mrf.mxu0
      %2099 = vmatprep.mubr.f32.mxu0 0.0
      %2100 = vmatmul.mubr.f32.gmra.mxu0 %v1998
      %v2101 = vpop.f32.mrf.mxu0
      %v2102 = vadd.f32 %v1962, %v2101
      %v2103 = vpop.f32.mrf.mxu0
      %2104 = vmatprep.mubr.f32.mxu0 0.0
      %2105 = vmatmul.mubr.f32.gmra.mxu0 %v2001
      %v2106 = vpop.f32.mrf.mxu0
      %v2107 = vadd.f32 %v1967, %v2106
      %v2108 = vpop.f32.mrf.mxu0
      %2109 = vmatprep.mubr.f32.mxu0 0.0
      %2110 = vmatmul.mubr.f32.gmra.mxu0 %v2004
      %v2111 = vpop.f32.mrf.mxu0
      %v2112 = vadd.f32 %v1972, %v2111
      %v2113 = vpop.f32.mrf.mxu0
      %2114 = vmatprep.mubr.f32.mxu0 0.0
      %2115 = vmatmul.mubr.f32.gmra.mxu0 %v2007
      %v2116 = vpop.f32.mrf.mxu0
      %v2117 = vadd.f32 %v1977, %v2116
      %v2118 = vpop.f32.mrf.mxu0
      %2119 = vmatprep.mubr.f32.mxu0 0.0
      %2120 = vmatmul.mubr.f32.gmra.mxu0 %v2010
      %v2121 = vpop.f32.mrf.mxu0
      %v2122 = vadd.f32 %v1982, %v2121
      %v2123 = vpop.f32.mrf.mxu0
      %2124 = vdwg.mxu0
      %v2125 = vld [vmem:[%s353 + $0x1] sm:$0xff]
      %v2126 = vld [vmem:[%s353 + $0x9] sm:$0xff]
      %v2127 = vld [vmem:[%s353 + $0x11] sm:$0xff]
      %v2128 = vld [vmem:[%s353 + $0x19] sm:$0xff]
      %v2129 = vld [vmem:[%s353 + $0x21] sm:$0xff]
      %v2130 = vld [vmem:[%s353 + $0x29] sm:$0xff]
      %v2131 = vld [vmem:[%s353 + $0x31] sm:$0xff]
      %v2132 = vld [vmem:[%s353 + $0x39] sm:$0xff]
      %v2133 = vld [vmem:[%s353 + $0x41] sm:$0xff]
      %s2134 = scalar_lea.vmem %s4, 8
      %v2135 = vld [vmem:[%s2134] sm:$0xf]
      %v2137 = vsel %vm394, %v2125, 0
      %v2140 = vsel %vm394, %v2126, 0
      %v2143 = vsel %vm394, %v2127, 0
      %v2146 = vsel %vm394, %v2128, 0
      %v2149 = vsel %vm394, %v2129, 0
      %v2152 = vsel %vm394, %v2130, 0
      %v2155 = vsel %vm394, %v2131, 0
      %v2158 = vsel %vm394, %v2132, 0
      %v2161 = vsel %vm394, %v2133, 0
      %v2164 = vsel %vm422, %v2135, 0
      %2166 = vmatprep.subr.mxu0 0.0
      %2167 = vmatpush1.msra.mxu0 0.0
      %2168 = vmatprep.subr.mxu0 0.0
      %2169 = vmatpush1.msra.mxu0 0.0
      %2170 = vmatprep.subr.mxu0 0.0
      %2171 = vmatpush1.msra.mxu0 0.0
      %2172 = vmatprep.subr.mxu0 0.0
      %2173 = vmatpush1.msra.mxu0 0.0
      %2174 = vmatprep.subr.mxu0 0.0
      %2175 = vmatpush1.msra.mxu0 0.0
      %2176 = vmatprep.subr.mxu0 0.0
      %2177 = vmatpush1.msra.mxu0 0.0
      %2178 = vmatprep.subr.mxu0 0.0
      %2179 = vmatpush1.msra.mxu0 0.0
      %2180 = vmatprep.subr.mxu0 0.0
      %2181 = vmatpush1.msra.mxu0 0.0
      %2182 = vmatprep.subr.mxu0 0.0
      %2183 = vmatpush1.msra.mxu0 0.0
      %2184 = vmatprep.subr.mxu0 0.0
      %2185 = vmatpush1.msra.mxu0 0.0
      %2186 = vmatprep.subr.mxu0 0.0
      %2187 = vmatpush1.msra.mxu0 0.0
      %2188 = vmatprep.subr.mxu0 0.0
      %2189 = vmatpush1.msra.mxu0 0.0
      %2190 = vmatprep.subr.mxu0 0.0
      %2191 = vmatpush1.msra.mxu0 0.0
      %2192 = vmatprep.subr.mxu0 0.0
      %2193 = vmatpush1.msra.mxu0 0.0
      %2194 = vmatprep.subr.mxu0 0.0
      %2195 = vmatpush1.msra.mxu0 0.0
      %2196 = vmatprep.subr.mxu0 0.0
      %2197 = vmatpush1.msra.mxu0 %v2164
      %2198 = vmatprep.subr.mxu0 0.0
      %2199 = vmatpush2.msra.mxu0 0.0
      %2200 = vmatprep.subr.mxu0 0.0
      %2201 = vmatpush2.msra.mxu0 0.0
      %2202 = vmatprep.subr.mxu0 0.0
      %2203 = vmatpush2.msra.mxu0 0.0
      %2204 = vmatprep.subr.mxu0 0.0
      %2205 = vmatpush2.msra.mxu0 0.0
      %2206 = vmatprep.subr.mxu0 0.0
      %2207 = vmatpush2.msra.mxu0 0.0
      %2208 = vmatprep.subr.mxu0 0.0
      %2209 = vmatpush2.msra.mxu0 0.0
      %2210 = vmatprep.subr.mxu0 0.0
      %2211 = vmatpush2.msra.mxu0 0.0
      %2212 = vmatprep.subr.mxu0 0.0
      %2213 = vmatpush2.msra.mxu0 0.0
      %2214 = vmatprep.subr.mxu0 0.0
      %2215 = vmatpush2.msra.mxu0 0.0
      %2216 = vmatprep.subr.mxu0 0.0
      %2217 = vmatpush2.msra.mxu0 0.0
      %2218 = vmatprep.subr.mxu0 0.0
      %2219 = vmatpush2.msra.mxu0 0.0
      %2220 = vmatprep.subr.mxu0 0.0
      %2221 = vmatpush2.msra.mxu0 0.0
      %2222 = vmatprep.subr.mxu0 0.0
      %2223 = vmatpush2.msra.mxu0 0.0
      %2224 = vmatprep.subr.mxu0 0.0
      %2225 = vmatpush2.msra.mxu0 0.0
      %2226 = vmatprep.subr.mxu0 0.0
      %2227 = vmatpush2.msra.mxu0 0.0
      %2228 = vmatprep.subr.mxu0 0.0
      %2229 = vmatpush2.msra.mxu0 0.0
      %2230 = vmatprep.mubr.f32.mxu0 0.0
      %2231 = vmatmul.mubr.f32.gmra.mxu0 %v2137
      %v2232 = vpop.f32.mrf.mxu0
      %v2233 = vadd.f32 0.0, %v2232
      %v2234 = vpop.f32.mrf.mxu0
      %2235 = vmatprep.mubr.f32.mxu0 0.0
      %2236 = vmatmul.mubr.f32.gmra.mxu0 %v2140
      %v2237 = vpop.f32.mrf.mxu0
      %v2238 = vadd.f32 0.0, %v2237
      %v2239 = vpop.f32.mrf.mxu0
      %2240 = vmatprep.mubr.f32.mxu0 0.0
      %2241 = vmatmul.mubr.f32.gmra.mxu0 %v2143
      %v2242 = vpop.f32.mrf.mxu0
      %v2243 = vadd.f32 0.0, %v2242
      %v2244 = vpop.f32.mrf.mxu0
      %2245 = vmatprep.mubr.f32.mxu0 0.0
      %2246 = vmatmul.mubr.f32.gmra.mxu0 %v2146
      %v2247 = vpop.f32.mrf.mxu0
      %v2248 = vadd.f32 0.0, %v2247
      %v2249 = vpop.f32.mrf.mxu0
      %2250 = vmatprep.mubr.f32.mxu0 0.0
      %2251 = vmatmul.mubr.f32.gmra.mxu0 %v2149
      %v2252 = vpop.f32.mrf.mxu0
      %v2253 = vadd.f32 0.0, %v2252
      %v2254 = vpop.f32.mrf.mxu0
      %2255 = vmatprep.mubr.f32.mxu0 0.0
      %2256 = vmatmul.mubr.f32.gmra.mxu0 %v2152
      %v2257 = vpop.f32.mrf.mxu0
      %v2258 = vadd.f32 0.0, %v2257
      %v2259 = vpop.f32.mrf.mxu0
      %2260 = vmatprep.mubr.f32.mxu0 0.0
      %2261 = vmatmul.mubr.f32.gmra.mxu0 %v2155
      %v2262 = vpop.f32.mrf.mxu0
      %v2263 = vadd.f32 0.0, %v2262
      %v2264 = vpop.f32.mrf.mxu0
      %2265 = vmatprep.mubr.f32.mxu0 0.0
      %2266 = vmatmul.mubr.f32.gmra.mxu0 %v2158
      %v2267 = vpop.f32.mrf.mxu0
      %v2268 = vadd.f32 0.0, %v2267
      %v2269 = vpop.f32.mrf.mxu0
      %2270 = vmatprep.mubr.f32.mxu0 0.0
      %2271 = vmatmul.mubr.f32.gmra.mxu0 %v2161
      %v2272 = vpop.f32.mrf.mxu0
      %v2273 = vadd.f32 0.0, %v2272
      %v2274 = vpop.f32.mrf.mxu0
      %2275 = vdwg.mxu0
      %v2276 = vadd.f32 %v2082, %v2233
      %v2277 = vadd.f32 %v2087, %v2238
      %v2278 = vadd.f32 %v2092, %v2243
      %v2279 = vadd.f32 %v2097, %v2248
      %v2280 = vadd.f32 %v2102, %v2253
      %v2281 = vadd.f32 %v2107, %v2258
      %v2282 = vadd.f32 %v2112, %v2263
      %v2283 = vadd.f32 %v2117, %v2268
      %v2284 = vadd.f32 %v2122, %v2273
      %s2285 = scalar_lea.vmem %s353, 176
      %v2286 = vld [vmem:[%s2285] sm:$0xff]
      %v2287 = vld [vmem:[%s2285 + $0x8] sm:$0xff]
      %v2288 = vld [vmem:[%s2285 + $0x10] sm:$0xff]
      %v2289 = vld [vmem:[%s2285 + $0x18] sm:$0xff]
      %v2290 = vld [vmem:[%s2285 + $0x20] sm:$0xff]
      %v2291 = vld [vmem:[%s2285 + $0x28] sm:$0xff]
      %v2292 = vld [vmem:[%s2285 + $0x30] sm:$0xff]
      %v2293 = vld [vmem:[%s2285 + $0x38] sm:$0xff]
      %v2294 = vld [vmem:[%s2285 + $0x40] sm:$0xff]
      %s2295 = scalar_lea.vmem %s4, 12
      %v2296 = vld [vmem:[%s2295] sm:$0xf]
      %v2298 = vsel %vm394, %v2286, 0
      %v2301 = vsel %vm394, %v2287, 0
      %v2304 = vsel %vm394, %v2288, 0
      %v2307 = vsel %vm394, %v2289, 0
      %v2310 = vsel %vm394, %v2290, 0
      %v2313 = vsel %vm394, %v2291, 0
      %v2316 = vsel %vm394, %v2292, 0
      %v2319 = vsel %vm394, %v2293, 0
      %v2322 = vsel %vm394, %v2294, 0
      %v2325 = vsel %vm422, %v2296, 0
      %2327 = vmatprep.subr.mxu0 0.0
      %2328 = vmatpush1.msra.mxu0 0.0
      %2329 = vmatprep.subr.mxu0 0.0
      %2330 = vmatpush1.msra.mxu0 0.0
      %2331 = vmatprep.subr.mxu0 0.0
      %2332 = vmatpush1.msra.mxu0 0.0
      %2333 = vmatprep.subr.mxu0 0.0
      %2334 = vmatpush1.msra.mxu0 0.0
      %2335 = vmatprep.subr.mxu0 0.0
      %2336 = vmatpush1.msra.mxu0 0.0
      %2337 = vmatprep.subr.mxu0 0.0
      %2338 = vmatpush1.msra.mxu0 0.0
      %2339 = vmatprep.subr.mxu0 0.0
      %2340 = vmatpush1.msra.mxu0 0.0
      %2341 = vmatprep.subr.mxu0 0.0
      %2342 = vmatpush1.msra.mxu0 0.0
      %2343 = vmatprep.subr.mxu0 0.0
      %2344 = vmatpush1.msra.mxu0 0.0
      %2345 = vmatprep.subr.mxu0 0.0
      %2346 = vmatpush1.msra.mxu0 0.0
      %2347 = vmatprep.subr.mxu0 0.0
      %2348 = vmatpush1.msra.mxu0 0.0
      %2349 = vmatprep.subr.mxu0 0.0
      %2350 = vmatpush1.msra.mxu0 0.0
      %2351 = vmatprep.subr.mxu0 0.0
      %2352 = vmatpush1.msra.mxu0 0.0
      %2353 = vmatprep.subr.mxu0 0.0
      %2354 = vmatpush1.msra.mxu0 0.0
      %2355 = vmatprep.subr.mxu0 0.0
      %2356 = vmatpush1.msra.mxu0 0.0
      %2357 = vmatprep.subr.mxu0 0.0
      %2358 = vmatpush1.msra.mxu0 %v2325
      %2359 = vmatprep.subr.mxu0 0.0
      %2360 = vmatpush2.msra.mxu0 0.0
      %2361 = vmatprep.subr.mxu0 0.0
      %2362 = vmatpush2.msra.mxu0 0.0
      %2363 = vmatprep.subr.mxu0 0.0
      %2364 = vmatpush2.msra.mxu0 0.0
      %2365 = vmatprep.subr.mxu0 0.0
      %2366 = vmatpush2.msra.mxu0 0.0
      %2367 = vmatprep.subr.mxu0 0.0
      %2368 = vmatpush2.msra.mxu0 0.0
      %2369 = vmatprep.subr.mxu0 0.0
      %2370 = vmatpush2.msra.mxu0 0.0
      %2371 = vmatprep.subr.mxu0 0.0
      %2372 = vmatpush2.msra.mxu0 0.0
      %2373 = vmatprep.subr.mxu0 0.0
      %2374 = vmatpush2.msra.mxu0 0.0
      %2375 = vmatprep.subr.mxu0 0.0
      %2376 = vmatpush2.msra.mxu0 0.0
      %2377 = vmatprep.subr.mxu0 0.0
      %2378 = vmatpush2.msra.mxu0 0.0
      %2379 = vmatprep.subr.mxu0 0.0
      %2380 = vmatpush2.msra.mxu0 0.0
      %2381 = vmatprep.subr.mxu0 0.0
      %2382 = vmatpush2.msra.mxu0 0.0
      %2383 = vmatprep.subr.mxu0 0.0
      %2384 = vmatpush2.msra.mxu0 0.0
      %2385 = vmatprep.subr.mxu0 0.0
      %2386 = vmatpush2.msra.mxu0 0.0
      %2387 = vmatprep.subr.mxu0 0.0
      %2388 = vmatpush2.msra.mxu0 0.0
      %2389 = vmatprep.subr.mxu0 0.0
      %2390 = vmatpush2.msra.mxu0 0.0
      %2391 = vmatprep.mubr.f32.mxu0 0.0
      %2392 = vmatmul.mubr.f32.gmra.mxu0 %v2298
      %v2393 = vpop.f32.mrf.mxu0
      %v2394 = vadd.f32 0.0, %v2393
      %v2395 = vpop.f32.mrf.mxu0
      %2396 = vmatprep.mubr.f32.mxu0 0.0
      %2397 = vmatmul.mubr.f32.gmra.mxu0 %v2301
      %v2398 = vpop.f32.mrf.mxu0
      %v2399 = vadd.f32 0.0, %v2398
      %v2400 = vpop.f32.mrf.mxu0
      %2401 = vmatprep.mubr.f32.mxu0 0.0
      %2402 = vmatmul.mubr.f32.gmra.mxu0 %v2304
      %v2403 = vpop.f32.mrf.mxu0
      %v2404 = vadd.f32 0.0, %v2403
      %v2405 = vpop.f32.mrf.mxu0
      %2406 = vmatprep.mubr.f32.mxu0 0.0
      %2407 = vmatmul.mubr.f32.gmra.mxu0 %v2307
      %v2408 = vpop.f32.mrf.mxu0
      %v2409 = vadd.f32 0.0, %v2408
      %v2410 = vpop.f32.mrf.mxu0
      %2411 = vmatprep.mubr.f32.mxu0 0.0
      %2412 = vmatmul.mubr.f32.gmra.mxu0 %v2310
      %v2413 = vpop.f32.mrf.mxu0
      %v2414 = vadd.f32 0.0, %v2413
      %v2415 = vpop.f32.mrf.mxu0
      %2416 = vmatprep.mubr.f32.mxu0 0.0
      %2417 = vmatmul.mubr.f32.gmra.mxu0 %v2313
      %v2418 = vpop.f32.mrf.mxu0
      %v2419 = vadd.f32 0.0, %v2418
      %v2420 = vpop.f32.mrf.mxu0
      %2421 = vmatprep.mubr.f32.mxu0 0.0
      %2422 = vmatmul.mubr.f32.gmra.mxu0 %v2316
      %v2423 = vpop.f32.mrf.mxu0
      %v2424 = vadd.f32 0.0, %v2423
      %v2425 = vpop.f32.mrf.mxu0
      %2426 = vmatprep.mubr.f32.mxu0 0.0
      %2427 = vmatmul.mubr.f32.gmra.mxu0 %v2319
      %v2428 = vpop.f32.mrf.mxu0
      %v2429 = vadd.f32 0.0, %v2428
      %v2430 = vpop.f32.mrf.mxu0
      %2431 = vmatprep.mubr.f32.mxu0 0.0
      %2432 = vmatmul.mubr.f32.gmra.mxu0 %v2322
      %v2433 = vpop.f32.mrf.mxu0
      %v2434 = vadd.f32 0.0, %v2433
      %v2435 = vpop.f32.mrf.mxu0
      %2436 = vdwg.mxu0
      %v2437 = vadd.f32 %v2276, %v2394
      %v2438 = vadd.f32 %v2277, %v2399
      %v2439 = vadd.f32 %v2278, %v2404
      %v2440 = vadd.f32 %v2279, %v2409
      %v2441 = vadd.f32 %v2280, %v2414
      %v2442 = vadd.f32 %v2281, %v2419
      %v2443 = vadd.f32 %v2282, %v2424
      %v2444 = vadd.f32 %v2283, %v2429
      %v2445 = vadd.f32 %v2284, %v2434
      %s2446 = scalar_lea.vmem %s353, 264
      %v2447 = vld [vmem:[%s2446] sm:$0xff]
      %v2448 = vld [vmem:[%s2446 + $0x8] sm:$0xff]
      %v2449 = vld [vmem:[%s2446 + $0x10] sm:$0xff]
      %v2450 = vld [vmem:[%s2446 + $0x18] sm:$0xff]
      %v2451 = vld [vmem:[%s2446 + $0x20] sm:$0xff]
      %v2452 = vld [vmem:[%s2446 + $0x28] sm:$0xff]
      %v2453 = vld [vmem:[%s2446 + $0x30] sm:$0xff]
      %v2454 = vld [vmem:[%s2446 + $0x38] sm:$0xff]
      %v2455 = vld [vmem:[%s2446 + $0x40] sm:$0xff]
      %s2456 = scalar_lea.vmem %s4, 16
      %v2457 = vld [vmem:[%s2456] sm:$0xf]
      %v2459 = vsel %vm394, %v2447, 0
      %v2462 = vsel %vm394, %v2448, 0
      %v2465 = vsel %vm394, %v2449, 0
      %v2468 = vsel %vm394, %v2450, 0
      %v2471 = vsel %vm394, %v2451, 0
      %v2474 = vsel %vm394, %v2452, 0
      %v2477 = vsel %vm394, %v2453, 0
      %v2480 = vsel %vm394, %v2454, 0
      %v2483 = vsel %vm394, %v2455, 0
      %v2486 = vsel %vm422, %v2457, 0
      %2488 = vmatprep.subr.mxu0 0.0
      %2489 = vmatpush1.msra.mxu0 0.0
      %2490 = vmatprep.subr.mxu0 0.0
      %2491 = vmatpush1.msra.mxu0 0.0
      %2492 = vmatprep.subr.mxu0 0.0
      %2493 = vmatpush1.msra.mxu0 0.0
      %2494 = vmatprep.subr.mxu0 0.0
      %2495 = vmatpush1.msra.mxu0 0.0
      %2496 = vmatprep.subr.mxu0 0.0
      %2497 = vmatpush1.msra.mxu0 0.0
      %2498 = vmatprep.subr.mxu0 0.0
      %2499 = vmatpush1.msra.mxu0 0.0
      %2500 = vmatprep.subr.mxu0 0.0
      %2501 = vmatpush1.msra.mxu0 0.0
      %2502 = vmatprep.subr.mxu0 0.0
      %2503 = vmatpush1.msra.mxu0 0.0
      %2504 = vmatprep.subr.mxu0 0.0
      %2505 = vmatpush1.msra.mxu0 0.0
      %2506 = vmatprep.subr.mxu0 0.0
      %2507 = vmatpush1.msra.mxu0 0.0
      %2508 = vmatprep.subr.mxu0 0.0
      %2509 = vmatpush1.msra.mxu0 0.0
      %2510 = vmatprep.subr.mxu0 0.0
      %2511 = vmatpush1.msra.mxu0 0.0
      %2512 = vmatprep.subr.mxu0 0.0
      %2513 = vmatpush1.msra.mxu0 0.0
      %2514 = vmatprep.subr.mxu0 0.0
      %2515 = vmatpush1.msra.mxu0 0.0
      %2516 = vmatprep.subr.mxu0 0.0
      %2517 = vmatpush1.msra.mxu0 0.0
      %2518 = vmatprep.subr.mxu0 0.0
      %2519 = vmatpush1.msra.mxu0 %v2486
      %2520 = vmatprep.subr.mxu0 0.0
      %2521 = vmatpush2.msra.mxu0 0.0
      %2522 = vmatprep.subr.mxu0 0.0
      %2523 = vmatpush2.msra.mxu0 0.0
      %2524 = vmatprep.subr.mxu0 0.0
      %2525 = vmatpush2.msra.mxu0 0.0
      %2526 = vmatprep.subr.mxu0 0.0
      %2527 = vmatpush2.msra.mxu0 0.0
      %2528 = vmatprep.subr.mxu0 0.0
      %2529 = vmatpush2.msra.mxu0 0.0
      %2530 = vmatprep.subr.mxu0 0.0
      %2531 = vmatpush2.msra.mxu0 0.0
      %2532 = vmatprep.subr.mxu0 0.0
      %2533 = vmatpush2.msra.mxu0 0.0
      %2534 = vmatprep.subr.mxu0 0.0
      %2535 = vmatpush2.msra.mxu0 0.0
      %2536 = vmatprep.subr.mxu0 0.0
      %2537 = vmatpush2.msra.mxu0 0.0
      %2538 = vmatprep.subr.mxu0 0.0
      %2539 = vmatpush2.msra.mxu0 0.0
      %2540 = vmatprep.subr.mxu0 0.0
      %2541 = vmatpush2.msra.mxu0 0.0
      %2542 = vmatprep.subr.mxu0 0.0
      %2543 = vmatpush2.msra.mxu0 0.0
      %2544 = vmatprep.subr.mxu0 0.0
      %2545 = vmatpush2.msra.mxu0 0.0
      %2546 = vmatprep.subr.mxu0 0.0
      %2547 = vmatpush2.msra.mxu0 0.0
      %2548 = vmatprep.subr.mxu0 0.0
      %2549 = vmatpush2.msra.mxu0 0.0
      %2550 = vmatprep.subr.mxu0 0.0
      %2551 = vmatpush2.msra.mxu0 0.0
      %2552 = vmatprep.mubr.f32.mxu0 0.0
      %2553 = vmatmul.mubr.f32.gmra.mxu0 %v2459
      %v2554 = vpop.f32.mrf.mxu0
      %v2555 = vadd.f32 0.0, %v2554
      %v2556 = vpop.f32.mrf.mxu0
      %2557 = vmatprep.mubr.f32.mxu0 0.0
      %2558 = vmatmul.mubr.f32.gmra.mxu0 %v2462
      %v2559 = vpop.f32.mrf.mxu0
      %v2560 = vadd.f32 0.0, %v2559
      %v2561 = vpop.f32.mrf.mxu0
      %2562 = vmatprep.mubr.f32.mxu0 0.0
      %2563 = vmatmul.mubr.f32.gmra.mxu0 %v2465
      %v2564 = vpop.f32.mrf.mxu0
      %v2565 = vadd.f32 0.0, %v2564
      %v2566 = vpop.f32.mrf.mxu0
      %2567 = vmatprep.mubr.f32.mxu0 0.0
      %2568 = vmatmul.mubr.f32.gmra.mxu0 %v2468
      %v2569 = vpop.f32.mrf.mxu0
      %v2570 = vadd.f32 0.0, %v2569
      %v2571 = vpop.f32.mrf.mxu0
      %2572 = vmatprep.mubr.f32.mxu0 0.0
      %2573 = vmatmul.mubr.f32.gmra.mxu0 %v2471
      %v2574 = vpop.f32.mrf.mxu0
      %v2575 = vadd.f32 0.0, %v2574
      %v2576 = vpop.f32.mrf.mxu0
      %2577 = vmatprep.mubr.f32.mxu0 0.0
      %2578 = vmatmul.mubr.f32.gmra.mxu0 %v2474
      %v2579 = vpop.f32.mrf.mxu0
      %v2580 = vadd.f32 0.0, %v2579
      %v2581 = vpop.f32.mrf.mxu0
      %2582 = vmatprep.mubr.f32.mxu0 0.0
      %2583 = vmatmul.mubr.f32.gmra.mxu0 %v2477
      %v2584 = vpop.f32.mrf.mxu0
      %v2585 = vadd.f32 0.0, %v2584
      %v2586 = vpop.f32.mrf.mxu0
      %2587 = vmatprep.mubr.f32.mxu0 0.0
      %2588 = vmatmul.mubr.f32.gmra.mxu0 %v2480
      %v2589 = vpop.f32.mrf.mxu0
      %v2590 = vadd.f32 0.0, %v2589
      %v2591 = vpop.f32.mrf.mxu0
      %2592 = vmatprep.mubr.f32.mxu0 0.0
      %2593 = vmatmul.mubr.f32.gmra.mxu0 %v2483
      %v2594 = vpop.f32.mrf.mxu0
      %v2595 = vadd.f32 0.0, %v2594
      %v2596 = vpop.f32.mrf.mxu0
      %2597 = vdwg.mxu0
      %v2598 = vadd.f32 %v2437, %v2555
      %v2599 = vadd.f32 %v2438, %v2560
      %v2600 = vadd.f32 %v2439, %v2565
      %v2601 = vadd.f32 %v2440, %v2570
      %v2602 = vadd.f32 %v2441, %v2575
      %v2603 = vadd.f32 %v2442, %v2580
      %v2604 = vadd.f32 %v2443, %v2585
      %v2605 = vadd.f32 %v2444, %v2590
      %v2606 = vadd.f32 %v2445, %v2595
      %v2607 = vld [vmem:[%s2285 + $0x1] sm:$0xff]
      %v2608 = vld [vmem:[%s2285 + $0x9] sm:$0xff]
      %v2609 = vld [vmem:[%s2285 + $0x11] sm:$0xff]
      %v2610 = vld [vmem:[%s2285 + $0x19] sm:$0xff]
      %v2611 = vld [vmem:[%s2285 + $0x21] sm:$0xff]
      %v2612 = vld [vmem:[%s2285 + $0x29] sm:$0xff]
      %v2613 = vld [vmem:[%s2285 + $0x31] sm:$0xff]
      %v2614 = vld [vmem:[%s2285 + $0x39] sm:$0xff]
      %v2615 = vld [vmem:[%s2285 + $0x41] sm:$0xff]
      %s2616 = scalar_lea.vmem %s4, 20
      %v2617 = vld [vmem:[%s2616] sm:$0xf]
      %v2619 = vsel %vm394, %v2607, 0
      %v2622 = vsel %vm394, %v2608, 0
      %v2625 = vsel %vm394, %v2609, 0
      %v2628 = vsel %vm394, %v2610, 0
      %v2631 = vsel %vm394, %v2611, 0
      %v2634 = vsel %vm394, %v2612, 0
      %v2637 = vsel %vm394, %v2613, 0
      %v2640 = vsel %vm394, %v2614, 0
      %v2643 = vsel %vm394, %v2615, 0
      %v2646 = vsel %vm422, %v2617, 0
      %2648 = vmatprep.subr.mxu0 0.0
      %2649 = vmatpush1.msra.mxu0 0.0
      %2650 = vmatprep.subr.mxu0 0.0
      %2651 = vmatpush1.msra.mxu0 0.0
      %2652 = vmatprep.subr.mxu0 0.0
      %2653 = vmatpush1.msra.mxu0 0.0
      %2654 = vmatprep.subr.mxu0 0.0
      %2655 = vmatpush1.msra.mxu0 0.0
      %2656 = vmatprep.subr.mxu0 0.0
      %2657 = vmatpush1.msra.mxu0 0.0
      %2658 = vmatprep.subr.mxu0 0.0
      %2659 = vmatpush1.msra.mxu0 0.0
      %2660 = vmatprep.subr.mxu0 0.0
      %2661 = vmatpush1.msra.mxu0 0.0
      %2662 = vmatprep.subr.mxu0 0.0
      %2663 = vmatpush1.msra.mxu0 0.0
      %2664 = vmatprep.subr.mxu0 0.0
      %2665 = vmatpush1.msra.mxu0 0.0
      %2666 = vmatprep.subr.mxu0 0.0
      %2667 = vmatpush1.msra.mxu0 0.0
      %2668 = vmatprep.subr.mxu0 0.0
      %2669 = vmatpush1.msra.mxu0 0.0
      %2670 = vmatprep.subr.mxu0 0.0
      %2671 = vmatpush1.msra.mxu0 0.0
      %2672 = vmatprep.subr.mxu0 0.0
      %2673 = vmatpush1.msra.mxu0 0.0
      %2674 = vmatprep.subr.mxu0 0.0
      %2675 = vmatpush1.msra.mxu0 0.0
      %2676 = vmatprep.subr.mxu0 0.0
      %2677 = vmatpush1.msra.mxu0 0.0
      %2678 = vmatprep.subr.mxu0 0.0
      %2679 = vmatpush1.msra.mxu0 %v2646
      %2680 = vmatprep.subr.mxu0 0.0
      %2681 = vmatpush2.msra.mxu0 0.0
      %2682 = vmatprep.subr.mxu0 0.0
      %2683 = vmatpush2.msra.mxu0 0.0
      %2684 = vmatprep.subr.mxu0 0.0
      %2685 = vmatpush2.msra.mxu0 0.0
      %2686 = vmatprep.subr.mxu0 0.0
      %2687 = vmatpush2.msra.mxu0 0.0
      %2688 = vmatprep.subr.mxu0 0.0
      %2689 = vmatpush2.msra.mxu0 0.0
      %2690 = vmatprep.subr.mxu0 0.0
      %2691 = vmatpush2.msra.mxu0 0.0
      %2692 = vmatprep.subr.mxu0 0.0
      %2693 = vmatpush2.msra.mxu0 0.0
      %2694 = vmatprep.subr.mxu0 0.0
      %2695 = vmatpush2.msra.mxu0 0.0
      %2696 = vmatprep.subr.mxu0 0.0
      %2697 = vmatpush2.msra.mxu0 0.0
      %2698 = vmatprep.subr.mxu0 0.0
      %2699 = vmatpush2.msra.mxu0 0.0
      %2700 = vmatprep.subr.mxu0 0.0
      %2701 = vmatpush2.msra.mxu0 0.0
      %2702 = vmatprep.subr.mxu0 0.0
      %2703 = vmatpush2.msra.mxu0 0.0
      %2704 = vmatprep.subr.mxu0 0.0
      %2705 = vmatpush2.msra.mxu0 0.0
      %2706 = vmatprep.subr.mxu0 0.0
      %2707 = vmatpush2.msra.mxu0 0.0
      %2708 = vmatprep.subr.mxu0 0.0
      %2709 = vmatpush2.msra.mxu0 0.0
      %2710 = vmatprep.subr.mxu0 0.0
      %2711 = vmatpush2.msra.mxu0 0.0
      %2712 = vmatprep.mubr.f32.mxu0 0.0
      %2713 = vmatmul.mubr.f32.gmra.mxu0 %v2619
      %v2714 = vpop.f32.mrf.mxu0
      %v2715 = vadd.f32 0.0, %v2714
      %v2716 = vpop.f32.mrf.mxu0
      %2717 = vmatprep.mubr.f32.mxu0 0.0
      %2718 = vmatmul.mubr.f32.gmra.mxu0 %v2622
      %v2719 = vpop.f32.mrf.mxu0
      %v2720 = vadd.f32 0.0, %v2719
      %v2721 = vpop.f32.mrf.mxu0
      %2722 = vmatprep.mubr.f32.mxu0 0.0
      %2723 = vmatmul.mubr.f32.gmra.mxu0 %v2625
      %v2724 = vpop.f32.mrf.mxu0
      %v2725 = vadd.f32 0.0, %v2724
      %v2726 = vpop.f32.mrf.mxu0
      %2727 = vmatprep.mubr.f32.mxu0 0.0
      %2728 = vmatmul.mubr.f32.gmra.mxu0 %v2628
      %v2729 = vpop.f32.mrf.mxu0
      %v2730 = vadd.f32 0.0, %v2729
      %v2731 = vpop.f32.mrf.mxu0
      %2732 = vmatprep.mubr.f32.mxu0 0.0
      %2733 = vmatmul.mubr.f32.gmra.mxu0 %v2631
      %v2734 = vpop.f32.mrf.mxu0
      %v2735 = vadd.f32 0.0, %v2734
      %v2736 = vpop.f32.mrf.mxu0
      %2737 = vmatprep.mubr.f32.mxu0 0.0
      %2738 = vmatmul.mubr.f32.gmra.mxu0 %v2634
      %v2739 = vpop.f32.mrf.mxu0
      %v2740 = vadd.f32 0.0, %v2739
      %v2741 = vpop.f32.mrf.mxu0
      %2742 = vmatprep.mubr.f32.mxu0 0.0
      %2743 = vmatmul.mubr.f32.gmra.mxu0 %v2637
      %v2744 = vpop.f32.mrf.mxu0
      %v2745 = vadd.f32 0.0, %v2744
      %v2746 = vpop.f32.mrf.mxu0
      %2747 = vmatprep.mubr.f32.mxu0 0.0
      %2748 = vmatmul.mubr.f32.gmra.mxu0 %v2640
      %v2749 = vpop.f32.mrf.mxu0
      %v2750 = vadd.f32 0.0, %v2749
      %v2751 = vpop.f32.mrf.mxu0
      %2752 = vmatprep.mubr.f32.mxu0 0.0
      %2753 = vmatmul.mubr.f32.gmra.mxu0 %v2643
      %v2754 = vpop.f32.mrf.mxu0
      %v2755 = vadd.f32 0.0, %v2754
      %v2756 = vpop.f32.mrf.mxu0
      %2757 = vdwg.mxu0
      %v2758 = vadd.f32 %v2598, %v2715
      %v2759 = vadd.f32 %v2599, %v2720
      %v2760 = vadd.f32 %v2600, %v2725
      %v2761 = vadd.f32 %v2601, %v2730
      %v2762 = vadd.f32 %v2602, %v2735
      %v2763 = vadd.f32 %v2603, %v2740
      %v2764 = vadd.f32 %v2604, %v2745
      %v2765 = vadd.f32 %v2605, %v2750
      %v2766 = vadd.f32 %v2606, %v2755
      %v2767 = vld [vmem:[%s353 + $0x9] sm:$0xff]
      %v2768 = vld [vmem:[%s353 + $0x11] sm:$0xff]
      %v2769 = vld [vmem:[%s353 + $0x19] sm:$0xff]
      %v2770 = vld [vmem:[%s353 + $0x21] sm:$0xff]
      %v2771 = vld [vmem:[%s353 + $0x29] sm:$0xff]
      %v2772 = vld [vmem:[%s353 + $0x31] sm:$0xff]
      %v2773 = vld [vmem:[%s353 + $0x39] sm:$0xff]
      %v2774 = vld [vmem:[%s353 + $0x41] sm:$0xff]
      %v2775 = vld [vmem:[%s353 + $0x49] sm:$0xff]
      %s2776 = scalar_lea.vmem %s4, 24
      %v2777 = vld [vmem:[%s2776] sm:$0xf]
      %v2779 = vsel %vm394, %v2767, 0
      %v2782 = vsel %vm394, %v2768, 0
      %v2785 = vsel %vm394, %v2769, 0
      %v2788 = vsel %vm394, %v2770, 0
      %v2791 = vsel %vm394, %v2771, 0
      %v2794 = vsel %vm394, %v2772, 0
      %v2797 = vsel %vm394, %v2773, 0
      %v2800 = vsel %vm394, %v2774, 0
      %v2803 = vsel %vm394, %v2775, 0
      %v2806 = vsel %vm422, %v2777, 0
      %2808 = vmatprep.subr.mxu0 0.0
      %2809 = vmatpush1.msra.mxu0 0.0
      %2810 = vmatprep.subr.mxu0 0.0
      %2811 = vmatpush1.msra.mxu0 0.0
      %2812 = vmatprep.subr.mxu0 0.0
      %2813 = vmatpush1.msra.mxu0 0.0
      %2814 = vmatprep.subr.mxu0 0.0
      %2815 = vmatpush1.msra.mxu0 0.0
      %2816 = vmatprep.subr.mxu0 0.0
      %2817 = vmatpush1.msra.mxu0 0.0
      %2818 = vmatprep.subr.mxu0 0.0
      %2819 = vmatpush1.msra.mxu0 0.0
      %2820 = vmatprep.subr.mxu0 0.0
      %2821 = vmatpush1.msra.mxu0 0.0
      %2822 = vmatprep.subr.mxu0 0.0
      %2823 = vmatpush1.msra.mxu0 0.0
      %2824 = vmatprep.subr.mxu0 0.0
      %2825 = vmatpush1.msra.mxu0 0.0
      %2826 = vmatprep.subr.mxu0 0.0
      %2827 = vmatpush1.msra.mxu0 0.0
      %2828 = vmatprep.subr.mxu0 0.0
      %2829 = vmatpush1.msra.mxu0 0.0
      %2830 = vmatprep.subr.mxu0 0.0
      %2831 = vmatpush1.msra.mxu0 0.0
      %2832 = vmatprep.subr.mxu0 0.0
      %2833 = vmatpush1.msra.mxu0 0.0
      %2834 = vmatprep.subr.mxu0 0.0
      %2835 = vmatpush1.msra.mxu0 0.0
      %2836 = vmatprep.subr.mxu0 0.0
      %2837 = vmatpush1.msra.mxu0 0.0
      %2838 = vmatprep.subr.mxu0 0.0
      %2839 = vmatpush1.msra.mxu0 %v2806
      %2840 = vmatprep.subr.mxu0 0.0
      %2841 = vmatpush2.msra.mxu0 0.0
      %2842 = vmatprep.subr.mxu0 0.0
      %2843 = vmatpush2.msra.mxu0 0.0
      %2844 = vmatprep.subr.mxu0 0.0
      %2845 = vmatpush2.msra.mxu0 0.0
      %2846 = vmatprep.subr.mxu0 0.0
      %2847 = vmatpush2.msra.mxu0 0.0
      %2848 = vmatprep.subr.mxu0 0.0
      %2849 = vmatpush2.msra.mxu0 0.0
      %2850 = vmatprep.subr.mxu0 0.0
      %2851 = vmatpush2.msra.mxu0 0.0
      %2852 = vmatprep.subr.mxu0 0.0
      %2853 = vmatpush2.msra.mxu0 0.0
      %2854 = vmatprep.subr.mxu0 0.0
      %2855 = vmatpush2.msra.mxu0 0.0
      %2856 = vmatprep.subr.mxu0 0.0
      %2857 = vmatpush2.msra.mxu0 0.0
      %2858 = vmatprep.subr.mxu0 0.0
      %2859 = vmatpush2.msra.mxu0 0.0
      %2860 = vmatprep.subr.mxu0 0.0
      %2861 = vmatpush2.msra.mxu0 0.0
      %2862 = vmatprep.subr.mxu0 0.0
      %2863 = vmatpush2.msra.mxu0 0.0
      %2864 = vmatprep.subr.mxu0 0.0
      %2865 = vmatpush2.msra.mxu0 0.0
      %2866 = vmatprep.subr.mxu0 0.0
      %2867 = vmatpush2.msra.mxu0 0.0
      %2868 = vmatprep.subr.mxu0 0.0
      %2869 = vmatpush2.msra.mxu0 0.0
      %2870 = vmatprep.subr.mxu0 0.0
      %2871 = vmatpush2.msra.mxu0 0.0
      %2872 = vmatprep.mubr.f32.mxu0 0.0
      %2873 = vmatmul.mubr.f32.gmra.mxu0 %v2779
      %v2874 = vpop.f32.mrf.mxu0
      %v2875 = vadd.f32 0.0, %v2874
      %v2876 = vpop.f32.mrf.mxu0
      %2877 = vmatprep.mubr.f32.mxu0 0.0
      %2878 = vmatmul.mubr.f32.gmra.mxu0 %v2782
      %v2879 = vpop.f32.mrf.mxu0
      %v2880 = vadd.f32 0.0, %v2879
      %v2881 = vpop.f32.mrf.mxu0
      %2882 = vmatprep.mubr.f32.mxu0 0.0
      %2883 = vmatmul.mubr.f32.gmra.mxu0 %v2785
      %v2884 = vpop.f32.mrf.mxu0
      %v2885 = vadd.f32 0.0, %v2884
      %v2886 = vpop.f32.mrf.mxu0
      %2887 = vmatprep.mubr.f32.mxu0 0.0
      %2888 = vmatmul.mubr.f32.gmra.mxu0 %v2788
      %v2889 = vpop.f32.mrf.mxu0
      %v2890 = vadd.f32 0.0, %v2889
      %v2891 = vpop.f32.mrf.mxu0
      %2892 = vmatprep.mubr.f32.mxu0 0.0
      %2893 = vmatmul.mubr.f32.gmra.mxu0 %v2791
      %v2894 = vpop.f32.mrf.mxu0
      %v2895 = vadd.f32 0.0, %v2894
      %v2896 = vpop.f32.mrf.mxu0
      %2897 = vmatprep.mubr.f32.mxu0 0.0
      %2898 = vmatmul.mubr.f32.gmra.mxu0 %v2794
      %v2899 = vpop.f32.mrf.mxu0
      %v2900 = vadd.f32 0.0, %v2899
      %v2901 = vpop.f32.mrf.mxu0
      %2902 = vmatprep.mubr.f32.mxu0 0.0
      %2903 = vmatmul.mubr.f32.gmra.mxu0 %v2797
      %v2904 = vpop.f32.mrf.mxu0
      %v2905 = vadd.f32 0.0, %v2904
      %v2906 = vpop.f32.mrf.mxu0
      %2907 = vmatprep.mubr.f32.mxu0 0.0
      %2908 = vmatmul.mubr.f32.gmra.mxu0 %v2800
      %v2909 = vpop.f32.mrf.mxu0
      %v2910 = vadd.f32 0.0, %v2909
      %v2911 = vpop.f32.mrf.mxu0
      %2912 = vmatprep.mubr.f32.mxu0 0.0
      %2913 = vmatmul.mubr.f32.gmra.mxu0 %v2803
      %v2914 = vpop.f32.mrf.mxu0
      %v2915 = vadd.f32 0.0, %v2914
      %v2916 = vpop.f32.mrf.mxu0
      %2917 = vdwg.mxu0
      %v2918 = vadd.f32 %v2758, %v2875
      %v2919 = vadd.f32 %v2759, %v2880
      %v2920 = vadd.f32 %v2760, %v2885
      %v2921 = vadd.f32 %v2761, %v2890
      %v2922 = vadd.f32 %v2762, %v2895
      %v2923 = vadd.f32 %v2763, %v2900
      %v2924 = vadd.f32 %v2764, %v2905
      %v2925 = vadd.f32 %v2765, %v2910
      %v2926 = vadd.f32 %v2766, %v2915
      %v2927 = vld [vmem:[%s1833 + $0x9] sm:$0xff]
      %v2928 = vld [vmem:[%s1833 + $0x11] sm:$0xff]
      %v2929 = vld [vmem:[%s1833 + $0x19] sm:$0xff]
      %v2930 = vld [vmem:[%s1833 + $0x21] sm:$0xff]
      %v2931 = vld [vmem:[%s1833 + $0x29] sm:$0xff]
      %v2932 = vld [vmem:[%s1833 + $0x31] sm:$0xff]
      %v2933 = vld [vmem:[%s1833 + $0x39] sm:$0xff]
      %v2934 = vld [vmem:[%s1833 + $0x41] sm:$0xff]
      %v2935 = vld [vmem:[%s1833 + $0x49] sm:$0xff]
      %s2936 = scalar_lea.vmem %s4, 28
      %v2937 = vld [vmem:[%s2936] sm:$0xf]
      %v2939 = vsel %vm394, %v2927, 0
      %v2942 = vsel %vm394, %v2928, 0
      %v2945 = vsel %vm394, %v2929, 0
      %v2948 = vsel %vm394, %v2930, 0
      %v2951 = vsel %vm394, %v2931, 0
      %v2954 = vsel %vm394, %v2932, 0
      %v2957 = vsel %vm394, %v2933, 0
      %v2960 = vsel %vm394, %v2934, 0
      %v2963 = vsel %vm394, %v2935, 0
      %v2966 = vsel %vm422, %v2937, 0
      %2968 = vmatprep.subr.mxu0 0.0
      %2969 = vmatpush1.msra.mxu0 0.0
      %2970 = vmatprep.subr.mxu0 0.0
      %2971 = vmatpush1.msra.mxu0 0.0
      %2972 = vmatprep.subr.mxu0 0.0
      %2973 = vmatpush1.msra.mxu0 0.0
      %2974 = vmatprep.subr.mxu0 0.0
      %2975 = vmatpush1.msra.mxu0 0.0
      %2976 = vmatprep.subr.mxu0 0.0
      %2977 = vmatpush1.msra.mxu0 0.0
      %2978 = vmatprep.subr.mxu0 0.0
      %2979 = vmatpush1.msra.mxu0 0.0
      %2980 = vmatprep.subr.mxu0 0.0
      %2981 = vmatpush1.msra.mxu0 0.0
      %2982 = vmatprep.subr.mxu0 0.0
      %2983 = vmatpush1.msra.mxu0 0.0
      %2984 = vmatprep.subr.mxu0 0.0
      %2985 = vmatpush1.msra.mxu0 0.0
      %2986 = vmatprep.subr.mxu0 0.0
      %2987 = vmatpush1.msra.mxu0 0.0
      %2988 = vmatprep.subr.mxu0 0.0
      %2989 = vmatpush1.msra.mxu0 0.0
      %2990 = vmatprep.subr.mxu0 0.0
      %2991 = vmatpush1.msra.mxu0 0.0
      %2992 = vmatprep.subr.mxu0 0.0
      %2993 = vmatpush1.msra.mxu0 0.0
      %2994 = vmatprep.subr.mxu0 0.0
      %2995 = vmatpush1.msra.mxu0 0.0
      %2996 = vmatprep.subr.mxu0 0.0
      %2997 = vmatpush1.msra.mxu0 0.0
      %2998 = vmatprep.subr.mxu0 0.0
      %2999 = vmatpush1.msra.mxu0 %v2966
      %3000 = vmatprep.subr.mxu0 0.0
      %3001 = vmatpush2.msra.mxu0 0.0
      %3002 = vmatprep.subr.mxu0 0.0
      %3003 = vmatpush2.msra.mxu0 0.0
      %3004 = vmatprep.subr.mxu0 0.0
      %3005 = vmatpush2.msra.mxu0 0.0
      %3006 = vmatprep.subr.mxu0 0.0
      %3007 = vmatpush2.msra.mxu0 0.0
      %3008 = vmatprep.subr.mxu0 0.0
      %3009 = vmatpush2.msra.mxu0 0.0
      %3010 = vmatprep.subr.mxu0 0.0
      %3011 = vmatpush2.msra.mxu0 0.0
      %3012 = vmatprep.subr.mxu0 0.0
      %3013 = vmatpush2.msra.mxu0 0.0
      %3014 = vmatprep.subr.mxu0 0.0
      %3015 = vmatpush2.msra.mxu0 0.0
      %3016 = vmatprep.subr.mxu0 0.0
      %3017 = vmatpush2.msra.mxu0 0.0
      %3018 = vmatprep.subr.mxu0 0.0
      %3019 = vmatpush2.msra.mxu0 0.0
      %3020 = vmatprep.subr.mxu0 0.0
      %3021 = vmatpush2.msra.mxu0 0.0
      %3022 = vmatprep.subr.mxu0 0.0
      %3023 = vmatpush2.msra.mxu0 0.0
      %3024 = vmatprep.subr.mxu0 0.0
      %3025 = vmatpush2.msra.mxu0 0.0
      %3026 = vmatprep.subr.mxu0 0.0
      %3027 = vmatpush2.msra.mxu0 0.0
      %3028 = vmatprep.subr.mxu0 0.0
      %3029 = vmatpush2.msra.mxu0 0.0
      %3030 = vmatprep.subr.mxu0 0.0
      %3031 = vmatpush2.msra.mxu0 0.0
      %3032 = vmatprep.mubr.f32.mxu0 0.0
      %3033 = vmatmul.mubr.f32.gmra.mxu0 %v2939
      %v3034 = vpop.f32.mrf.mxu0
      %v3035 = vadd.f32 0.0, %v3034
      %v3036 = vpop.f32.mrf.mxu0
      %3037 = vmatprep.mubr.f32.mxu0 0.0
      %3038 = vmatmul.mubr.f32.gmra.mxu0 %v2942
      %v3039 = vpop.f32.mrf.mxu0
      %v3040 = vadd.f32 0.0, %v3039
      %v3041 = vpop.f32.mrf.mxu0
      %3042 = vmatprep.mubr.f32.mxu0 0.0
      %3043 = vmatmul.mubr.f32.gmra.mxu0 %v2945
      %v3044 = vpop.f32.mrf.mxu0
      %v3045 = vadd.f32 0.0, %v3044
      %v3046 = vpop.f32.mrf.mxu0
      %3047 = vmatprep.mubr.f32.mxu0 0.0
      %3048 = vmatmul.mubr.f32.gmra.mxu0 %v2948
      %v3049 = vpop.f32.mrf.mxu0
      %v3050 = vadd.f32 0.0, %v3049
      %v3051 = vpop.f32.mrf.mxu0
      %3052 = vmatprep.mubr.f32.mxu0 0.0
      %3053 = vmatmul.mubr.f32.gmra.mxu0 %v2951
      %v3054 = vpop.f32.mrf.mxu0
      %v3055 = vadd.f32 0.0, %v3054
      %v3056 = vpop.f32.mrf.mxu0
      %3057 = vmatprep.mubr.f32.mxu0 0.0
      %3058 = vmatmul.mubr.f32.gmra.mxu0 %v2954
      %v3059 = vpop.f32.mrf.mxu0
      %v3060 = vadd.f32 0.0, %v3059
      %v3061 = vpop.f32.mrf.mxu0
      %3062 = vmatprep.mubr.f32.mxu0 0.0
      %3063 = vmatmul.mubr.f32.gmra.mxu0 %v2957
      %v3064 = vpop.f32.mrf.mxu0
      %v3065 = vadd.f32 0.0, %v3064
      %v3066 = vpop.f32.mrf.mxu0
      %3067 = vmatprep.mubr.f32.mxu0 0.0
      %3068 = vmatmul.mubr.f32.gmra.mxu0 %v2960
      %v3069 = vpop.f32.mrf.mxu0
      %v3070 = vadd.f32 0.0, %v3069
      %v3071 = vpop.f32.mrf.mxu0
      %3072 = vmatprep.mubr.f32.mxu0 0.0
      %3073 = vmatmul.mubr.f32.gmra.mxu0 %v2963
      %v3074 = vpop.f32.mrf.mxu0
      %v3075 = vadd.f32 0.0, %v3074
      %v3076 = vpop.f32.mrf.mxu0
      %3077 = vdwg.mxu0
      %v3078 = vadd.f32 %v2918, %v3035
      %v3079 = vadd.f32 %v2919, %v3040
      %v3080 = vadd.f32 %v2920, %v3045
      %v3081 = vadd.f32 %v2921, %v3050
      %v3082 = vadd.f32 %v2922, %v3055
      %v3083 = vadd.f32 %v2923, %v3060
      %v3084 = vadd.f32 %v2924, %v3065
      %v3085 = vadd.f32 %v2925, %v3070
      %v3086 = vadd.f32 %v2926, %v3075
      %v3087 = vld [vmem:[%s353 + $0xa] sm:$0xff]
      %v3088 = vld [vmem:[%s353 + $0x12] sm:$0xff]
      %v3089 = vld [vmem:[%s353 + $0x1a] sm:$0xff]
      %v3090 = vld [vmem:[%s353 + $0x22] sm:$0xff]
      %v3091 = vld [vmem:[%s353 + $0x2a] sm:$0xff]
      %v3092 = vld [vmem:[%s353 + $0x32] sm:$0xff]
      %v3093 = vld [vmem:[%s353 + $0x3a] sm:$0xff]
      %v3094 = vld [vmem:[%s353 + $0x42] sm:$0xff]
      %v3095 = vld [vmem:[%s353 + $0x4a] sm:$0xff]
      %s3096 = scalar_lea.vmem %s4, 32
      %v3097 = vld [vmem:[%s3096] sm:$0xf]
      %v3099 = vsel %vm394, %v3087, 0
      %v3102 = vsel %vm394, %v3088, 0
      %v3105 = vsel %vm394, %v3089, 0
      %v3108 = vsel %vm394, %v3090, 0
      %v3111 = vsel %vm394, %v3091, 0
      %v3114 = vsel %vm394, %v3092, 0
      %v3117 = vsel %vm394, %v3093, 0
      %v3120 = vsel %vm394, %v3094, 0
      %v3123 = vsel %vm394, %v3095, 0
      %v3126 = vsel %vm422, %v3097, 0
      %3128 = vmatprep.subr.mxu0 0.0
      %3129 = vmatpush1.msra.mxu0 0.0
      %3130 = vmatprep.subr.mxu0 0.0
      %3131 = vmatpush1.msra.mxu0 0.0
      %3132 = vmatprep.subr.mxu0 0.0
      %3133 = vmatpush1.msra.mxu0 0.0
      %3134 = vmatprep.subr.mxu0 0.0
      %3135 = vmatpush1.msra.mxu0 0.0
      %3136 = vmatprep.subr.mxu0 0.0
      %3137 = vmatpush1.msra.mxu0 0.0
      %3138 = vmatprep.subr.mxu0 0.0
      %3139 = vmatpush1.msra.mxu0 0.0
      %3140 = vmatprep.subr.mxu0 0.0
      %3141 = vmatpush1.msra.mxu0 0.0
      %3142 = vmatprep.subr.mxu0 0.0
      %3143 = vmatpush1.msra.mxu0 0.0
      %3144 = vmatprep.subr.mxu0 0.0
      %3145 = vmatpush1.msra.mxu0 0.0
      %3146 = vmatprep.subr.mxu0 0.0
      %3147 = vmatpush1.msra.mxu0 0.0
      %3148 = vmatprep.subr.mxu0 0.0
      %3149 = vmatpush1.msra.mxu0 0.0
      %3150 = vmatprep.subr.mxu0 0.0
      %3151 = vmatpush1.msra.mxu0 0.0
      %3152 = vmatprep.subr.mxu0 0.0
      %3153 = vmatpush1.msra.mxu0 0.0
      %3154 = vmatprep.subr.mxu0 0.0
      %3155 = vmatpush1.msra.mxu0 0.0
      %3156 = vmatprep.subr.mxu0 0.0
      %3157 = vmatpush1.msra.mxu0 0.0
      %3158 = vmatprep.subr.mxu0 0.0
      %3159 = vmatpush1.msra.mxu0 %v3126
      %3160 = vmatprep.subr.mxu0 0.0
      %3161 = vmatpush2.msra.mxu0 0.0
      %3162 = vmatprep.subr.mxu0 0.0
      %3163 = vmatpush2.msra.mxu0 0.0
      %3164 = vmatprep.subr.mxu0 0.0
      %3165 = vmatpush2.msra.mxu0 0.0
      %3166 = vmatprep.subr.mxu0 0.0
      %3167 = vmatpush2.msra.mxu0 0.0
      %3168 = vmatprep.subr.mxu0 0.0
      %3169 = vmatpush2.msra.mxu0 0.0
      %3170 = vmatprep.subr.mxu0 0.0
      %3171 = vmatpush2.msra.mxu0 0.0
      %3172 = vmatprep.subr.mxu0 0.0
      %3173 = vmatpush2.msra.mxu0 0.0
      %3174 = vmatprep.subr.mxu0 0.0
      %3175 = vmatpush2.msra.mxu0 0.0
      %3176 = vmatprep.subr.mxu0 0.0
      %3177 = vmatpush2.msra.mxu0 0.0
      %3178 = vmatprep.subr.mxu0 0.0
      %3179 = vmatpush2.msra.mxu0 0.0
      %3180 = vmatprep.subr.mxu0 0.0
      %3181 = vmatpush2.msra.mxu0 0.0
      %3182 = vmatprep.subr.mxu0 0.0
      %3183 = vmatpush2.msra.mxu0 0.0
      %3184 = vmatprep.subr.mxu0 0.0
      %3185 = vmatpush2.msra.mxu0 0.0
      %3186 = vmatprep.subr.mxu0 0.0
      %3187 = vmatpush2.msra.mxu0 0.0
      %3188 = vmatprep.subr.mxu0 0.0
      %3189 = vmatpush2.msra.mxu0 0.0
      %3190 = vmatprep.subr.mxu0 0.0
      %3191 = vmatpush2.msra.mxu0 0.0
      %3192 = vmatprep.mubr.f32.mxu0 0.0
      %3193 = vmatmul.mubr.f32.gmra.mxu0 %v3099
      %v3194 = vpop.f32.mrf.mxu0
      %v3195 = vadd.f32 0.0, %v3194
      %v3196 = vpop.f32.mrf.mxu0
      %3197 = vmatprep.mubr.f32.mxu0 0.0
      %3198 = vmatmul.mubr.f32.gmra.mxu0 %v3102
      %v3199 = vpop.f32.mrf.mxu0
      %v3200 = vadd.f32 0.0, %v3199
      %v3201 = vpop.f32.mrf.mxu0
      %3202 = vmatprep.mubr.f32.mxu0 0.0
      %3203 = vmatmul.mubr.f32.gmra.mxu0 %v3105
      %v3204 = vpop.f32.mrf.mxu0
      %v3205 = vadd.f32 0.0, %v3204
      %v3206 = vpop.f32.mrf.mxu0
      %3207 = vmatprep.mubr.f32.mxu0 0.0
      %3208 = vmatmul.mubr.f32.gmra.mxu0 %v3108
      %v3209 = vpop.f32.mrf.mxu0
      %v3210 = vadd.f32 0.0, %v3209
      %v3211 = vpop.f32.mrf.mxu0
      %3212 = vmatprep.mubr.f32.mxu0 0.0
      %3213 = vmatmul.mubr.f32.gmra.mxu0 %v3111
      %v3214 = vpop.f32.mrf.mxu0
      %v3215 = vadd.f32 0.0, %v3214
      %v3216 = vpop.f32.mrf.mxu0
      %3217 = vmatprep.mubr.f32.mxu0 0.0
      %3218 = vmatmul.mubr.f32.gmra.mxu0 %v3114
      %v3219 = vpop.f32.mrf.mxu0
      %v3220 = vadd.f32 0.0, %v3219
      %v3221 = vpop.f32.mrf.mxu0
      %3222 = vmatprep.mubr.f32.mxu0 0.0
      %3223 = vmatmul.mubr.f32.gmra.mxu0 %v3117
      %v3224 = vpop.f32.mrf.mxu0
      %v3225 = vadd.f32 0.0, %v3224
      %v3226 = vpop.f32.mrf.mxu0
      %3227 = vmatprep.mubr.f32.mxu0 0.0
      %3228 = vmatmul.mubr.f32.gmra.mxu0 %v3120
      %v3229 = vpop.f32.mrf.mxu0
      %v3230 = vadd.f32 0.0, %v3229
      %v3231 = vpop.f32.mrf.mxu0
      %3232 = vmatprep.mubr.f32.mxu0 0.0
      %3233 = vmatmul.mubr.f32.gmra.mxu0 %v3123
      %v3234 = vpop.f32.mrf.mxu0
      %v3235 = vadd.f32 0.0, %v3234
      %v3236 = vpop.f32.mrf.mxu0
      %3237 = vdwg.mxu0
      %v3238 = vadd.f32 %v3078, %v3195
      %v3239 = vadd.f32 %v3079, %v3200
      %v3240 = vadd.f32 %v3080, %v3205
      %v3241 = vadd.f32 %v3081, %v3210
      %v3242 = vadd.f32 %v3082, %v3215
      %v3243 = vadd.f32 %v3083, %v3220
      %v3244 = vadd.f32 %v3084, %v3225
      %v3245 = vadd.f32 %v3085, %v3230
      %v3246 = vadd.f32 %v3086, %v3235
      %v3247 = vld [vmem:[%s5] sm:$0x1]
      %v3249 = vlaneseq
      %v3250 = vshrl.u32 %v3249, 7
      %v3251 = vsub.s32 0, %v3250
      %v3252 = vrot.slane %v3247, %v3251
      %v3254 = vadd.f32 %v3238, %v3252
      %v3255 = vadd.f32 %v3239, %v3252
      %v3256 = vadd.f32 %v3240, %v3252
      %v3257 = vadd.f32 %v3241, %v3252
      %v3258 = vadd.f32 %v3242, %v3252
      %v3259 = vadd.f32 %v3243, %v3252
      %v3260 = vadd.f32 %v3244, %v3252
      %v3261 = vadd.f32 %v3245, %v3252
      %v3262 = vadd.f32 %v3246, %v3252
      %3263 = vst.msk [vmem:[%s371] sm:$0xff] %vm394, %v3254
      %3264 = vst.msk [vmem:[%s371 + $0x8] sm:$0xff] %vm394, %v3255
      %3265 = vst.msk [vmem:[%s371 + $0x10] sm:$0xff] %vm394, %v3256
      %3266 = vst.msk [vmem:[%s371 + $0x18] sm:$0xff] %vm394, %v3257
      %3267 = vst.msk [vmem:[%s371 + $0x20] sm:$0xff] %vm394, %v3258
      %3268 = vst.msk [vmem:[%s371 + $0x28] sm:$0xff] %vm394, %v3259
      %3269 = vst.msk [vmem:[%s371 + $0x30] sm:$0xff] %vm394, %v3260
      %3270 = vst.msk [vmem:[%s371 + $0x38] sm:$0xff] %vm394, %v3261
      %3271 = vst.msk [vmem:[%s371 + $0x40] sm:$0xff] %vm394, %v3262
      %p3272 = scmp.lt.s32.totalorder %s23, 1
      %s3273 = scalar_select %p3272, %s23, 1
      %p3274 = scmp.lt.s32.totalorder %s24, 0
      %s3275 = scalar_select %p3274, %s24, 0
      %s3276 = smul.addr %s3275, 9
      %s3277 = smul.addr %s3273, 9
      %s3278 = sadd.s32 %s3276, %s3277
      %s3279 = smul.addr %s3278, 8
      %s3280 = scalar_lea.vmem %s6, %s3279
      %p3281 = scmp.lt.s32.totalorder %s23, 1
      %s3282 = scalar_select %p3281, %s23, 1
      %p3283 = scmp.lt.s32.totalorder %s24, 0
      %s3284 = scalar_select %p3283, %s24, 0
      %s3285 = smul.addr %s3284, 9
      %s3286 = smul.addr %s3282, 9
      %s3287 = sadd.s32 %s3285, %s3286
      %s3288 = smul.addr %s3287, 8
      %s3289 = scalar_lea.vmem %s7, %s3288
      // Predicated region
      $region45: #{downsample2d_forward.1} parent=43 // pred_check
        %p3290 = pneg %p191
      $region46: #{downsample2d_forward.1} parent=43 // pred_check_branch
        %3292 = sbr.rel (%p3290) target = $region48
      $region47: #{downsample2d_forward.1} parent=43 // pred_region
        _
      $region48: #{downsample2d_forward.1} parent=43 // pred_fallthru
        _
      // Predicated region
      $region49: #{downsample2d_forward.1} parent=43 // pred_check
        %p3293 = pneg %p219
      $region50: #{downsample2d_forward.1} parent=43 // pred_check_branch
        %3295 = sbr.rel (%p3293) target = $region52
      $region51: #{downsample2d_forward.1} parent=43 // pred_region
        _
      $region52: #{downsample2d_forward.1} parent=43 // pred_fallthru
        _
    $region44: #{downsample2d_forward.1} parent=5 // pred_fallthru
      _
    %p3296 = scmp.le.s32.totalorder 2, %s14
    // Predicated region
    $region53: #{downsample2d_forward.1} parent=5 // pred_check
      %p3297 = pneg %p3296
    $region54: #{downsample2d_forward.1} parent=5 // pred_check_branch
      %3299 = sbr.rel (%p3297) target = $region56
    $region55: #{downsample2d_forward.1} parent=5 // pred_region
      %s3300 = ssub.s32 %s14, 2
      // Predicated region
      $region57: #{downsample2d_forward.1} parent=55 // pred_check
        %p3301 = pneg %p197
      $region58: #{downsample2d_forward.1} parent=55 // pred_check_branch
        %3303 = sbr.rel (%p3301) target = $region60
      $region59: #{downsample2d_forward.1} parent=55 // pred_region
        %p3304 = scmp.lt.s32.totalorder %s25, 1
        %s3305 = scalar_select %p3304, %s25, 1
        %p3306 = scmp.lt.s32.totalorder %s26, 0
        %s3307 = scalar_select %p3306, %s26, 0
        %s3308 = smul.addr %s3307, 9
        %s3309 = smul.addr %s3305, 9
        %s3310 = sadd.s32 %s3308, %s3309
        %s3311 = smul.addr %s3310, 8
        %s3312 = scalar_lea.vmem %s6, %s3311
      $region60: #{downsample2d_forward.1} parent=55 // pred_fallthru
        _
      // Predicated region
      $region61: #{downsample2d_forward.1} parent=55 // pred_check
        %p3313 = pneg %p225
      $region62: #{downsample2d_forward.1} parent=55 // pred_check_branch
        %3315 = sbr.rel (%p3313) target = $region64
      $region63: #{downsample2d_forward.1} parent=55 // pred_region
        %p3316 = scmp.lt.s32.totalorder %s25, 1
        %s3317 = scalar_select %p3316, %s25, 1
        %p3318 = scmp.lt.s32.totalorder %s26, 0
        %s3319 = scalar_select %p3318, %s26, 0
        %s3320 = smul.addr %s3319, 9
        %s3321 = smul.addr %s3317, 9
        %s3322 = sadd.s32 %s3320, %s3321
        %s3323 = smul.addr %s3322, 8
        %s3324 = scalar_lea.vmem %s7, %s3323
      $region64: #{downsample2d_forward.1} parent=55 // pred_fallthru
        _
    $region56: #{downsample2d_forward.1} parent=5 // pred_fallthru
      _
  $region6: #{downsample2d_forward.1} parent=0 // loop_footer
    %s18 = sadd.s32 1, %s14
  $region7: #{downsample2d_forward.1} parent=0 // loop_footer_branch
    %13 = sbr.rel target = $region3
  $region8: #{downsample2d_forward.1} parent=0 // loop_exit
    _

</llo_original>
